<compile_context>
chip_gen: v7x
topology: tpu7x:2x2x1
jax: 0.10.0
libtpu: 0.0.40
codegen_flags: <defaults>
</compile_context>

<pallas_src>
import jax
import jax.numpy as jnp
import numpy as np
from jax.experimental import pallas as pl
from jax.experimental.pallas import tpu as pltpu

# -----------------------------------------------------------------------------
# Model dims (consistent with the module's config)
# -----------------------------------------------------------------------------
BATCH = 256    # total sequences per call (2 tiles of 128 -> v7x megacore)
BTILE = 128    # batch tile per grid step (fills MXU rows)
T = 8          # sequence length
HID = 32       # config.hid_dim
MLP = 32       # config.mlp_dim
NCLASS = 8     # config.event_class
LANES = 128
assert 4 * HID == LANES

# bf16 matmul-weight slab: rows 0..HID-1 = [W_hh(scaled) | W1], rows HID.. = W2
WMAT_ROWS = HID + MLP          # 64 (multiple of bf16 sublane tile 16)
BIAS_ROWS = 8                  # f32 bias/W_ih slab (8, 128)


# -----------------------------------------------------------------------------
# Pallas kernel: full forward_1 (LSTM recurrence + fused heads), one batch tile
# -----------------------------------------------------------------------------
def rmtpp_fwd_kernel(x_ref, wmat_ref, bias_ref, out_ref):
    """x_ref: (BTILE, T) f32, wmat_ref: (WMAT_ROWS, 256) bf16,
    bias_ref: (BIAS_ROWS, 128) f32, out_ref: (BTILE, 128) f32."""
    H, M, C = HID, MLP, NCLASS
    bsz, seq_len = x_ref.shape

    # f32 scalar-row slab (i/f/o lane groups of w_ih / b_lstm pre-scaled by 0.5)
    w_ih = bias_ref[0:1, :]                       # (1, 4H)
    b_lstm = bias_ref[1:2, :]                     # (1, 4H)
    b1 = bias_ref[2:3, :]                         # (1, 128) [mlp_b | vt_b | 0]
    b2 = bias_ref[3:4, :]                         # (1, 128) [ev_b  | tm_b | 0]

    # bf16 matmul weights
    w_rec = wmat_ref[0:H, :]                      # (H, 256) [W_hh(scaled) | W1]
    w_head = wmat_ref[H:H + M, 0:LANES]           # (M, 128) [ev_w | tm_w | 0]

    x = x_ref[...]                                # (bsz, T) f32

    c = jnp.zeros((bsz, H), jnp.float32)
    # h_0 = 0, so step-0 gates have no recurrent contribution.
    gates = x[:, 0:1] * w_ih + b_lstm             # (bsz, 4H) f32
    fused = None
    for t in range(seq_len):                      # fully unrolled (static T)
        # Single EUP pass per step: tanh of the (pre-scaled) gates; sigmoid
        # lanes recovered as 0.5*tanh(x/2)+0.5 with one VPU affine.
        tg = jnp.tanh(gates)
        sg = tg * 0.5 + 0.5
        i_g = sg[:, 0 * H:1 * H]
        f_g = sg[:, 1 * H:2 * H]
        g_g = tg[:, 2 * H:3 * H]
        o_g = sg[:, 3 * H:4 * H]
        c = f_g * c + i_g * g_g
        h = o_g * jnp.tanh(c)
        # Fused 256-lane matmul: lanes [0:128] feed the next step's gates,
        # lanes [128:256] are the stage-1 head (mlp|Vt) -- used on last step.
        fused = jnp.dot(h.astype(jnp.bfloat16), w_rec,
                        preferred_element_type=jnp.float32)       # (bsz, 256)
        if t + 1 < seq_len:
            # Input contribution computed in-loop (off the serial chain).
            gates = x[:, t + 1:t + 2] * w_ih + b_lstm + fused[:, 0:LANES]

    # Head tail: stage-1 result comes straight from the last fused matmul.
    pre1 = fused[:, LANES:2 * LANES] + b1                          # (bsz, 128)
    state_vt = pre1[:, M:M + 1]                                    # (bsz, 1)
    mlp_out = jnp.tanh(pre1[:, 0:M])       # mlp_drop is identity at inference
    out2 = jnp.dot(mlp_out.astype(jnp.bfloat16), w_head,
                   preferred_element_type=jnp.float32) + b2        # (bsz, 128)

    # lanes [0..C-1]=event_logits, [C]=time_logits, [C+1]=state_Vt, rest ~0.
    out_ref[...] = out2
    out_ref[:, C + 1:C + 2] = state_vt


def rmtpp_forward(input_time, params):
    """Runs forward_1 as a single Pallas kernel.  input_time: (B, T) f32."""
    b, t = input_time.shape
    assert t == T
    b_pad = ((b + BTILE - 1) // BTILE) * BTILE
    x = input_time
    if b_pad != b:
        x = jnp.pad(x, ((0, b_pad - b), (0, 0)))
    n_tiles = b_pad // BTILE

    out = pl.pallas_call(
        rmtpp_fwd_kernel,
        out_shape=jax.ShapeDtypeStruct((b_pad, LANES), jnp.float32),
        grid_spec=pltpu.PrefetchScalarGridSpec(
            num_scalar_prefetch=0,
            grid=(n_tiles,),
            in_specs=[
                pl.BlockSpec((BTILE, T), lambda i: (i, 0)),
                pl.BlockSpec((WMAT_ROWS, 2 * LANES), lambda i: (0, 0)),
                pl.BlockSpec((BIAS_ROWS, LANES), lambda i: (0, 0)),
            ],
            out_specs=pl.BlockSpec((BTILE, LANES), lambda i: (i, 0)),
        ),
        compiler_params=pltpu.CompilerParams(
            dimension_semantics=("parallel",)),   # shards batch tiles over TCs
    )(x, params["w_mat"], params["w_bias"])

    out = out[:b]
    event_logits = out[:, :NCLASS]
    time_logits = out[:, NCLASS:NCLASS + 1]
    state_vt = out[:, NCLASS + 1:NCLASS + 2]
    # Scalar softplus kept outside the kernel (removes one input + one output).
    wt_sp = jax.nn.softplus(params["intensity_w"])
    return time_logits, event_logits, state_vt, wt_sp


# -----------------------------------------------------------------------------
# Weight packing
# -----------------------------------------------------------------------------
def pack_weights(p):
    """Pack weights into (WMAT_ROWS, 256) bf16 + (BIAS_ROWS, 128) f32 slabs."""
    H, M, C = HID, MLP, NCLASS
    # i/f/o lane groups scaled by 0.5 so sigmoid(x) = 0.5*tanh(scaled) + 0.5
    scale = jnp.ones((4 * H,), jnp.float32)
    scale = scale.at[0 * H:2 * H].set(0.5)   # i, f
    scale = scale.at[3 * H:4 * H].set(0.5)   # o

    w_mat = jnp.zeros((WMAT_ROWS, 2 * LANES), jnp.float32)
    # rows 0..H-1: [W_hh^T (scaled) | mlp_w^T | vt_w^T | 0]
    w_mat = w_mat.at[0:H, 0:LANES].set(p["w_hh_t"] * scale[None, :])
    w_mat = w_mat.at[0:H, LANES:LANES + M].set(p["mlp_w_t"])
    w_mat = w_mat.at[0:H, LANES + M].set(p["vt_w_t"][:, 0])
    # rows H..H+M-1: [ev_w^T | tm_w^T | 0]
    w_mat = w_mat.at[H:H + M, 0:C].set(p["ev_w_t"])
    w_mat = w_mat.at[H:H + M, C].set(p["tm_w_t"][:, 0])
    w_mat = w_mat.astype(jnp.bfloat16)

    w_bias = jnp.zeros((BIAS_ROWS, LANES), jnp.float32)
    w_bias = w_bias.at[0, :].set(p["w_ih_t"][0] * scale)
    w_bias = w_bias.at[1, :].set(p["b_lstm"][0] * scale)
    w_bias = w_bias.at[2, 0:M].set(p["mlp_b"][0])
    w_bias = w_bias.at[2, M].set(p["vt_b"][0, 0])
    w_bias = w_bias.at[3, 0:C].set(p["ev_b"][0])
    w_bias = w_bias.at[3, C].set(p["tm_b"][0, 0])
    return w_mat, w_bias


# -----------------------------------------------------------------------------
# Deterministic parameter init (synthetic; mirrors the nn.Module shapes)
# -----------------------------------------------------------------------------
def init_params(key):
    ks = jax.random.split(key, 12)
    s = 0.1

    def rnd(k, shape):
        return jax.random.normal(k, shape, jnp.float32) * s

    w_ih = rnd(ks[0], (4 * HID, 1))          # torch lstm.weight_ih_l0
    w_hh = rnd(ks[1], (4 * HID, HID))        # torch lstm.weight_hh_l0
    b_ih = rnd(ks[2], (4 * HID,))
    b_hh = rnd(ks[3], (4 * HID,))
    mlp_w = rnd(ks[4], (MLP, HID))           # mlp.weight
    mlp_b = rnd(ks[5], (MLP,))
    ev_w = rnd(ks[6], (NCLASS, MLP))         # event_linear.weight
    ev_b = rnd(ks[7], (NCLASS,))
    tm_w = rnd(ks[8], (1, MLP))              # time_linear.weight
    tm_b = rnd(ks[9], (1,))
    vt_w = rnd(ks[10], (1, HID))             # Vt.weight
    vt_b = rnd(ks[11], (1,))
    intensity_w = jnp.array([[0.1]], jnp.float32)

    p = {
        "w_ih_t": w_ih.T.reshape(1, 4 * HID),
        "w_hh_t": w_hh.T,
        "b_lstm": (b_ih + b_hh).reshape(1, 4 * HID),
        "mlp_w_t": mlp_w.T, "mlp_b": mlp_b.reshape(1, MLP),
        "ev_w_t": ev_w.T, "ev_b": ev_b.reshape(1, NCLASS),
        "tm_w_t": tm_w.T, "tm_b": tm_b.reshape(1, 1),
        "vt_w_t": vt_w.T, "vt_b": vt_b.reshape(1, 1),
        "intensity_w": intensity_w,
    }
    p["w_mat"], p["w_bias"] = pack_weights(p)
    return p


# -----------------------------------------------------------------------------
# Pure-JAX f32 reference (correctness sanity check)
# -----------------------------------------------------------------------------
def rmtpp_forward_ref(x, p):
    bsz = x.shape[0]
    h = jnp.zeros((bsz, HID), jnp.float32)
    c = jnp.zeros((bsz, HID), jnp.float32)
    for t in range(x.shape[1]):
        x_t = x[:, t:t + 1]
        gates = x_t * p["w_ih_t"] + h @ p["w_hh_t"] + p["b_lstm"]
        i = jax.nn.sigmoid(gates[:, 0 * HID:1 * HID])
        f = jax.nn.sigmoid(gates[:, 1 * HID:2 * HID])
        g = jnp.tanh(gates[:, 2 * HID:3 * HID])
        o = jax.nn.sigmoid(gates[:, 3 * HID:4 * HID])
        c = f * c + i * g
        h = o * jnp.tanh(c)
    state_vt = h @ p["vt_w_t"] + p["vt_b"]
    mlp = jnp.tanh(h @ p["mlp_w_t"] + p["mlp_b"])
    ev = mlp @ p["ev_w_t"] + p["ev_b"]
    tm = mlp @ p["tm_w_t"] + p["tm_b"]
    wt = jax.nn.softplus(p["intensity_w"])
    return tm, ev, state_vt, wt


if __name__ == "__main__":
    key = jax.random.PRNGKey(0)
    k_in, k_par = jax.random.split(key)
    input_time = jax.random.uniform(k_in, (BATCH, T), jnp.float32)  # gaps
    params = init_params(k_par)

    fwd = jax.jit(rmtpp_forward)
    outs = fwd(input_time, params)
    outs = jax.block_until_ready(outs)
    time_logits, event_logits, state_vt, wt_sp = outs

    # sanity check against pure-JAX f32 reference (bf16 matmuls -> relaxed tol)
    refs = rmtpp_forward_ref(input_time, params)
    for got, want in zip(outs, refs):
        np.testing.assert_allclose(np.asarray(got), np.asarray(want),
                                   rtol=1e-2, atol=1e-2)

    assert time_logits.shape == (BATCH, 1)
    assert event_logits.shape == (BATCH, NCLASS)
    assert state_vt.shape == (BATCH, 1)
    assert wt_sp.shape == (1, 1)
    print("KERNEL_OK")
</pallas_src>

<mosaic_0001>
module attributes {stable_mosaic.version = 11 : i64} {
  func.func @rmtpp_fwd_kernel(%arg0: i32, %arg1: memref<128x8xf32, #tpu.memory_space<vmem>>, %arg2: memref<64x256xbf16, #tpu.memory_space<vmem>>, %arg3: memref<8x128xf32, #tpu.memory_space<vmem>>, %arg4: memref<128x128xf32, #tpu.memory_space<vmem>>) attributes {dimension_semantics = [#tpu.dimension_semantics<parallel>], iteration_bounds = array<i64: 2>, scalar_prefetch = 0 : i64, scratch_operands = 0 : i64, tpu.core_type = #tpu.core_type<tc>, window_params = [{transform_indices = @transform_0, window_bounds = array<i64: 128, 8>}, {pipeline_mode = #tpu.pipeline_mode<synchronous>, transform_indices = @transform_1, window_bounds = array<i64: 64, 256>}, {pipeline_mode = #tpu.pipeline_mode<synchronous>, transform_indices = @transform_2, window_bounds = array<i64: 8, 128>}, {transform_indices = @transform_3, window_bounds = array<i64: 128, 128>}]} {
    %c0 = arith.constant 0 : index
    %c0_0 = arith.constant 0 : index
    %0 = vector.load %arg3[%c0, %c0_0] : memref<8x128xf32, #tpu.memory_space<vmem>>, vector<1x128xf32>
    %c1 = arith.constant 1 : index
    %c0_1 = arith.constant 0 : index
    %1 = vector.load %arg3[%c1, %c0_1] : memref<8x128xf32, #tpu.memory_space<vmem>>, vector<1x128xf32>
    %c2 = arith.constant 2 : index
    %c0_2 = arith.constant 0 : index
    %2 = vector.load %arg3[%c2, %c0_2] : memref<8x128xf32, #tpu.memory_space<vmem>>, vector<1x128xf32>
    %c3 = arith.constant 3 : index
    %c0_3 = arith.constant 0 : index
    %3 = vector.load %arg3[%c3, %c0_3] : memref<8x128xf32, #tpu.memory_space<vmem>>, vector<1x128xf32>
    %c0_4 = arith.constant 0 : index
    %c0_5 = arith.constant 0 : index
    %4 = vector.load %arg2[%c0_4, %c0_5] : memref<64x256xbf16, #tpu.memory_space<vmem>>, vector<32x256xbf16>
    %c32 = arith.constant 32 : index
    %c0_6 = arith.constant 0 : index
    %5 = vector.load %arg2[%c32, %c0_6] : memref<64x256xbf16, #tpu.memory_space<vmem>>, vector<32x128xbf16>
    %c0_7 = arith.constant 0 : index
    %c0_8 = arith.constant 0 : index
    %6 = vector.load %arg1[%c0_7, %c0_8] : memref<128x8xf32, #tpu.memory_space<vmem>>, vector<128x8xf32>
    %cst = arith.constant 0.000000e+00 : f32
    %7 = vector.broadcast %cst : f32 to vector<128x32xf32>
    %8 = vector.extract_strided_slice %6 {offsets = [0, 0], sizes = [128, 1], strides = [1, 1]} : vector<128x8xf32> to vector<128x1xf32>
    %9 = vector.broadcast %8 : vector<128x1xf32> to vector<128x128xf32>
    %10 = vector.broadcast %0 : vector<1x128xf32> to vector<128x128xf32>
    %11 = arith.mulf %9, %10 : vector<128x128xf32>
    %12 = vector.broadcast %1 : vector<1x128xf32> to vector<128x128xf32>
    %13 = arith.addf %11, %12 : vector<128x128xf32>
    %14 = math.tanh %13 : vector<128x128xf32>
    %cst_9 = arith.constant 5.000000e-01 : f32
    %15 = vector.broadcast %cst_9 : f32 to vector<128x128xf32>
    %16 = arith.mulf %14, %15 : vector<128x128xf32>
    %cst_10 = arith.constant 5.000000e-01 : f32
    %17 = vector.broadcast %cst_10 : f32 to vector<128x128xf32>
    %18 = arith.addf %16, %17 : vector<128x128xf32>
    %19 = vector.extract_strided_slice %18 {offsets = [0, 0], sizes = [128, 32], strides = [1, 1]} : vector<128x128xf32> to vector<128x32xf32>
    %20 = vector.extract_strided_slice %18 {offsets = [0, 32], sizes = [128, 32], strides = [1, 1]} : vector<128x128xf32> to vector<128x32xf32>
    %21 = vector.extract_strided_slice %14 {offsets = [0, 64], sizes = [128, 32], strides = [1, 1]} : vector<128x128xf32> to vector<128x32xf32>
    %22 = vector.extract_strided_slice %18 {offsets = [0, 96], sizes = [128, 32], strides = [1, 1]} : vector<128x128xf32> to vector<128x32xf32>
    %23 = arith.mulf %20, %7 : vector<128x32xf32>
    %24 = arith.mulf %19, %21 : vector<128x32xf32>
    %25 = arith.addf %23, %24 : vector<128x32xf32>
    %26 = math.tanh %25 : vector<128x32xf32>
    %27 = arith.mulf %22, %26 : vector<128x32xf32>
    %28 = arith.truncf %27 : vector<128x32xf32> to vector<128x32xbf16>
    %cst_11 = arith.constant dense<0.000000e+00> : vector<128x256xf32>
    %29 = tpu.matmul %28, %4, %cst_11 {dimension_numbers = #tpu.dot_dimension_numbers<[1], [0], [0], [1], [0, 0, 1, 1], [], []>} : vector<128x32xbf16>, vector<32x256xbf16>, vector<128x256xf32> -> vector<128x256xf32>
    %30 = vector.extract_strided_slice %6 {offsets = [0, 1], sizes = [128, 1], strides = [1, 1]} : vector<128x8xf32> to vector<128x1xf32>
    %31 = vector.broadcast %30 : vector<128x1xf32> to vector<128x128xf32>
    %32 = vector.broadcast %0 : vector<1x128xf32> to vector<128x128xf32>
    %33 = arith.mulf %31, %32 : vector<128x128xf32>
    %34 = vector.broadcast %1 : vector<1x128xf32> to vector<128x128xf32>
    %35 = arith.addf %33, %34 : vector<128x128xf32>
    %36 = vector.extract_strided_slice %29 {offsets = [0, 0], sizes = [128, 128], strides = [1, 1]} : vector<128x256xf32> to vector<128x128xf32>
    %37 = arith.addf %35, %36 : vector<128x128xf32>
    %38 = math.tanh %37 : vector<128x128xf32>
    %cst_12 = arith.constant 5.000000e-01 : f32
    %39 = vector.broadcast %cst_12 : f32 to vector<128x128xf32>
    %40 = arith.mulf %38, %39 : vector<128x128xf32>
    %cst_13 = arith.constant 5.000000e-01 : f32
    %41 = vector.broadcast %cst_13 : f32 to vector<128x128xf32>
    %42 = arith.addf %40, %41 : vector<128x128xf32>
    %43 = vector.extract_strided_slice %42 {offsets = [0, 0], sizes = [128, 32], strides = [1, 1]} : vector<128x128xf32> to vector<128x32xf32>
    %44 = vector.extract_strided_slice %42 {offsets = [0, 32], sizes = [128, 32], strides = [1, 1]} : vector<128x128xf32> to vector<128x32xf32>
    %45 = vector.extract_strided_slice %38 {offsets = [0, 64], sizes = [128, 32], strides = [1, 1]} : vector<128x128xf32> to vector<128x32xf32>
    %46 = vector.extract_strided_slice %42 {offsets = [0, 96], sizes = [128, 32], strides = [1, 1]} : vector<128x128xf32> to vector<128x32xf32>
    %47 = arith.mulf %44, %25 : vector<128x32xf32>
    %48 = arith.mulf %43, %45 : vector<128x32xf32>
    %49 = arith.addf %47, %48 : vector<128x32xf32>
    %50 = math.tanh %49 : vector<128x32xf32>
    %51 = arith.mulf %46, %50 : vector<128x32xf32>
    %52 = arith.truncf %51 : vector<128x32xf32> to vector<128x32xbf16>
    %cst_14 = arith.constant dense<0.000000e+00> : vector<128x256xf32>
    %53 = tpu.matmul %52, %4, %cst_14 {dimension_numbers = #tpu.dot_dimension_numbers<[1], [0], [0], [1], [0, 0, 1, 1], [], []>} : vector<128x32xbf16>, vector<32x256xbf16>, vector<128x256xf32> -> vector<128x256xf32>
    %54 = vector.extract_strided_slice %6 {offsets = [0, 2], sizes = [128, 1], strides = [1, 1]} : vector<128x8xf32> to vector<128x1xf32>
    %55 = vector.broadcast %54 : vector<128x1xf32> to vector<128x128xf32>
    %56 = vector.broadcast %0 : vector<1x128xf32> to vector<128x128xf32>
    %57 = arith.mulf %55, %56 : vector<128x128xf32>
    %58 = vector.broadcast %1 : vector<1x128xf32> to vector<128x128xf32>
    %59 = arith.addf %57, %58 : vector<128x128xf32>
    %60 = vector.extract_strided_slice %53 {offsets = [0, 0], sizes = [128, 128], strides = [1, 1]} : vector<128x256xf32> to vector<128x128xf32>
    %61 = arith.addf %59, %60 : vector<128x128xf32>
    %62 = math.tanh %61 : vector<128x128xf32>
    %cst_15 = arith.constant 5.000000e-01 : f32
    %63 = vector.broadcast %cst_15 : f32 to vector<128x128xf32>
    %64 = arith.mulf %62, %63 : vector<128x128xf32>
    %cst_16 = arith.constant 5.000000e-01 : f32
    %65 = vector.broadcast %cst_16 : f32 to vector<128x128xf32>
    %66 = arith.addf %64, %65 : vector<128x128xf32>
    %67 = vector.extract_strided_slice %66 {offsets = [0, 0], sizes = [128, 32], strides = [1, 1]} : vector<128x128xf32> to vector<128x32xf32>
    %68 = vector.extract_strided_slice %66 {offsets = [0, 32], sizes = [128, 32], strides = [1, 1]} : vector<128x128xf32> to vector<128x32xf32>
    %69 = vector.extract_strided_slice %62 {offsets = [0, 64], sizes = [128, 32], strides = [1, 1]} : vector<128x128xf32> to vector<128x32xf32>
    %70 = vector.extract_strided_slice %66 {offsets = [0, 96], sizes = [128, 32], strides = [1, 1]} : vector<128x128xf32> to vector<128x32xf32>
    %71 = arith.mulf %68, %49 : vector<128x32xf32>
    %72 = arith.mulf %67, %69 : vector<128x32xf32>
    %73 = arith.addf %71, %72 : vector<128x32xf32>
    %74 = math.tanh %73 : vector<128x32xf32>
    %75 = arith.mulf %70, %74 : vector<128x32xf32>
    %76 = arith.truncf %75 : vector<128x32xf32> to vector<128x32xbf16>
    %cst_17 = arith.constant dense<0.000000e+00> : vector<128x256xf32>
    %77 = tpu.matmul %76, %4, %cst_17 {dimension_numbers = #tpu.dot_dimension_numbers<[1], [0], [0], [1], [0, 0, 1, 1], [], []>} : vector<128x32xbf16>, vector<32x256xbf16>, vector<128x256xf32> -> vector<128x256xf32>
    %78 = vector.extract_strided_slice %6 {offsets = [0, 3], sizes = [128, 1], strides = [1, 1]} : vector<128x8xf32> to vector<128x1xf32>
    %79 = vector.broadcast %78 : vector<128x1xf32> to vector<128x128xf32>
    %80 = vector.broadcast %0 : vector<1x128xf32> to vector<128x128xf32>
    %81 = arith.mulf %79, %80 : vector<128x128xf32>
    %82 = vector.broadcast %1 : vector<1x128xf32> to vector<128x128xf32>
    %83 = arith.addf %81, %82 : vector<128x128xf32>
    %84 = vector.extract_strided_slice %77 {offsets = [0, 0], sizes = [128, 128], strides = [1, 1]} : vector<128x256xf32> to vector<128x128xf32>
    %85 = arith.addf %83, %84 : vector<128x128xf32>
    %86 = math.tanh %85 : vector<128x128xf32>
    %cst_18 = arith.constant 5.000000e-01 : f32
    %87 = vector.broadcast %cst_18 : f32 to vector<128x128xf32>
    %88 = arith.mulf %86, %87 : vector<128x128xf32>
    %cst_19 = arith.constant 5.000000e-01 : f32
    %89 = vector.broadcast %cst_19 : f32 to vector<128x128xf32>
    %90 = arith.addf %88, %89 : vector<128x128xf32>
    %91 = vector.extract_strided_slice %90 {offsets = [0, 0], sizes = [128, 32], strides = [1, 1]} : vector<128x128xf32> to vector<128x32xf32>
    %92 = vector.extract_strided_slice %90 {offsets = [0, 32], sizes = [128, 32], strides = [1, 1]} : vector<128x128xf32> to vector<128x32xf32>
    %93 = vector.extract_strided_slice %86 {offsets = [0, 64], sizes = [128, 32], strides = [1, 1]} : vector<128x128xf32> to vector<128x32xf32>
    %94 = vector.extract_strided_slice %90 {offsets = [0, 96], sizes = [128, 32], strides = [1, 1]} : vector<128x128xf32> to vector<128x32xf32>
    %95 = arith.mulf %92, %73 : vector<128x32xf32>
    %96 = arith.mulf %91, %93 : vector<128x32xf32>
    %97 = arith.addf %95, %96 : vector<128x32xf32>
    %98 = math.tanh %97 : vector<128x32xf32>
    %99 = arith.mulf %94, %98 : vector<128x32xf32>
    %100 = arith.truncf %99 : vector<128x32xf32> to vector<128x32xbf16>
    %cst_20 = arith.constant dense<0.000000e+00> : vector<128x256xf32>
    %101 = tpu.matmul %100, %4, %cst_20 {dimension_numbers = #tpu.dot_dimension_numbers<[1], [0], [0], [1], [0, 0, 1, 1], [], []>} : vector<128x32xbf16>, vector<32x256xbf16>, vector<128x256xf32> -> vector<128x256xf32>
    %102 = vector.extract_strided_slice %6 {offsets = [0, 4], sizes = [128, 1], strides = [1, 1]} : vector<128x8xf32> to vector<128x1xf32>
    %103 = vector.broadcast %102 : vector<128x1xf32> to vector<128x128xf32>
    %104 = vector.broadcast %0 : vector<1x128xf32> to vector<128x128xf32>
    %105 = arith.mulf %103, %104 : vector<128x128xf32>
    %106 = vector.broadcast %1 : vector<1x128xf32> to vector<128x128xf32>
    %107 = arith.addf %105, %106 : vector<128x128xf32>
    %108 = vector.extract_strided_slice %101 {offsets = [0, 0], sizes = [128, 128], strides = [1, 1]} : vector<128x256xf32> to vector<128x128xf32>
    %109 = arith.addf %107, %108 : vector<128x128xf32>
    %110 = math.tanh %109 : vector<128x128xf32>
    %cst_21 = arith.constant 5.000000e-01 : f32
    %111 = vector.broadcast %cst_21 : f32 to vector<128x128xf32>
    %112 = arith.mulf %110, %111 : vector<128x128xf32>
    %cst_22 = arith.constant 5.000000e-01 : f32
    %113 = vector.broadcast %cst_22 : f32 to vector<128x128xf32>
    %114 = arith.addf %112, %113 : vector<128x128xf32>
    %115 = vector.extract_strided_slice %114 {offsets = [0, 0], sizes = [128, 32], strides = [1, 1]} : vector<128x128xf32> to vector<128x32xf32>
    %116 = vector.extract_strided_slice %114 {offsets = [0, 32], sizes = [128, 32], strides = [1, 1]} : vector<128x128xf32> to vector<128x32xf32>
    %117 = vector.extract_strided_slice %110 {offsets = [0, 64], sizes = [128, 32], strides = [1, 1]} : vector<128x128xf32> to vector<128x32xf32>
    %118 = vector.extract_strided_slice %114 {offsets = [0, 96], sizes = [128, 32], strides = [1, 1]} : vector<128x128xf32> to vector<128x32xf32>
    %119 = arith.mulf %116, %97 : vector<128x32xf32>
    %120 = arith.mulf %115, %117 : vector<128x32xf32>
    %121 = arith.addf %119, %120 : vector<128x32xf32>
    %122 = math.tanh %121 : vector<128x32xf32>
    %123 = arith.mulf %118, %122 : vector<128x32xf32>
    %124 = arith.truncf %123 : vector<128x32xf32> to vector<128x32xbf16>
    %cst_23 = arith.constant dense<0.000000e+00> : vector<128x256xf32>
    %125 = tpu.matmul %124, %4, %cst_23 {dimension_numbers = #tpu.dot_dimension_numbers<[1], [0], [0], [1], [0, 0, 1, 1], [], []>} : vector<128x32xbf16>, vector<32x256xbf16>, vector<128x256xf32> -> vector<128x256xf32>
    %126 = vector.extract_strided_slice %6 {offsets = [0, 5], sizes = [128, 1], strides = [1, 1]} : vector<128x8xf32> to vector<128x1xf32>
    %127 = vector.broadcast %126 : vector<128x1xf32> to vector<128x128xf32>
    %128 = vector.broadcast %0 : vector<1x128xf32> to vector<128x128xf32>
    %129 = arith.mulf %127, %128 : vector<128x128xf32>
    %130 = vector.broadcast %1 : vector<1x128xf32> to vector<128x128xf32>
    %131 = arith.addf %129, %130 : vector<128x128xf32>
    %132 = vector.extract_strided_slice %125 {offsets = [0, 0], sizes = [128, 128], strides = [1, 1]} : vector<128x256xf32> to vector<128x128xf32>
    %133 = arith.addf %131, %132 : vector<128x128xf32>
    %134 = math.tanh %133 : vector<128x128xf32>
    %cst_24 = arith.constant 5.000000e-01 : f32
    %135 = vector.broadcast %cst_24 : f32 to vector<128x128xf32>
    %136 = arith.mulf %134, %135 : vector<128x128xf32>
    %cst_25 = arith.constant 5.000000e-01 : f32
    %137 = vector.broadcast %cst_25 : f32 to vector<128x128xf32>
    %138 = arith.addf %136, %137 : vector<128x128xf32>
    %139 = vector.extract_strided_slice %138 {offsets = [0, 0], sizes = [128, 32], strides = [1, 1]} : vector<128x128xf32> to vector<128x32xf32>
    %140 = vector.extract_strided_slice %138 {offsets = [0, 32], sizes = [128, 32], strides = [1, 1]} : vector<128x128xf32> to vector<128x32xf32>
    %141 = vector.extract_strided_slice %134 {offsets = [0, 64], sizes = [128, 32], strides = [1, 1]} : vector<128x128xf32> to vector<128x32xf32>
    %142 = vector.extract_strided_slice %138 {offsets = [0, 96], sizes = [128, 32], strides = [1, 1]} : vector<128x128xf32> to vector<128x32xf32>
    %143 = arith.mulf %140, %121 : vector<128x32xf32>
    %144 = arith.mulf %139, %141 : vector<128x32xf32>
    %145 = arith.addf %143, %144 : vector<128x32xf32>
    %146 = math.tanh %145 : vector<128x32xf32>
    %147 = arith.mulf %142, %146 : vector<128x32xf32>
    %148 = arith.truncf %147 : vector<128x32xf32> to vector<128x32xbf16>
    %cst_26 = arith.constant dense<0.000000e+00> : vector<128x256xf32>
    %149 = tpu.matmul %148, %4, %cst_26 {dimension_numbers = #tpu.dot_dimension_numbers<[1], [0], [0], [1], [0, 0, 1, 1], [], []>} : vector<128x32xbf16>, vector<32x256xbf16>, vector<128x256xf32> -> vector<128x256xf32>
    %150 = vector.extract_strided_slice %6 {offsets = [0, 6], sizes = [128, 1], strides = [1, 1]} : vector<128x8xf32> to vector<128x1xf32>
    %151 = vector.broadcast %150 : vector<128x1xf32> to vector<128x128xf32>
    %152 = vector.broadcast %0 : vector<1x128xf32> to vector<128x128xf32>
    %153 = arith.mulf %151, %152 : vector<128x128xf32>
    %154 = vector.broadcast %1 : vector<1x128xf32> to vector<128x128xf32>
    %155 = arith.addf %153, %154 : vector<128x128xf32>
    %156 = vector.extract_strided_slice %149 {offsets = [0, 0], sizes = [128, 128], strides = [1, 1]} : vector<128x256xf32> to vector<128x128xf32>
    %157 = arith.addf %155, %156 : vector<128x128xf32>
    %158 = math.tanh %157 : vector<128x128xf32>
    %cst_27 = arith.constant 5.000000e-01 : f32
    %159 = vector.broadcast %cst_27 : f32 to vector<128x128xf32>
    %160 = arith.mulf %158, %159 : vector<128x128xf32>
    %cst_28 = arith.constant 5.000000e-01 : f32
    %161 = vector.broadcast %cst_28 : f32 to vector<128x128xf32>
    %162 = arith.addf %160, %161 : vector<128x128xf32>
    %163 = vector.extract_strided_slice %162 {offsets = [0, 0], sizes = [128, 32], strides = [1, 1]} : vector<128x128xf32> to vector<128x32xf32>
    %164 = vector.extract_strided_slice %162 {offsets = [0, 32], sizes = [128, 32], strides = [1, 1]} : vector<128x128xf32> to vector<128x32xf32>
    %165 = vector.extract_strided_slice %158 {offsets = [0, 64], sizes = [128, 32], strides = [1, 1]} : vector<128x128xf32> to vector<128x32xf32>
    %166 = vector.extract_strided_slice %162 {offsets = [0, 96], sizes = [128, 32], strides = [1, 1]} : vector<128x128xf32> to vector<128x32xf32>
    %167 = arith.mulf %164, %145 : vector<128x32xf32>
    %168 = arith.mulf %163, %165 : vector<128x32xf32>
    %169 = arith.addf %167, %168 : vector<128x32xf32>
    %170 = math.tanh %169 : vector<128x32xf32>
    %171 = arith.mulf %166, %170 : vector<128x32xf32>
    %172 = arith.truncf %171 : vector<128x32xf32> to vector<128x32xbf16>
    %cst_29 = arith.constant dense<0.000000e+00> : vector<128x256xf32>
    %173 = tpu.matmul %172, %4, %cst_29 {dimension_numbers = #tpu.dot_dimension_numbers<[1], [0], [0], [1], [0, 0, 1, 1], [], []>} : vector<128x32xbf16>, vector<32x256xbf16>, vector<128x256xf32> -> vector<128x256xf32>
    %174 = vector.extract_strided_slice %6 {offsets = [0, 7], sizes = [128, 1], strides = [1, 1]} : vector<128x8xf32> to vector<128x1xf32>
    %175 = vector.broadcast %174 : vector<128x1xf32> to vector<128x128xf32>
    %176 = vector.broadcast %0 : vector<1x128xf32> to vector<128x128xf32>
    %177 = arith.mulf %175, %176 : vector<128x128xf32>
    %178 = vector.broadcast %1 : vector<1x128xf32> to vector<128x128xf32>
    %179 = arith.addf %177, %178 : vector<128x128xf32>
    %180 = vector.extract_strided_slice %173 {offsets = [0, 0], sizes = [128, 128], strides = [1, 1]} : vector<128x256xf32> to vector<128x128xf32>
    %181 = arith.addf %179, %180 : vector<128x128xf32>
    %182 = math.tanh %181 : vector<128x128xf32>
    %cst_30 = arith.constant 5.000000e-01 : f32
    %183 = vector.broadcast %cst_30 : f32 to vector<128x128xf32>
    %184 = arith.mulf %182, %183 : vector<128x128xf32>
    %cst_31 = arith.constant 5.000000e-01 : f32
    %185 = vector.broadcast %cst_31 : f32 to vector<128x128xf32>
    %186 = arith.addf %184, %185 : vector<128x128xf32>
    %187 = vector.extract_strided_slice %186 {offsets = [0, 0], sizes = [128, 32], strides = [1, 1]} : vector<128x128xf32> to vector<128x32xf32>
    %188 = vector.extract_strided_slice %186 {offsets = [0, 32], sizes = [128, 32], strides = [1, 1]} : vector<128x128xf32> to vector<128x32xf32>
    %189 = vector.extract_strided_slice %182 {offsets = [0, 64], sizes = [128, 32], strides = [1, 1]} : vector<128x128xf32> to vector<128x32xf32>
    %190 = vector.extract_strided_slice %186 {offsets = [0, 96], sizes = [128, 32], strides = [1, 1]} : vector<128x128xf32> to vector<128x32xf32>
    %191 = arith.mulf %188, %169 : vector<128x32xf32>
    %192 = arith.mulf %187, %189 : vector<128x32xf32>
    %193 = arith.addf %191, %192 : vector<128x32xf32>
    %194 = math.tanh %193 : vector<128x32xf32>
    %195 = arith.mulf %190, %194 : vector<128x32xf32>
    %196 = arith.truncf %195 : vector<128x32xf32> to vector<128x32xbf16>
    %cst_32 = arith.constant dense<0.000000e+00> : vector<128x256xf32>
    %197 = tpu.matmul %196, %4, %cst_32 {dimension_numbers = #tpu.dot_dimension_numbers<[1], [0], [0], [1], [0, 0, 1, 1], [], []>} : vector<128x32xbf16>, vector<32x256xbf16>, vector<128x256xf32> -> vector<128x256xf32>
    %198 = vector.extract_strided_slice %197 {offsets = [0, 128], sizes = [128, 128], strides = [1, 1]} : vector<128x256xf32> to vector<128x128xf32>
    %199 = vector.broadcast %2 : vector<1x128xf32> to vector<128x128xf32>
    %200 = arith.addf %198, %199 : vector<128x128xf32>
    %201 = vector.extract_strided_slice %200 {offsets = [0, 32], sizes = [128, 1], strides = [1, 1]} : vector<128x128xf32> to vector<128x1xf32>
    %202 = vector.extract_strided_slice %200 {offsets = [0, 0], sizes = [128, 32], strides = [1, 1]} : vector<128x128xf32> to vector<128x32xf32>
    %203 = math.tanh %202 : vector<128x32xf32>
    %204 = arith.truncf %203 : vector<128x32xf32> to vector<128x32xbf16>
    %cst_33 = arith.constant dense<0.000000e+00> : vector<128x128xf32>
    %205 = tpu.matmul %204, %5, %cst_33 {dimension_numbers = #tpu.dot_dimension_numbers<[1], [0], [0], [1], [0, 0, 1, 1], [], []>} : vector<128x32xbf16>, vector<32x128xbf16>, vector<128x128xf32> -> vector<128x128xf32>
    %206 = vector.broadcast %3 : vector<1x128xf32> to vector<128x128xf32>
    %207 = arith.addf %205, %206 : vector<128x128xf32>
    %c0_34 = arith.constant 0 : index
    %c0_35 = arith.constant 0 : index
    %208 = vector.load %arg4[%c0_34, %c0_35] : memref<128x128xf32, #tpu.memory_space<vmem>>, vector<128x128xf32>
    tpu.vector_store %arg4[%c0_34, %c0_35], %207 {strides = array<i32>} : memref<128x128xf32, #tpu.memory_space<vmem>>, vector<128x128xf32>,
    %c0_36 = arith.constant 0 : index
    %c9 = arith.constant 9 : index
    %209 = vector.load %arg4[%c0_36, %c9] : memref<128x128xf32, #tpu.memory_space<vmem>>, vector<128x1xf32>
    tpu.vector_store %arg4[%c0_36, %c9], %201 {strides = array<i32>} : memref<128x128xf32, #tpu.memory_space<vmem>>, vector<128x1xf32>,
    return
  }
  func.func @transform_0(%arg0: i32) -> (i32, i32) {
    %c0_i32 = arith.constant 0 : i32
    %c0_i32_0 = arith.constant 0 : i32
    return %arg0, %c0_i32 : i32, i32
  }
  func.func @transform_1(%arg0: i32) -> (i32, i32) {
    %c0_i32 = arith.constant 0 : i32
    %c0_i32_0 = arith.constant 0 : i32
    %c0_i32_1 = arith.constant 0 : i32
    return %c0_i32, %c0_i32_0 : i32, i32
  }
  func.func @transform_2(%arg0: i32) -> (i32, i32) {
    %c0_i32 = arith.constant 0 : i32
    %c0_i32_0 = arith.constant 0 : i32
    %c0_i32_1 = arith.constant 0 : i32
    return %c0_i32, %c0_i32_0 : i32, i32
  }
  func.func @transform_3(%arg0: i32) -> (i32, i32) {
    %c0_i32 = arith.constant 0 : i32
    %c0_i32_0 = arith.constant 0 : i32
    return %arg0, %c0_i32 : i32, i32
  }
}

</mosaic_0001>

<llo_original>
// kernel: rmtpp_forward.1
$region0: #{rmtpp_forward.1}
  #allocation0 [shape = 'u32[]', space=smem, size = 0x4, offset = 0x4, fixed_abs, tag = 'smem constant byte address 0x4 - core index']
  #allocation1 [shape = 'u32[144,128]{1,0:T(1,128)}', space=vmem, size = 0x12000, scoped, tag = 'internal scratch']
  %s0 = inlined_call_operand.vmem [shape: f32[256,8], index: 0, kind: input, shape index: {}]
  %s1 = inlined_call_operand.vmem [shape: bf16[64,256], index: 1, kind: input, shape index: {}]
  %s2 = inlined_call_operand.vmem [shape: f32[8,128], index: 2, kind: input, shape index: {}]
  %s3 = inlined_call_operand.vmem [shape: f32[256,128], index: 3, kind: output, shape index: {}]
  %s4 = sld [smem:[#allocation0]]
  $region45: #{rmtpp_forward.1} parent=0
    _
  %s6 = ssub.s32 1, %s4
  %s7 = scalar_select 0, %s6, %s4
  loop: start=0, step=1, limit=4
  $region2: #{rmtpp_forward.1} parent=0 // loop_pre_header
    _
  $region3: #{rmtpp_forward.1} parent=0 // loop_header
    %s9 = sphi 0, %s13
    %p10 = scmp.ge.s32.totalorder %s9, 4
    %s19 = sphi 0, %s21
    %s22 = sphi 0, %s19
    %s23 = sphi 0, %s22
    %s39 = sphi 0, %s23
    %s43 = sphi 0, %s43
    %s45 = sphi 0, %s43
    %s46 = sphi 0, %s45
    %s60 = sphi 0, %s46
    %s64 = sphi 0, %s64
    %s66 = sphi 0, %s64
    %s67 = sphi 0, %s66
    %s81 = sphi 0, %s67
    %s87 = sphi 0, %s89
    %s90 = sphi 0, %s87
    %s91 = sphi 0, %s90
    %s107 = sphi 0, %s91
  $region4: #{rmtpp_forward.1} parent=0 // loop_header_branch
    %12 = sbr.rel (%p10) target = $region8
  $region5: #{rmtpp_forward.1} parent=0 // loop_body
    %s14 = ssub.s32 %s9, 1
    %s15 = ssub.s32 %s9, 2
    %s16 = sadd.s32 %s9, 1
    %s17 = ssub.s32 %s9, %s16
    %p18 = scmp.eq.s32.totalorder %s17, 0
    %s20 = sadd.s32 %s19, 1
    %s21 = scalar_select %p18, %s19, %s20
    %p24 = pneg %p18
    %p25 = scmp.eq.s32.totalorder %s9, 1
    %p26 = por %p24, %p25
    %p27 = scmp.ne.s32.totalorder %s19, %s22
    %p28 = scmp.eq.s32.totalorder %s9, 0
    %p29 = por %p27, %p28
    %p30 = scmp.ne.s32.totalorder %s19, %s22
    %p31 = scmp.eq.s32.totalorder %s14, 1
    %p32 = por %p30, %p31
    %p33 = scmp.ne.s32.totalorder %s22, %s23
    %p34 = scmp.eq.s32.totalorder %s14, 0
    %p35 = por %p33, %p34
    %p36 = scmp.ne.s32.totalorder %s22, %s23
    %p37 = scmp.eq.s32.totalorder %s15, 1
    %p38 = por %p36, %p37
    %p40 = scmp.ne.s32.totalorder %s23, %s39
    %p41 = scmp.eq.s32.totalorder %s15, 0
    %p42 = por %p40, %p41
    %s44 = sadd.s32 %s43, 1
    %p47 = scmp.eq.s32.totalorder %s9, 1
    %p48 = scmp.ne.s32.totalorder %s43, %s45
    %p49 = scmp.eq.s32.totalorder %s9, 0
    %p50 = por %p48, %p49
    %p51 = scmp.ne.s32.totalorder %s43, %s45
    %p52 = scmp.eq.s32.totalorder %s14, 1
    %p53 = por %p51, %p52
    %p54 = scmp.ne.s32.totalorder %s45, %s46
    %p55 = scmp.eq.s32.totalorder %s14, 0
    %p56 = por %p54, %p55
    %p57 = scmp.ne.s32.totalorder %s45, %s46
    %p58 = scmp.eq.s32.totalorder %s15, 1
    %p59 = por %p57, %p58
    %p61 = scmp.ne.s32.totalorder %s46, %s60
    %p62 = scmp.eq.s32.totalorder %s15, 0
    %p63 = por %p61, %p62
    %s65 = sadd.s32 %s64, 1
    %p68 = scmp.eq.s32.totalorder %s9, 1
    %p69 = scmp.ne.s32.totalorder %s64, %s66
    %p70 = scmp.eq.s32.totalorder %s9, 0
    %p71 = por %p69, %p70
    %p72 = scmp.ne.s32.totalorder %s64, %s66
    %p73 = scmp.eq.s32.totalorder %s14, 1
    %p74 = por %p72, %p73
    %p75 = scmp.ne.s32.totalorder %s66, %s67
    %p76 = scmp.eq.s32.totalorder %s14, 0
    %p77 = por %p75, %p76
    %p78 = scmp.ne.s32.totalorder %s66, %s67
    %p79 = scmp.eq.s32.totalorder %s15, 1
    %p80 = por %p78, %p79
    %p82 = scmp.ne.s32.totalorder %s67, %s81
    %p83 = scmp.eq.s32.totalorder %s15, 0
    %p84 = por %p82, %p83
    %s85 = ssub.s32 %s9, %s16
    %p86 = scmp.eq.s32.totalorder %s85, 0
    %s88 = sadd.s32 %s87, 1
    %s89 = scalar_select %p86, %s87, %s88
    %p92 = pneg %p86
    %p93 = scmp.eq.s32.totalorder %s9, 1
    %p94 = por %p92, %p93
    %p95 = scmp.ne.s32.totalorder %s87, %s90
    %p96 = scmp.eq.s32.totalorder %s9, 0
    %p97 = por %p95, %p96
    %p98 = scmp.ne.s32.totalorder %s87, %s90
    %p99 = scmp.eq.s32.totalorder %s14, 1
    %p100 = por %p98, %p99
    %p101 = scmp.ne.s32.totalorder %s90, %s91
    %p102 = scmp.eq.s32.totalorder %s14, 0
    %p103 = por %p101, %p102
    %p104 = scmp.ne.s32.totalorder %s90, %s91
    %p105 = scmp.eq.s32.totalorder %s15, 1
    %p106 = por %p104, %p105
    %p108 = scmp.ne.s32.totalorder %s91, %s107
    %p109 = scmp.eq.s32.totalorder %s15, 0
    %p110 = por %p108, %p109
    %p111 = scmp.le.s32.totalorder 1, %s9
    %p112 = scmp.lt.s32.totalorder %s9, 3
    %p113 = pnand %p111, %p112
    %p114 = pneg %p113
    // Predicated region
    $region9: #{rmtpp_forward.1} parent=5 // pred_check
      _
    $region10: #{rmtpp_forward.1} parent=5 // pred_check_branch
      %116 = sbr.rel (%p113) target = $region12
    $region11: #{rmtpp_forward.1} parent=5 // pred_region
      %s117 = ssub.s32 %s9, 1
      // Predicated region
      $region13: #{rmtpp_forward.1} parent=11 // pred_check
        %p118 = pneg %p56
      $region14: #{rmtpp_forward.1} parent=11 // pred_check_branch
        %120 = sbr.rel (%p118) target = $region16
      $region15: #{rmtpp_forward.1} parent=11 // pred_region
        _
      $region16: #{rmtpp_forward.1} parent=11 // pred_fallthru
        _
      // Predicated region
      $region17: #{rmtpp_forward.1} parent=11 // pred_check
        %p121 = pneg %p77
      $region18: #{rmtpp_forward.1} parent=11 // pred_check_branch
        %123 = sbr.rel (%p121) target = $region20
      $region19: #{rmtpp_forward.1} parent=11 // pred_region
        _
      $region20: #{rmtpp_forward.1} parent=11 // pred_fallthru
        _
    $region12: #{rmtpp_forward.1} parent=5 // pred_fallthru
      _
    %p124 = scmp.lt.s32.totalorder %s9, 2
    // Predicated region
    $region21: #{rmtpp_forward.1} parent=5 // pred_check
      %p125 = pneg %p124
    $region22: #{rmtpp_forward.1} parent=5 // pred_check_branch
      %127 = sbr.rel (%p125) target = $region24
    $region23: #{rmtpp_forward.1} parent=5 // pred_region
      // Predicated region
      $region25: #{rmtpp_forward.1} parent=23 // pred_check
        %p128 = pneg %p29
      $region26: #{rmtpp_forward.1} parent=23 // pred_check_branch
        %130 = sbr.rel (%p128) target = $region28
      $region27: #{rmtpp_forward.1} parent=23 // pred_region
        %s131 = smul.u32 16, %s9
        %p132 = scmp.lt.s32.totalorder %s131, 31
        %s133 = scalar_select %p132, %s131, 31
        %s134 = smul.addr %s133, 8
        %s135 = scalar_lea.vmem %s0, %s134
        %s136 = smul.u32 16, %s9
      $region28: #{rmtpp_forward.1} parent=23 // pred_fallthru
        _
    $region24: #{rmtpp_forward.1} parent=5 // pred_fallthru
      _
    %p137 = scmp.le.s32.totalorder 1, %s9
    %p138 = scmp.lt.s32.totalorder %s9, 3
    %p139 = pnand %p137, %p138
    %p140 = pneg %p139
    // Predicated region
    $region29: #{rmtpp_forward.1} parent=5 // pred_check
      _
    $region30: #{rmtpp_forward.1} parent=5 // pred_check_branch
      %142 = sbr.rel (%p139) target = $region32
    $region31: #{rmtpp_forward.1} parent=5 // pred_region
      %s143 = ssub.s32 %s9, 1
      %s144 = smul.u32 16, %s14
      %p145 = scmp.lt.s32.totalorder %s144, 31
      %s146 = scalar_select %p145, %s144, 31
      %s147 = smul.addr %s146, 8
      %s148 = scalar_lea.vmem %s0, %s147
      %p149 = pneg %p35
      %p150 = pneg %p32
      %p151 = pneg %p56
      %p152 = pneg %p53
      %p153 = pneg %p77
      %p154 = pneg %p74
      %p155 = pneg %p103
      %p156 = pneg %p100
      %s157 = smul.u32 16, %s14
      %p158 = scmp.lt.s32.totalorder %s157, 31
      %s159 = scalar_select %p158, %s157, 31
      %s160 = smul.addr %s159, 8
      %s161 = scalar_lea.vmem %s3, %s160
      %s162 = smul.u32 16, %s14
      %p163 = scmp.lt.s32.totalorder %s162, 31
      %s164 = scalar_select %p163, %s162, 31
      %s165 = smul.addr %s164, 8
      %s166 = scalar_lea.vmem %s0, %s165
      %s167 = smul.u32 16, %s14
      %s168 = smul.u32 16, %s14
      %p169 = scmp.lt.s32.totalorder %s168, 31
      %s170 = scalar_select %p169, %s168, 31
      %s171 = smul.addr %s170, 8
      %s172 = scalar_lea.vmem %s3, %s171
      %s173 = smul.u32 16, %s14
      %v175 = vld [vmem:[%s2] sm:$0x1]
      %v176 = vld [vmem:[%s2 + $0x1] sm:$0x1]
      %v177 = vld [vmem:[%s2 + $0x2] sm:$0x1]
      %v178 = vld [vmem:[%s2 + $0x3] sm:$0x1]
      %v179 = vld [vmem:[%s1] sm:$0xff]
      %v180 = vld [vmem:[%s1 + $0x8] sm:$0xff]
      %v181 = vld [vmem:[%s1 + $0x10] sm:$0xff]
      %v182 = vld [vmem:[%s1 + $0x18] sm:$0xff]
      %v183 = vld [vmem:[%s1 + $0x20] sm:$0xf]
      %v184 = vld [vmem:[%s1 + $0x28] sm:$0xf]
      %v185 = vld [vmem:[%s1 + $0x30] sm:$0xf]
      %v186 = vld [vmem:[%s1 + $0x38] sm:$0xf]
      %v187 = vld [vmem:[%s166] sm:$0xff]
      %v188 = vld [vmem:[%s166 + $0x8] sm:$0xff]
      %v189 = vld [vmem:[%s166 + $0x10] sm:$0xff]
      %v190 = vld [vmem:[%s166 + $0x18] sm:$0xff]
      %v191 = vld [vmem:[%s166 + $0x20] sm:$0xff]
      %v192 = vld [vmem:[%s166 + $0x28] sm:$0xff]
      %v193 = vld [vmem:[%s166 + $0x30] sm:$0xff]
      %v194 = vld [vmem:[%s166 + $0x38] sm:$0xff]
      %v195 = vld [vmem:[%s166 + $0x40] sm:$0xff]
      %v196 = vld [vmem:[%s166 + $0x48] sm:$0xff]
      %v197 = vld [vmem:[%s166 + $0x50] sm:$0xff]
      %v198 = vld [vmem:[%s166 + $0x58] sm:$0xff]
      %v199 = vld [vmem:[%s166 + $0x60] sm:$0xff]
      %v200 = vld [vmem:[%s166 + $0x68] sm:$0xff]
      %v201 = vld [vmem:[%s166 + $0x70] sm:$0xff]
      %v202 = vld [vmem:[%s166 + $0x78] sm:$0xff]
      %204 = vset.pattern.permute.xlu0 0
      %205 = vperm.xlu0 %204, %v187
      %v206 = vpop.permute.xlu0 %205
      %209 = vset.pattern.permute.xlu0 0
      %210 = vperm.xlu0 %209, %v188
      %v211 = vpop.permute.xlu0 %210
      %214 = vset.pattern.permute.xlu0 0
      %215 = vperm.xlu0 %214, %v189
      %v216 = vpop.permute.xlu0 %215
      %219 = vset.pattern.permute.xlu0 0
      %220 = vperm.xlu0 %219, %v190
      %v221 = vpop.permute.xlu0 %220
      %224 = vset.pattern.permute.xlu0 0
      %225 = vperm.xlu0 %224, %v191
      %v226 = vpop.permute.xlu0 %225
      %229 = vset.pattern.permute.xlu0 0
      %230 = vperm.xlu0 %229, %v192
      %v231 = vpop.permute.xlu0 %230
      %234 = vset.pattern.permute.xlu0 0
      %235 = vperm.xlu0 %234, %v193
      %v236 = vpop.permute.xlu0 %235
      %239 = vset.pattern.permute.xlu0 0
      %240 = vperm.xlu0 %239, %v194
      %v241 = vpop.permute.xlu0 %240
      %244 = vset.pattern.permute.xlu0 0
      %245 = vperm.xlu0 %244, %v195
      %v246 = vpop.permute.xlu0 %245
      %249 = vset.pattern.permute.xlu0 0
      %250 = vperm.xlu0 %249, %v196
      %v251 = vpop.permute.xlu0 %250
      %254 = vset.pattern.permute.xlu0 0
      %255 = vperm.xlu0 %254, %v197
      %v256 = vpop.permute.xlu0 %255
      %259 = vset.pattern.permute.xlu0 0
      %260 = vperm.xlu0 %259, %v198
      %v261 = vpop.permute.xlu0 %260
      %264 = vset.pattern.permute.xlu0 0
      %265 = vperm.xlu0 %264, %v199
      %v266 = vpop.permute.xlu0 %265
      %269 = vset.pattern.permute.xlu0 0
      %270 = vperm.xlu0 %269, %v200
      %v271 = vpop.permute.xlu0 %270
      %274 = vset.pattern.permute.xlu0 0
      %275 = vperm.xlu0 %274, %v201
      %v276 = vpop.permute.xlu0 %275
      %279 = vset.pattern.permute.xlu0 0
      %280 = vperm.xlu0 %279, %v202
      %v281 = vpop.permute.xlu0 %280
      %v283 = vlaneseq
      %v284 = vshrl.u32 %v283, 7
      %v285 = vsub.s32 0, %v284
      %v286 = vrot.slane %v175, %v285
      %v287 = vmul.f32 %v206, %v286
      %v288 = vmul.f32 %v211, %v286
      %v289 = vmul.f32 %v216, %v286
      %v290 = vmul.f32 %v221, %v286
      %v291 = vmul.f32 %v226, %v286
      %v292 = vmul.f32 %v231, %v286
      %v293 = vmul.f32 %v236, %v286
      %v294 = vmul.f32 %v241, %v286
      %v295 = vmul.f32 %v246, %v286
      %v296 = vmul.f32 %v251, %v286
      %v297 = vmul.f32 %v256, %v286
      %v298 = vmul.f32 %v261, %v286
      %v299 = vmul.f32 %v266, %v286
      %v300 = vmul.f32 %v271, %v286
      %v301 = vmul.f32 %v276, %v286
      %v302 = vmul.f32 %v281, %v286
      %v303 = vlaneseq
      %v304 = vshrl.u32 %v303, 7
      %v305 = vsub.s32 0, %v304
      %v306 = vrot.slane %v176, %v305
      %v307 = vadd.f32 %v287, %v306
      %v308 = vadd.f32 %v288, %v306
      %v309 = vadd.f32 %v289, %v306
      %v310 = vadd.f32 %v290, %v306
      %v311 = vadd.f32 %v291, %v306
      %v312 = vadd.f32 %v292, %v306
      %v313 = vadd.f32 %v293, %v306
      %v314 = vadd.f32 %v294, %v306
      %v315 = vadd.f32 %v295, %v306
      %v316 = vadd.f32 %v296, %v306
      %v317 = vadd.f32 %v297, %v306
      %v318 = vadd.f32 %v298, %v306
      %v319 = vadd.f32 %v299, %v306
      %v320 = vadd.f32 %v300, %v306
      %v321 = vadd.f32 %v301, %v306
      %v322 = vadd.f32 %v302, %v306
      %v323 = vtanh.pop %v307
      %v324 = vtanh.pop %v308
      %v325 = vtanh.pop %v309
      %v326 = vtanh.pop %v310
      %v327 = vtanh.pop %v311
      %v328 = vtanh.pop %v312
      %v329 = vtanh.pop %v313
      %v330 = vtanh.pop %v314
      %v331 = vtanh.pop %v315
      %v332 = vtanh.pop %v316
      %v333 = vtanh.pop %v317
      %v334 = vtanh.pop %v318
      %v335 = vtanh.pop %v319
      %v336 = vtanh.pop %v320
      %v337 = vtanh.pop %v321
      %v338 = vtanh.pop %v322
      %v339 = vmul.f32 %v323, 0.5
      %v340 = vmul.f32 %v324, 0.5
      %v341 = vmul.f32 %v325, 0.5
      %v342 = vmul.f32 %v326, 0.5
      %v343 = vmul.f32 %v327, 0.5
      %v344 = vmul.f32 %v328, 0.5
      %v345 = vmul.f32 %v329, 0.5
      %v346 = vmul.f32 %v330, 0.5
      %v347 = vmul.f32 %v331, 0.5
      %v348 = vmul.f32 %v332, 0.5
      %v349 = vmul.f32 %v333, 0.5
      %v350 = vmul.f32 %v334, 0.5
      %v351 = vmul.f32 %v335, 0.5
      %v352 = vmul.f32 %v336, 0.5
      %v353 = vmul.f32 %v337, 0.5
      %v354 = vmul.f32 %v338, 0.5
      %v355 = vadd.f32 %v339, 0.5
      %v356 = vadd.f32 %v340, 0.5
      %v357 = vadd.f32 %v341, 0.5
      %v358 = vadd.f32 %v342, 0.5
      %v359 = vadd.f32 %v343, 0.5
      %v360 = vadd.f32 %v344, 0.5
      %v361 = vadd.f32 %v345, 0.5
      %v362 = vadd.f32 %v346, 0.5
      %v363 = vadd.f32 %v347, 0.5
      %v364 = vadd.f32 %v348, 0.5
      %v365 = vadd.f32 %v349, 0.5
      %v366 = vadd.f32 %v350, 0.5
      %v367 = vadd.f32 %v351, 0.5
      %v368 = vadd.f32 %v352, 0.5
      %v369 = vadd.f32 %v353, 0.5
      %v370 = vadd.f32 %v354, 0.5
      %v371 = vmul.f32 %v355, 0.0
      %v372 = vmul.f32 %v356, 0.0
      %v373 = vmul.f32 %v357, 0.0
      %v374 = vmul.f32 %v358, 0.0
      %v375 = vmul.f32 %v359, 0.0
      %v376 = vmul.f32 %v360, 0.0
      %v377 = vmul.f32 %v361, 0.0
      %v378 = vmul.f32 %v362, 0.0
      %v379 = vmul.f32 %v363, 0.0
      %v380 = vmul.f32 %v364, 0.0
      %v381 = vmul.f32 %v365, 0.0
      %v382 = vmul.f32 %v366, 0.0
      %v383 = vmul.f32 %v367, 0.0
      %v384 = vmul.f32 %v368, 0.0
      %v385 = vmul.f32 %v369, 0.0
      %v386 = vmul.f32 %v370, 0.0
      %403 = vrot.lane.b32.xlu0 %v323, 64
      %v404 = vpop.permute.xlu0 %403
      %405 = vrot.lane.b32.xlu0 %v324, 64
      %v406 = vpop.permute.xlu0 %405
      %407 = vrot.lane.b32.xlu0 %v325, 64
      %v408 = vpop.permute.xlu0 %407
      %409 = vrot.lane.b32.xlu0 %v326, 64
      %v410 = vpop.permute.xlu0 %409
      %411 = vrot.lane.b32.xlu0 %v327, 64
      %v412 = vpop.permute.xlu0 %411
      %413 = vrot.lane.b32.xlu0 %v328, 64
      %v414 = vpop.permute.xlu0 %413
      %415 = vrot.lane.b32.xlu0 %v329, 64
      %v416 = vpop.permute.xlu0 %415
      %417 = vrot.lane.b32.xlu0 %v330, 64
      %v418 = vpop.permute.xlu0 %417
      %419 = vrot.lane.b32.xlu0 %v331, 64
      %v420 = vpop.permute.xlu0 %419
      %421 = vrot.lane.b32.xlu0 %v332, 64
      %v422 = vpop.permute.xlu0 %421
      %423 = vrot.lane.b32.xlu0 %v333, 64
      %v424 = vpop.permute.xlu0 %423
      %425 = vrot.lane.b32.xlu0 %v334, 64
      %v426 = vpop.permute.xlu0 %425
      %427 = vrot.lane.b32.xlu0 %v335, 64
      %v428 = vpop.permute.xlu0 %427
      %429 = vrot.lane.b32.xlu0 %v336, 64
      %v430 = vpop.permute.xlu0 %429
      %431 = vrot.lane.b32.xlu0 %v337, 64
      %v432 = vpop.permute.xlu0 %431
      %433 = vrot.lane.b32.xlu0 %v338, 64
      %v434 = vpop.permute.xlu0 %433
      %v451 = vmul.f32 %v355, %v404
      %v452 = vmul.f32 %v356, %v406
      %v453 = vmul.f32 %v357, %v408
      %v454 = vmul.f32 %v358, %v410
      %v455 = vmul.f32 %v359, %v412
      %v456 = vmul.f32 %v360, %v414
      %v457 = vmul.f32 %v361, %v416
      %v458 = vmul.f32 %v362, %v418
      %v459 = vmul.f32 %v363, %v420
      %v460 = vmul.f32 %v364, %v422
      %v461 = vmul.f32 %v365, %v424
      %v462 = vmul.f32 %v366, %v426
      %v463 = vmul.f32 %v367, %v428
      %v464 = vmul.f32 %v368, %v430
      %v465 = vmul.f32 %v369, %v432
      %v466 = vmul.f32 %v370, %v434
      %483 = vrot.lane.b32.xlu0 %v451, 32
      %v484 = vpop.permute.xlu0 %483
      %485 = vrot.lane.b32.xlu0 %v452, 32
      %v486 = vpop.permute.xlu0 %485
      %487 = vrot.lane.b32.xlu0 %v453, 32
      %v488 = vpop.permute.xlu0 %487
      %489 = vrot.lane.b32.xlu0 %v454, 32
      %v490 = vpop.permute.xlu0 %489
      %491 = vrot.lane.b32.xlu0 %v455, 32
      %v492 = vpop.permute.xlu0 %491
      %493 = vrot.lane.b32.xlu0 %v456, 32
      %v494 = vpop.permute.xlu0 %493
      %495 = vrot.lane.b32.xlu0 %v457, 32
      %v496 = vpop.permute.xlu0 %495
      %497 = vrot.lane.b32.xlu0 %v458, 32
      %v498 = vpop.permute.xlu0 %497
      %499 = vrot.lane.b32.xlu0 %v459, 32
      %v500 = vpop.permute.xlu0 %499
      %501 = vrot.lane.b32.xlu0 %v460, 32
      %v502 = vpop.permute.xlu0 %501
      %503 = vrot.lane.b32.xlu0 %v461, 32
      %v504 = vpop.permute.xlu0 %503
      %505 = vrot.lane.b32.xlu0 %v462, 32
      %v506 = vpop.permute.xlu0 %505
      %507 = vrot.lane.b32.xlu0 %v463, 32
      %v508 = vpop.permute.xlu0 %507
      %509 = vrot.lane.b32.xlu0 %v464, 32
      %v510 = vpop.permute.xlu0 %509
      %511 = vrot.lane.b32.xlu0 %v465, 32
      %v512 = vpop.permute.xlu0 %511
      %513 = vrot.lane.b32.xlu0 %v466, 32
      %v514 = vpop.permute.xlu0 %513
      %v531 = vadd.f32 %v371, %v484
      %v532 = vadd.f32 %v372, %v486
      %v533 = vadd.f32 %v373, %v488
      %v534 = vadd.f32 %v374, %v490
      %v535 = vadd.f32 %v375, %v492
      %v536 = vadd.f32 %v376, %v494
      %v537 = vadd.f32 %v377, %v496
      %v538 = vadd.f32 %v378, %v498
      %v539 = vadd.f32 %v379, %v500
      %v540 = vadd.f32 %v380, %v502
      %v541 = vadd.f32 %v381, %v504
      %v542 = vadd.f32 %v382, %v506
      %v543 = vadd.f32 %v383, %v508
      %v544 = vadd.f32 %v384, %v510
      %v545 = vadd.f32 %v385, %v512
      %v546 = vadd.f32 %v386, %v514
      %v547 = vtanh.pop %v531
      %v548 = vtanh.pop %v532
      %v549 = vtanh.pop %v533
      %v550 = vtanh.pop %v534
      %v551 = vtanh.pop %v535
      %v552 = vtanh.pop %v536
      %v553 = vtanh.pop %v537
      %v554 = vtanh.pop %v538
      %v555 = vtanh.pop %v539
      %v556 = vtanh.pop %v540
      %v557 = vtanh.pop %v541
      %v558 = vtanh.pop %v542
      %v559 = vtanh.pop %v543
      %v560 = vtanh.pop %v544
      %v561 = vtanh.pop %v545
      %v562 = vtanh.pop %v546
      %579 = vrot.lane.b32.xlu0 %v547, 64
      %v580 = vpop.permute.xlu0 %579
      %581 = vrot.lane.b32.xlu0 %v548, 64
      %v582 = vpop.permute.xlu0 %581
      %583 = vrot.lane.b32.xlu0 %v549, 64
      %v584 = vpop.permute.xlu0 %583
      %585 = vrot.lane.b32.xlu0 %v550, 64
      %v586 = vpop.permute.xlu0 %585
      %587 = vrot.lane.b32.xlu0 %v551, 64
      %v588 = vpop.permute.xlu0 %587
      %589 = vrot.lane.b32.xlu0 %v552, 64
      %v590 = vpop.permute.xlu0 %589
      %591 = vrot.lane.b32.xlu0 %v553, 64
      %v592 = vpop.permute.xlu0 %591
      %593 = vrot.lane.b32.xlu0 %v554, 64
      %v594 = vpop.permute.xlu0 %593
      %595 = vrot.lane.b32.xlu0 %v555, 64
      %v596 = vpop.permute.xlu0 %595
      %597 = vrot.lane.b32.xlu0 %v556, 64
      %v598 = vpop.permute.xlu0 %597
      %599 = vrot.lane.b32.xlu0 %v557, 64
      %v600 = vpop.permute.xlu0 %599
      %601 = vrot.lane.b32.xlu0 %v558, 64
      %v602 = vpop.permute.xlu0 %601
      %603 = vrot.lane.b32.xlu0 %v559, 64
      %v604 = vpop.permute.xlu0 %603
      %605 = vrot.lane.b32.xlu0 %v560, 64
      %v606 = vpop.permute.xlu0 %605
      %607 = vrot.lane.b32.xlu0 %v561, 64
      %v608 = vpop.permute.xlu0 %607
      %609 = vrot.lane.b32.xlu0 %v562, 64
      %v610 = vpop.permute.xlu0 %609
      %v627 = vmul.f32 %v355, %v580
      %v628 = vmul.f32 %v356, %v582
      %v629 = vmul.f32 %v357, %v584
      %v630 = vmul.f32 %v358, %v586
      %v631 = vmul.f32 %v359, %v588
      %v632 = vmul.f32 %v360, %v590
      %v633 = vmul.f32 %v361, %v592
      %v634 = vmul.f32 %v362, %v594
      %v635 = vmul.f32 %v363, %v596
      %v636 = vmul.f32 %v364, %v598
      %v637 = vmul.f32 %v365, %v600
      %v638 = vmul.f32 %v366, %v602
      %v639 = vmul.f32 %v367, %v604
      %v640 = vmul.f32 %v368, %v606
      %v641 = vmul.f32 %v369, %v608
      %v642 = vmul.f32 %v370, %v610
      %v643 = vpack.c.bf16 %v628, %v627
      %v644 = vpack.c.bf16 %v630, %v629
      %v645 = vpack.c.bf16 %v632, %v631
      %v646 = vpack.c.bf16 %v634, %v633
      %v647 = vpack.c.bf16 %v636, %v635
      %v648 = vpack.c.bf16 %v638, %v637
      %v649 = vpack.c.bf16 %v640, %v639
      %v650 = vpack.c.bf16 %v642, %v641
      %659 = vrot.lane.b32.xlu0 %v643, 32
      %v660 = vpop.permute.xlu0 %659
      %661 = vrot.lane.b32.xlu0 %v644, 32
      %v662 = vpop.permute.xlu0 %661
      %663 = vrot.lane.b32.xlu0 %v645, 32
      %v664 = vpop.permute.xlu0 %663
      %665 = vrot.lane.b32.xlu0 %v646, 32
      %v666 = vpop.permute.xlu0 %665
      %667 = vrot.lane.b32.xlu0 %v647, 32
      %v668 = vpop.permute.xlu0 %667
      %669 = vrot.lane.b32.xlu0 %v648, 32
      %v670 = vpop.permute.xlu0 %669
      %671 = vrot.lane.b32.xlu0 %v649, 32
      %v672 = vpop.permute.xlu0 %671
      %673 = vrot.lane.b32.xlu0 %v650, 32
      %v674 = vpop.permute.xlu0 %673
      %v679 = vunpack.c.l.b16 %v179
      %v680 = vunpack.c.h.b16 %v179
      %v681 = vunpack.c.l.b16 %v180
      %v682 = vunpack.c.h.b16 %v180
      %v683 = vunpack.c.l.b16 %v181
      %v684 = vunpack.c.h.b16 %v181
      %v685 = vunpack.c.l.b16 %v182
      %v686 = vunpack.c.h.b16 %v182
      %v687 = vpack.c.b16 %v681, %v679
      %v688 = vpack.c.b16 %v682, %v680
      %v689 = vpack.c.b16 %v685, %v683
      %v690 = vpack.c.b16 %v686, %v684
      %vm695 = vcmask 261120
      %v697 = vsel %vm695, %v660, 0
      %v700 = vsel %vm695, %v662, 0
      %v703 = vsel %vm695, %v664, 0
      %v706 = vsel %vm695, %v666, 0
      %v709 = vsel %vm695, %v668, 0
      %v712 = vsel %vm695, %v670, 0
      %v715 = vsel %vm695, %v672, 0
      %v718 = vsel %vm695, %v674, 0
      %720 = vmatprep.subr.bf16.mxu0 %v688
      %721 = vmatpush1.bf16.msra.mxu0 %v687
      %722 = vmatprep.subr.bf16.mxu0 %v690
      %723 = vmatpush1.bf16.msra.mxu0 %v689
      %724 = vmatprep.subr.bf16.mxu0 0
      %725 = vmatpush1.bf16.msra.mxu0 0
      %726 = vmatprep.subr.bf16.mxu0 0
      %727 = vmatpush1.bf16.msra.mxu0 0
      %728 = vmatprep.subr.bf16.mxu0 0
      %729 = vmatpush1.bf16.msra.mxu0 0
      %730 = vmatprep.subr.bf16.mxu0 0
      %731 = vmatpush1.bf16.msra.mxu0 0
      %732 = vmatprep.subr.bf16.mxu0 0
      %733 = vmatpush1.bf16.msra.mxu0 0
      %734 = vmatprep.subr.bf16.mxu0 0
      %735 = vmatpush1.bf16.msra.mxu0 0
      %736 = vmatprep.subr.bf16.mxu0 0
      %737 = vmatpush1.bf16.msra.mxu0 0
      %738 = vmatprep.subr.bf16.mxu0 0
      %739 = vmatpush1.bf16.msra.mxu0 0
      %740 = vmatprep.subr.bf16.mxu0 0
      %741 = vmatpush1.bf16.msra.mxu0 0
      %742 = vmatprep.subr.bf16.mxu0 0
      %743 = vmatpush1.bf16.msra.mxu0 0
      %744 = vmatprep.subr.bf16.mxu0 0
      %745 = vmatpush1.bf16.msra.mxu0 0
      %746 = vmatprep.subr.bf16.mxu0 0
      %747 = vmatpush1.bf16.msra.mxu0 0
      %748 = vmatprep.subr.bf16.mxu0 0
      %749 = vmatpush1.bf16.msra.mxu0 0
      %750 = vmatprep.subr.bf16.mxu0 0
      %751 = vmatpush1.bf16.msra.mxu0 0
      %752 = vmatprep.mubr.bf16.mxu0 0
      %753 = vmatmul.mubr.bf16.gmra.mrb[0].mxu0 %v697
      %v754 = vpop.f32.mrb[0].mxu0
      %v755 = vadd.f32 0.0, %v754
      %v756 = vpop.f32.mrb[0].mxu0
      %v757 = vpop.f32.mrb[0].mxu0
      %v758 = vadd.f32 0.0, %v757
      %v759 = vpop.f32.mrb[0].mxu0
      %760 = vmatprep.mubr.bf16.mxu0 0
      %761 = vmatmul.mubr.bf16.gmra.mrb[0].mxu0 %v700
      %v762 = vpop.f32.mrb[0].mxu0
      %v763 = vadd.f32 0.0, %v762
      %v764 = vpop.f32.mrb[0].mxu0
      %v765 = vpop.f32.mrb[0].mxu0
      %v766 = vadd.f32 0.0, %v765
      %v767 = vpop.f32.mrb[0].mxu0
      %768 = vmatprep.mubr.bf16.mxu0 0
      %769 = vmatmul.mubr.bf16.gmra.mrb[0].mxu0 %v703
      %v770 = vpop.f32.mrb[0].mxu0
      %v771 = vadd.f32 0.0, %v770
      %v772 = vpop.f32.mrb[0].mxu0
      %v773 = vpop.f32.mrb[0].mxu0
      %v774 = vadd.f32 0.0, %v773
      %v775 = vpop.f32.mrb[0].mxu0
      %776 = vmatprep.mubr.bf16.mxu0 0
      %777 = vmatmul.mubr.bf16.gmra.mrb[0].mxu0 %v706
      %v778 = vpop.f32.mrb[0].mxu0
      %v779 = vadd.f32 0.0, %v778
      %v780 = vpop.f32.mrb[0].mxu0
      %v781 = vpop.f32.mrb[0].mxu0
      %v782 = vadd.f32 0.0, %v781
      %v783 = vpop.f32.mrb[0].mxu0
      %784 = vmatprep.mubr.bf16.mxu0 0
      %785 = vmatmul.mubr.bf16.gmra.mrb[0].mxu0 %v709
      %v786 = vpop.f32.mrb[0].mxu0
      %v787 = vadd.f32 0.0, %v786
      %v788 = vpop.f32.mrb[0].mxu0
      %v789 = vpop.f32.mrb[0].mxu0
      %v790 = vadd.f32 0.0, %v789
      %v791 = vpop.f32.mrb[0].mxu0
      %792 = vmatprep.mubr.bf16.mxu0 0
      %793 = vmatmul.mubr.bf16.gmra.mrb[0].mxu0 %v712
      %v794 = vpop.f32.mrb[0].mxu0
      %v795 = vadd.f32 0.0, %v794
      %v796 = vpop.f32.mrb[0].mxu0
      %v797 = vpop.f32.mrb[0].mxu0
      %v798 = vadd.f32 0.0, %v797
      %v799 = vpop.f32.mrb[0].mxu0
      %800 = vmatprep.mubr.bf16.mxu0 0
      %801 = vmatmul.mubr.bf16.gmra.mrb[0].mxu0 %v715
      %v802 = vpop.f32.mrb[0].mxu0
      %v803 = vadd.f32 0.0, %v802
      %v804 = vpop.f32.mrb[0].mxu0
      %v805 = vpop.f32.mrb[0].mxu0
      %v806 = vadd.f32 0.0, %v805
      %v807 = vpop.f32.mrb[0].mxu0
      %808 = vmatprep.mubr.bf16.mxu0 0
      %809 = vmatmul.mubr.bf16.gmra.mrb[0].mxu0 %v718
      %v810 = vpop.f32.mrb[0].mxu0
      %v811 = vadd.f32 0.0, %v810
      %v812 = vpop.f32.mrb[0].mxu0
      %v813 = vpop.f32.mrb[0].mxu0
      %v814 = vadd.f32 0.0, %v813
      %v815 = vpop.f32.mrb[0].mxu0
      %816 = vdwg.mxu0
      %817 = vset.pattern.permute.xlu0 1
      %818 = vperm.xlu0 %817, %v187
      %v819 = vpop.permute.xlu0 %818
      %821 = vset.pattern.permute.xlu0 1
      %822 = vperm.xlu0 %821, %v188
      %v823 = vpop.permute.xlu0 %822
      %825 = vset.pattern.permute.xlu0 1
      %826 = vperm.xlu0 %825, %v189
      %v827 = vpop.permute.xlu0 %826
      %829 = vset.pattern.permute.xlu0 1
      %830 = vperm.xlu0 %829, %v190
      %v831 = vpop.permute.xlu0 %830
      %833 = vset.pattern.permute.xlu0 1
      %834 = vperm.xlu0 %833, %v191
      %v835 = vpop.permute.xlu0 %834
      %837 = vset.pattern.permute.xlu0 1
      %838 = vperm.xlu0 %837, %v192
      %v839 = vpop.permute.xlu0 %838
      %841 = vset.pattern.permute.xlu0 1
      %842 = vperm.xlu0 %841, %v193
      %v843 = vpop.permute.xlu0 %842
      %845 = vset.pattern.permute.xlu0 1
      %846 = vperm.xlu0 %845, %v194
      %v847 = vpop.permute.xlu0 %846
      %849 = vset.pattern.permute.xlu0 1
      %850 = vperm.xlu0 %849, %v195
      %v851 = vpop.permute.xlu0 %850
      %853 = vset.pattern.permute.xlu0 1
      %854 = vperm.xlu0 %853, %v196
      %v855 = vpop.permute.xlu0 %854
      %857 = vset.pattern.permute.xlu0 1
      %858 = vperm.xlu0 %857, %v197
      %v859 = vpop.permute.xlu0 %858
      %861 = vset.pattern.permute.xlu0 1
      %862 = vperm.xlu0 %861, %v198
      %v863 = vpop.permute.xlu0 %862
      %865 = vset.pattern.permute.xlu0 1
      %866 = vperm.xlu0 %865, %v199
      %v867 = vpop.permute.xlu0 %866
      %869 = vset.pattern.permute.xlu0 1
      %870 = vperm.xlu0 %869, %v200
      %v871 = vpop.permute.xlu0 %870
      %873 = vset.pattern.permute.xlu0 1
      %874 = vperm.xlu0 %873, %v201
      %v875 = vpop.permute.xlu0 %874
      %877 = vset.pattern.permute.xlu0 1
      %878 = vperm.xlu0 %877, %v202
      %v879 = vpop.permute.xlu0 %878
      %v881 = vmul.f32 %v819, %v286
      %v882 = vmul.f32 %v823, %v286
      %v883 = vmul.f32 %v827, %v286
      %v884 = vmul.f32 %v831, %v286
      %v885 = vmul.f32 %v835, %v286
      %v886 = vmul.f32 %v839, %v286
      %v887 = vmul.f32 %v843, %v286
      %v888 = vmul.f32 %v847, %v286
      %v889 = vmul.f32 %v851, %v286
      %v890 = vmul.f32 %v855, %v286
      %v891 = vmul.f32 %v859, %v286
      %v892 = vmul.f32 %v863, %v286
      %v893 = vmul.f32 %v867, %v286
      %v894 = vmul.f32 %v871, %v286
      %v895 = vmul.f32 %v875, %v286
      %v896 = vmul.f32 %v879, %v286
      %v897 = vadd.f32 %v881, %v306
      %v898 = vadd.f32 %v882, %v306
      %v899 = vadd.f32 %v883, %v306
      %v900 = vadd.f32 %v884, %v306
      %v901 = vadd.f32 %v885, %v306
      %v902 = vadd.f32 %v886, %v306
      %v903 = vadd.f32 %v887, %v306
      %v904 = vadd.f32 %v888, %v306
      %v905 = vadd.f32 %v889, %v306
      %v906 = vadd.f32 %v890, %v306
      %v907 = vadd.f32 %v891, %v306
      %v908 = vadd.f32 %v892, %v306
      %v909 = vadd.f32 %v893, %v306
      %v910 = vadd.f32 %v894, %v306
      %v911 = vadd.f32 %v895, %v306
      %v912 = vadd.f32 %v896, %v306
      %v913 = vadd.f32 %v897, %v755
      %v914 = vadd.f32 %v898, %v758
      %v915 = vadd.f32 %v899, %v763
      %v916 = vadd.f32 %v900, %v766
      %v917 = vadd.f32 %v901, %v771
      %v918 = vadd.f32 %v902, %v774
      %v919 = vadd.f32 %v903, %v779
      %v920 = vadd.f32 %v904, %v782
      %v921 = vadd.f32 %v905, %v787
      %v922 = vadd.f32 %v906, %v790
      %v923 = vadd.f32 %v907, %v795
      %v924 = vadd.f32 %v908, %v798
      %v925 = vadd.f32 %v909, %v803
      %v926 = vadd.f32 %v910, %v806
      %v927 = vadd.f32 %v911, %v811
      %v928 = vadd.f32 %v912, %v814
      %v929 = vtanh.pop %v913
      %v930 = vtanh.pop %v914
      %v931 = vtanh.pop %v915
      %v932 = vtanh.pop %v916
      %v933 = vtanh.pop %v917
      %v934 = vtanh.pop %v918
      %v935 = vtanh.pop %v919
      %v936 = vtanh.pop %v920
      %v937 = vtanh.pop %v921
      %v938 = vtanh.pop %v922
      %v939 = vtanh.pop %v923
      %v940 = vtanh.pop %v924
      %v941 = vtanh.pop %v925
      %v942 = vtanh.pop %v926
      %v943 = vtanh.pop %v927
      %v944 = vtanh.pop %v928
      %v945 = vmul.f32 %v929, 0.5
      %v946 = vmul.f32 %v930, 0.5
      %v947 = vmul.f32 %v931, 0.5
      %v948 = vmul.f32 %v932, 0.5
      %v949 = vmul.f32 %v933, 0.5
      %v950 = vmul.f32 %v934, 0.5
      %v951 = vmul.f32 %v935, 0.5
      %v952 = vmul.f32 %v936, 0.5
      %v953 = vmul.f32 %v937, 0.5
      %v954 = vmul.f32 %v938, 0.5
      %v955 = vmul.f32 %v939, 0.5
      %v956 = vmul.f32 %v940, 0.5
      %v957 = vmul.f32 %v941, 0.5
      %v958 = vmul.f32 %v942, 0.5
      %v959 = vmul.f32 %v943, 0.5
      %v960 = vmul.f32 %v944, 0.5
      %v961 = vadd.f32 %v945, 0.5
      %v962 = vadd.f32 %v946, 0.5
      %v963 = vadd.f32 %v947, 0.5
      %v964 = vadd.f32 %v948, 0.5
      %v965 = vadd.f32 %v949, 0.5
      %v966 = vadd.f32 %v950, 0.5
      %v967 = vadd.f32 %v951, 0.5
      %v968 = vadd.f32 %v952, 0.5
      %v969 = vadd.f32 %v953, 0.5
      %v970 = vadd.f32 %v954, 0.5
      %v971 = vadd.f32 %v955, 0.5
      %v972 = vadd.f32 %v956, 0.5
      %v973 = vadd.f32 %v957, 0.5
      %v974 = vadd.f32 %v958, 0.5
      %v975 = vadd.f32 %v959, 0.5
      %v976 = vadd.f32 %v960, 0.5
      %v977 = vmul.f32 %v961, %v531
      %v978 = vmul.f32 %v962, %v532
      %v979 = vmul.f32 %v963, %v533
      %v980 = vmul.f32 %v964, %v534
      %v981 = vmul.f32 %v965, %v535
      %v982 = vmul.f32 %v966, %v536
      %v983 = vmul.f32 %v967, %v537
      %v984 = vmul.f32 %v968, %v538
      %v985 = vmul.f32 %v969, %v539
      %v986 = vmul.f32 %v970, %v540
      %v987 = vmul.f32 %v971, %v541
      %v988 = vmul.f32 %v972, %v542
      %v989 = vmul.f32 %v973, %v543
      %v990 = vmul.f32 %v974, %v544
      %v991 = vmul.f32 %v975, %v545
      %v992 = vmul.f32 %v976, %v546
      %1009 = vrot.lane.b32.xlu0 %v929, 64
      %v1010 = vpop.permute.xlu0 %1009
      %1011 = vrot.lane.b32.xlu0 %v930, 64
      %v1012 = vpop.permute.xlu0 %1011
      %1013 = vrot.lane.b32.xlu0 %v931, 64
      %v1014 = vpop.permute.xlu0 %1013
      %1015 = vrot.lane.b32.xlu0 %v932, 64
      %v1016 = vpop.permute.xlu0 %1015
      %1017 = vrot.lane.b32.xlu0 %v933, 64
      %v1018 = vpop.permute.xlu0 %1017
      %1019 = vrot.lane.b32.xlu0 %v934, 64
      %v1020 = vpop.permute.xlu0 %1019
      %1021 = vrot.lane.b32.xlu0 %v935, 64
      %v1022 = vpop.permute.xlu0 %1021
      %1023 = vrot.lane.b32.xlu0 %v936, 64
      %v1024 = vpop.permute.xlu0 %1023
      %1025 = vrot.lane.b32.xlu0 %v937, 64
      %v1026 = vpop.permute.xlu0 %1025
      %1027 = vrot.lane.b32.xlu0 %v938, 64
      %v1028 = vpop.permute.xlu0 %1027
      %1029 = vrot.lane.b32.xlu0 %v939, 64
      %v1030 = vpop.permute.xlu0 %1029
      %1031 = vrot.lane.b32.xlu0 %v940, 64
      %v1032 = vpop.permute.xlu0 %1031
      %1033 = vrot.lane.b32.xlu0 %v941, 64
      %v1034 = vpop.permute.xlu0 %1033
      %1035 = vrot.lane.b32.xlu0 %v942, 64
      %v1036 = vpop.permute.xlu0 %1035
      %1037 = vrot.lane.b32.xlu0 %v943, 64
      %v1038 = vpop.permute.xlu0 %1037
      %1039 = vrot.lane.b32.xlu0 %v944, 64
      %v1040 = vpop.permute.xlu0 %1039
      %v1057 = vmul.f32 %v961, %v1010
      %v1058 = vmul.f32 %v962, %v1012
      %v1059 = vmul.f32 %v963, %v1014
      %v1060 = vmul.f32 %v964, %v1016
      %v1061 = vmul.f32 %v965, %v1018
      %v1062 = vmul.f32 %v966, %v1020
      %v1063 = vmul.f32 %v967, %v1022
      %v1064 = vmul.f32 %v968, %v1024
      %v1065 = vmul.f32 %v969, %v1026
      %v1066 = vmul.f32 %v970, %v1028
      %v1067 = vmul.f32 %v971, %v1030
      %v1068 = vmul.f32 %v972, %v1032
      %v1069 = vmul.f32 %v973, %v1034
      %v1070 = vmul.f32 %v974, %v1036
      %v1071 = vmul.f32 %v975, %v1038
      %v1072 = vmul.f32 %v976, %v1040
      %1089 = vrot.lane.b32.xlu0 %v1057, 32
      %v1090 = vpop.permute.xlu0 %1089
      %1091 = vrot.lane.b32.xlu0 %v1058, 32
      %v1092 = vpop.permute.xlu0 %1091
      %1093 = vrot.lane.b32.xlu0 %v1059, 32
      %v1094 = vpop.permute.xlu0 %1093
      %1095 = vrot.lane.b32.xlu0 %v1060, 32
      %v1096 = vpop.permute.xlu0 %1095
      %1097 = vrot.lane.b32.xlu0 %v1061, 32
      %v1098 = vpop.permute.xlu0 %1097
      %1099 = vrot.lane.b32.xlu0 %v1062, 32
      %v1100 = vpop.permute.xlu0 %1099
      %1101 = vrot.lane.b32.xlu0 %v1063, 32
      %v1102 = vpop.permute.xlu0 %1101
      %1103 = vrot.lane.b32.xlu0 %v1064, 32
      %v1104 = vpop.permute.xlu0 %1103
      %1105 = vrot.lane.b32.xlu0 %v1065, 32
      %v1106 = vpop.permute.xlu0 %1105
      %1107 = vrot.lane.b32.xlu0 %v1066, 32
      %v1108 = vpop.permute.xlu0 %1107
      %1109 = vrot.lane.b32.xlu0 %v1067, 32
      %v1110 = vpop.permute.xlu0 %1109
      %1111 = vrot.lane.b32.xlu0 %v1068, 32
      %v1112 = vpop.permute.xlu0 %1111
      %1113 = vrot.lane.b32.xlu0 %v1069, 32
      %v1114 = vpop.permute.xlu0 %1113
      %1115 = vrot.lane.b32.xlu0 %v1070, 32
      %v1116 = vpop.permute.xlu0 %1115
      %1117 = vrot.lane.b32.xlu0 %v1071, 32
      %v1118 = vpop.permute.xlu0 %1117
      %1119 = vrot.lane.b32.xlu0 %v1072, 32
      %v1120 = vpop.permute.xlu0 %1119
      %v1137 = vadd.f32 %v977, %v1090
      %v1138 = vadd.f32 %v978, %v1092
      %v1139 = vadd.f32 %v979, %v1094
      %v1140 = vadd.f32 %v980, %v1096
      %v1141 = vadd.f32 %v981, %v1098
      %v1142 = vadd.f32 %v982, %v1100
      %v1143 = vadd.f32 %v983, %v1102
      %v1144 = vadd.f32 %v984, %v1104
      %v1145 = vadd.f32 %v985, %v1106
      %v1146 = vadd.f32 %v986, %v1108
      %v1147 = vadd.f32 %v987, %v1110
      %v1148 = vadd.f32 %v988, %v1112
      %v1149 = vadd.f32 %v989, %v1114
      %v1150 = vadd.f32 %v990, %v1116
      %v1151 = vadd.f32 %v991, %v1118
      %v1152 = vadd.f32 %v992, %v1120
      %v1153 = vtanh.pop %v1137
      %v1154 = vtanh.pop %v1138
      %v1155 = vtanh.pop %v1139
      %v1156 = vtanh.pop %v1140
      %v1157 = vtanh.pop %v1141
      %v1158 = vtanh.pop %v1142
      %v1159 = vtanh.pop %v1143
      %v1160 = vtanh.pop %v1144
      %v1161 = vtanh.pop %v1145
      %v1162 = vtanh.pop %v1146
      %v1163 = vtanh.pop %v1147
      %v1164 = vtanh.pop %v1148
      %v1165 = vtanh.pop %v1149
      %v1166 = vtanh.pop %v1150
      %v1167 = vtanh.pop %v1151
      %v1168 = vtanh.pop %v1152
      %1185 = vrot.lane.b32.xlu0 %v1153, 64
      %v1186 = vpop.permute.xlu0 %1185
      %1187 = vrot.lane.b32.xlu0 %v1154, 64
      %v1188 = vpop.permute.xlu0 %1187
      %1189 = vrot.lane.b32.xlu0 %v1155, 64
      %v1190 = vpop.permute.xlu0 %1189
      %1191 = vrot.lane.b32.xlu0 %v1156, 64
      %v1192 = vpop.permute.xlu0 %1191
      %1193 = vrot.lane.b32.xlu0 %v1157, 64
      %v1194 = vpop.permute.xlu0 %1193
      %1195 = vrot.lane.b32.xlu0 %v1158, 64
      %v1196 = vpop.permute.xlu0 %1195
      %1197 = vrot.lane.b32.xlu0 %v1159, 64
      %v1198 = vpop.permute.xlu0 %1197
      %1199 = vrot.lane.b32.xlu0 %v1160, 64
      %v1200 = vpop.permute.xlu0 %1199
      %1201 = vrot.lane.b32.xlu0 %v1161, 64
      %v1202 = vpop.permute.xlu0 %1201
      %1203 = vrot.lane.b32.xlu0 %v1162, 64
      %v1204 = vpop.permute.xlu0 %1203
      %1205 = vrot.lane.b32.xlu0 %v1163, 64
      %v1206 = vpop.permute.xlu0 %1205
      %1207 = vrot.lane.b32.xlu0 %v1164, 64
      %v1208 = vpop.permute.xlu0 %1207
      %1209 = vrot.lane.b32.xlu0 %v1165, 64
      %v1210 = vpop.permute.xlu0 %1209
      %1211 = vrot.lane.b32.xlu0 %v1166, 64
      %v1212 = vpop.permute.xlu0 %1211
      %1213 = vrot.lane.b32.xlu0 %v1167, 64
      %v1214 = vpop.permute.xlu0 %1213
      %1215 = vrot.lane.b32.xlu0 %v1168, 64
      %v1216 = vpop.permute.xlu0 %1215
      %v1233 = vmul.f32 %v961, %v1186
      %v1234 = vmul.f32 %v962, %v1188
      %v1235 = vmul.f32 %v963, %v1190
      %v1236 = vmul.f32 %v964, %v1192
      %v1237 = vmul.f32 %v965, %v1194
      %v1238 = vmul.f32 %v966, %v1196
      %v1239 = vmul.f32 %v967, %v1198
      %v1240 = vmul.f32 %v968, %v1200
      %v1241 = vmul.f32 %v969, %v1202
      %v1242 = vmul.f32 %v970, %v1204
      %v1243 = vmul.f32 %v971, %v1206
      %v1244 = vmul.f32 %v972, %v1208
      %v1245 = vmul.f32 %v973, %v1210
      %v1246 = vmul.f32 %v974, %v1212
      %v1247 = vmul.f32 %v975, %v1214
      %v1248 = vmul.f32 %v976, %v1216
      %v1249 = vpack.c.bf16 %v1234, %v1233
      %v1250 = vpack.c.bf16 %v1236, %v1235
      %v1251 = vpack.c.bf16 %v1238, %v1237
      %v1252 = vpack.c.bf16 %v1240, %v1239
      %v1253 = vpack.c.bf16 %v1242, %v1241
      %v1254 = vpack.c.bf16 %v1244, %v1243
      %v1255 = vpack.c.bf16 %v1246, %v1245
      %v1256 = vpack.c.bf16 %v1248, %v1247
      %1265 = vrot.lane.b32.xlu0 %v1249, 32
      %v1266 = vpop.permute.xlu0 %1265
      %1267 = vrot.lane.b32.xlu0 %v1250, 32
      %v1268 = vpop.permute.xlu0 %1267
      %1269 = vrot.lane.b32.xlu0 %v1251, 32
      %v1270 = vpop.permute.xlu0 %1269
      %1271 = vrot.lane.b32.xlu0 %v1252, 32
      %v1272 = vpop.permute.xlu0 %1271
      %1273 = vrot.lane.b32.xlu0 %v1253, 32
      %v1274 = vpop.permute.xlu0 %1273
      %1275 = vrot.lane.b32.xlu0 %v1254, 32
      %v1276 = vpop.permute.xlu0 %1275
      %1277 = vrot.lane.b32.xlu0 %v1255, 32
      %v1278 = vpop.permute.xlu0 %1277
      %1279 = vrot.lane.b32.xlu0 %v1256, 32
      %v1280 = vpop.permute.xlu0 %1279
      %v1282 = vsel %vm695, %v1266, 0
      %v1285 = vsel %vm695, %v1268, 0
      %v1288 = vsel %vm695, %v1270, 0
      %v1291 = vsel %vm695, %v1272, 0
      %v1294 = vsel %vm695, %v1274, 0
      %v1297 = vsel %vm695, %v1276, 0
      %v1300 = vsel %vm695, %v1278, 0
      %v1303 = vsel %vm695, %v1280, 0
      %1305 = vmatprep.subr.bf16.mxu0 %v688
      %1306 = vmatpush1.bf16.msra.mxu0 %v687
      %1307 = vmatprep.subr.bf16.mxu0 %v690
      %1308 = vmatpush1.bf16.msra.mxu0 %v689
      %1309 = vmatprep.subr.bf16.mxu0 0
      %1310 = vmatpush1.bf16.msra.mxu0 0
      %1311 = vmatprep.subr.bf16.mxu0 0
      %1312 = vmatpush1.bf16.msra.mxu0 0
      %1313 = vmatprep.subr.bf16.mxu0 0
      %1314 = vmatpush1.bf16.msra.mxu0 0
      %1315 = vmatprep.subr.bf16.mxu0 0
      %1316 = vmatpush1.bf16.msra.mxu0 0
      %1317 = vmatprep.subr.bf16.mxu0 0
      %1318 = vmatpush1.bf16.msra.mxu0 0
      %1319 = vmatprep.subr.bf16.mxu0 0
      %1320 = vmatpush1.bf16.msra.mxu0 0
      %1321 = vmatprep.subr.bf16.mxu0 0
      %1322 = vmatpush1.bf16.msra.mxu0 0
      %1323 = vmatprep.subr.bf16.mxu0 0
      %1324 = vmatpush1.bf16.msra.mxu0 0
      %1325 = vmatprep.subr.bf16.mxu0 0
      %1326 = vmatpush1.bf16.msra.mxu0 0
      %1327 = vmatprep.subr.bf16.mxu0 0
      %1328 = vmatpush1.bf16.msra.mxu0 0
      %1329 = vmatprep.subr.bf16.mxu0 0
      %1330 = vmatpush1.bf16.msra.mxu0 0
      %1331 = vmatprep.subr.bf16.mxu0 0
      %1332 = vmatpush1.bf16.msra.mxu0 0
      %1333 = vmatprep.subr.bf16.mxu0 0
      %1334 = vmatpush1.bf16.msra.mxu0 0
      %1335 = vmatprep.subr.bf16.mxu0 0
      %1336 = vmatpush1.bf16.msra.mxu0 0
      %1337 = vmatprep.mubr.bf16.mxu0 0
      %1338 = vmatmul.mubr.bf16.gmra.mrb[0].mxu0 %v1282
      %v1339 = vpop.f32.mrb[0].mxu0
      %v1340 = vadd.f32 0.0, %v1339
      %v1341 = vpop.f32.mrb[0].mxu0
      %v1342 = vpop.f32.mrb[0].mxu0
      %v1343 = vadd.f32 0.0, %v1342
      %v1344 = vpop.f32.mrb[0].mxu0
      %1345 = vmatprep.mubr.bf16.mxu0 0
      %1346 = vmatmul.mubr.bf16.gmra.mrb[0].mxu0 %v1285
      %v1347 = vpop.f32.mrb[0].mxu0
      %v1348 = vadd.f32 0.0, %v1347
      %v1349 = vpop.f32.mrb[0].mxu0
      %v1350 = vpop.f32.mrb[0].mxu0
      %v1351 = vadd.f32 0.0, %v1350
      %v1352 = vpop.f32.mrb[0].mxu0
      %1353 = vmatprep.mubr.bf16.mxu0 0
      %1354 = vmatmul.mubr.bf16.gmra.mrb[0].mxu0 %v1288
      %v1355 = vpop.f32.mrb[0].mxu0
      %v1356 = vadd.f32 0.0, %v1355
      %v1357 = vpop.f32.mrb[0].mxu0
      %v1358 = vpop.f32.mrb[0].mxu0
      %v1359 = vadd.f32 0.0, %v1358
      %v1360 = vpop.f32.mrb[0].mxu0
      %1361 = vmatprep.mubr.bf16.mxu0 0
      %1362 = vmatmul.mubr.bf16.gmra.mrb[0].mxu0 %v1291
      %v1363 = vpop.f32.mrb[0].mxu0
      %v1364 = vadd.f32 0.0, %v1363
      %v1365 = vpop.f32.mrb[0].mxu0
      %v1366 = vpop.f32.mrb[0].mxu0
      %v1367 = vadd.f32 0.0, %v1366
      %v1368 = vpop.f32.mrb[0].mxu0
      %1369 = vmatprep.mubr.bf16.mxu0 0
      %1370 = vmatmul.mubr.bf16.gmra.mrb[0].mxu0 %v1294
      %v1371 = vpop.f32.mrb[0].mxu0
      %v1372 = vadd.f32 0.0, %v1371
      %v1373 = vpop.f32.mrb[0].mxu0
      %v1374 = vpop.f32.mrb[0].mxu0
      %v1375 = vadd.f32 0.0, %v1374
      %v1376 = vpop.f32.mrb[0].mxu0
      %1377 = vmatprep.mubr.bf16.mxu0 0
      %1378 = vmatmul.mubr.bf16.gmra.mrb[0].mxu0 %v1297
      %v1379 = vpop.f32.mrb[0].mxu0
      %v1380 = vadd.f32 0.0, %v1379
      %v1381 = vpop.f32.mrb[0].mxu0
      %v1382 = vpop.f32.mrb[0].mxu0
      %v1383 = vadd.f32 0.0, %v1382
      %v1384 = vpop.f32.mrb[0].mxu0
      %1385 = vmatprep.mubr.bf16.mxu0 0
      %1386 = vmatmul.mubr.bf16.gmra.mrb[0].mxu0 %v1300
      %v1387 = vpop.f32.mrb[0].mxu0
      %v1388 = vadd.f32 0.0, %v1387
      %v1389 = vpop.f32.mrb[0].mxu0
      %v1390 = vpop.f32.mrb[0].mxu0
      %v1391 = vadd.f32 0.0, %v1390
      %v1392 = vpop.f32.mrb[0].mxu0
      %1393 = vmatprep.mubr.bf16.mxu0 0
      %1394 = vmatmul.mubr.bf16.gmra.mrb[0].mxu0 %v1303
      %v1395 = vpop.f32.mrb[0].mxu0
      %v1396 = vadd.f32 0.0, %v1395
      %v1397 = vpop.f32.mrb[0].mxu0
      %v1398 = vpop.f32.mrb[0].mxu0
      %v1399 = vadd.f32 0.0, %v1398
      %v1400 = vpop.f32.mrb[0].mxu0
      %1401 = vdwg.mxu0
      %1402 = vset.pattern.permute.xlu0 2
      %1403 = vperm.xlu0 %1402, %v187
      %v1404 = vpop.permute.xlu0 %1403
      %1406 = vset.pattern.permute.xlu0 2
      %1407 = vperm.xlu0 %1406, %v188
      %v1408 = vpop.permute.xlu0 %1407
      %1410 = vset.pattern.permute.xlu0 2
      %1411 = vperm.xlu0 %1410, %v189
      %v1412 = vpop.permute.xlu0 %1411
      %1414 = vset.pattern.permute.xlu0 2
      %1415 = vperm.xlu0 %1414, %v190
      %v1416 = vpop.permute.xlu0 %1415
      %1418 = vset.pattern.permute.xlu0 2
      %1419 = vperm.xlu0 %1418, %v191
      %v1420 = vpop.permute.xlu0 %1419
      %1422 = vset.pattern.permute.xlu0 2
      %1423 = vperm.xlu0 %1422, %v192
      %v1424 = vpop.permute.xlu0 %1423
      %1426 = vset.pattern.permute.xlu0 2
      %1427 = vperm.xlu0 %1426, %v193
      %v1428 = vpop.permute.xlu0 %1427
      %1430 = vset.pattern.permute.xlu0 2
      %1431 = vperm.xlu0 %1430, %v194
      %v1432 = vpop.permute.xlu0 %1431
      %1434 = vset.pattern.permute.xlu0 2
      %1435 = vperm.xlu0 %1434, %v195
      %v1436 = vpop.permute.xlu0 %1435
      %1438 = vset.pattern.permute.xlu0 2
      %1439 = vperm.xlu0 %1438, %v196
      %v1440 = vpop.permute.xlu0 %1439
      %1442 = vset.pattern.permute.xlu0 2
      %1443 = vperm.xlu0 %1442, %v197
      %v1444 = vpop.permute.xlu0 %1443
      %1446 = vset.pattern.permute.xlu0 2
      %1447 = vperm.xlu0 %1446, %v198
      %v1448 = vpop.permute.xlu0 %1447
      %1450 = vset.pattern.permute.xlu0 2
      %1451 = vperm.xlu0 %1450, %v199
      %v1452 = vpop.permute.xlu0 %1451
      %1454 = vset.pattern.permute.xlu0 2
      %1455 = vperm.xlu0 %1454, %v200
      %v1456 = vpop.permute.xlu0 %1455
      %1458 = vset.pattern.permute.xlu0 2
      %1459 = vperm.xlu0 %1458, %v201
      %v1460 = vpop.permute.xlu0 %1459
      %1462 = vset.pattern.permute.xlu0 2
      %1463 = vperm.xlu0 %1462, %v202
      %v1464 = vpop.permute.xlu0 %1463
      %v1466 = vmul.f32 %v1404, %v286
      %v1467 = vmul.f32 %v1408, %v286
      %v1468 = vmul.f32 %v1412, %v286
      %v1469 = vmul.f32 %v1416, %v286
      %v1470 = vmul.f32 %v1420, %v286
      %v1471 = vmul.f32 %v1424, %v286
      %v1472 = vmul.f32 %v1428, %v286
      %v1473 = vmul.f32 %v1432, %v286
      %v1474 = vmul.f32 %v1436, %v286
      %v1475 = vmul.f32 %v1440, %v286
      %v1476 = vmul.f32 %v1444, %v286
      %v1477 = vmul.f32 %v1448, %v286
      %v1478 = vmul.f32 %v1452, %v286
      %v1479 = vmul.f32 %v1456, %v286
      %v1480 = vmul.f32 %v1460, %v286
      %v1481 = vmul.f32 %v1464, %v286
      %v1482 = vadd.f32 %v1466, %v306
      %v1483 = vadd.f32 %v1467, %v306
      %v1484 = vadd.f32 %v1468, %v306
      %v1485 = vadd.f32 %v1469, %v306
      %v1486 = vadd.f32 %v1470, %v306
      %v1487 = vadd.f32 %v1471, %v306
      %v1488 = vadd.f32 %v1472, %v306
      %v1489 = vadd.f32 %v1473, %v306
      %v1490 = vadd.f32 %v1474, %v306
      %v1491 = vadd.f32 %v1475, %v306
      %v1492 = vadd.f32 %v1476, %v306
      %v1493 = vadd.f32 %v1477, %v306
      %v1494 = vadd.f32 %v1478, %v306
      %v1495 = vadd.f32 %v1479, %v306
      %v1496 = vadd.f32 %v1480, %v306
      %v1497 = vadd.f32 %v1481, %v306
      %v1498 = vadd.f32 %v1482, %v1340
      %v1499 = vadd.f32 %v1483, %v1343
      %v1500 = vadd.f32 %v1484, %v1348
      %v1501 = vadd.f32 %v1485, %v1351
      %v1502 = vadd.f32 %v1486, %v1356
      %v1503 = vadd.f32 %v1487, %v1359
      %v1504 = vadd.f32 %v1488, %v1364
      %v1505 = vadd.f32 %v1489, %v1367
      %v1506 = vadd.f32 %v1490, %v1372
      %v1507 = vadd.f32 %v1491, %v1375
      %v1508 = vadd.f32 %v1492, %v1380
      %v1509 = vadd.f32 %v1493, %v1383
      %v1510 = vadd.f32 %v1494, %v1388
      %v1511 = vadd.f32 %v1495, %v1391
      %v1512 = vadd.f32 %v1496, %v1396
      %v1513 = vadd.f32 %v1497, %v1399
      %v1514 = vtanh.pop %v1498
      %v1515 = vtanh.pop %v1499
      %v1516 = vtanh.pop %v1500
      %v1517 = vtanh.pop %v1501
      %v1518 = vtanh.pop %v1502
      %v1519 = vtanh.pop %v1503
      %v1520 = vtanh.pop %v1504
      %v1521 = vtanh.pop %v1505
      %v1522 = vtanh.pop %v1506
      %v1523 = vtanh.pop %v1507
      %v1524 = vtanh.pop %v1508
      %v1525 = vtanh.pop %v1509
      %v1526 = vtanh.pop %v1510
      %v1527 = vtanh.pop %v1511
      %v1528 = vtanh.pop %v1512
      %v1529 = vtanh.pop %v1513
      %v1530 = vmul.f32 %v1514, 0.5
      %v1531 = vmul.f32 %v1515, 0.5
      %v1532 = vmul.f32 %v1516, 0.5
      %v1533 = vmul.f32 %v1517, 0.5
      %v1534 = vmul.f32 %v1518, 0.5
      %v1535 = vmul.f32 %v1519, 0.5
      %v1536 = vmul.f32 %v1520, 0.5
      %v1537 = vmul.f32 %v1521, 0.5
      %v1538 = vmul.f32 %v1522, 0.5
      %v1539 = vmul.f32 %v1523, 0.5
      %v1540 = vmul.f32 %v1524, 0.5
      %v1541 = vmul.f32 %v1525, 0.5
      %v1542 = vmul.f32 %v1526, 0.5
      %v1543 = vmul.f32 %v1527, 0.5
      %v1544 = vmul.f32 %v1528, 0.5
      %v1545 = vmul.f32 %v1529, 0.5
      %v1546 = vadd.f32 %v1530, 0.5
      %v1547 = vadd.f32 %v1531, 0.5
      %v1548 = vadd.f32 %v1532, 0.5
      %v1549 = vadd.f32 %v1533, 0.5
      %v1550 = vadd.f32 %v1534, 0.5
      %v1551 = vadd.f32 %v1535, 0.5
      %v1552 = vadd.f32 %v1536, 0.5
      %v1553 = vadd.f32 %v1537, 0.5
      %v1554 = vadd.f32 %v1538, 0.5
      %v1555 = vadd.f32 %v1539, 0.5
      %v1556 = vadd.f32 %v1540, 0.5
      %v1557 = vadd.f32 %v1541, 0.5
      %v1558 = vadd.f32 %v1542, 0.5
      %v1559 = vadd.f32 %v1543, 0.5
      %v1560 = vadd.f32 %v1544, 0.5
      %v1561 = vadd.f32 %v1545, 0.5
      %v1562 = vmul.f32 %v1546, %v1137
      %v1563 = vmul.f32 %v1547, %v1138
      %v1564 = vmul.f32 %v1548, %v1139
      %v1565 = vmul.f32 %v1549, %v1140
      %v1566 = vmul.f32 %v1550, %v1141
      %v1567 = vmul.f32 %v1551, %v1142
      %v1568 = vmul.f32 %v1552, %v1143
      %v1569 = vmul.f32 %v1553, %v1144
      %v1570 = vmul.f32 %v1554, %v1145
      %v1571 = vmul.f32 %v1555, %v1146
      %v1572 = vmul.f32 %v1556, %v1147
      %v1573 = vmul.f32 %v1557, %v1148
      %v1574 = vmul.f32 %v1558, %v1149
      %v1575 = vmul.f32 %v1559, %v1150
      %v1576 = vmul.f32 %v1560, %v1151
      %v1577 = vmul.f32 %v1561, %v1152
      %1594 = vrot.lane.b32.xlu0 %v1514, 64
      %v1595 = vpop.permute.xlu0 %1594
      %1596 = vrot.lane.b32.xlu0 %v1515, 64
      %v1597 = vpop.permute.xlu0 %1596
      %1598 = vrot.lane.b32.xlu0 %v1516, 64
      %v1599 = vpop.permute.xlu0 %1598
      %1600 = vrot.lane.b32.xlu0 %v1517, 64
      %v1601 = vpop.permute.xlu0 %1600
      %1602 = vrot.lane.b32.xlu0 %v1518, 64
      %v1603 = vpop.permute.xlu0 %1602
      %1604 = vrot.lane.b32.xlu0 %v1519, 64
      %v1605 = vpop.permute.xlu0 %1604
      %1606 = vrot.lane.b32.xlu0 %v1520, 64
      %v1607 = vpop.permute.xlu0 %1606
      %1608 = vrot.lane.b32.xlu0 %v1521, 64
      %v1609 = vpop.permute.xlu0 %1608
      %1610 = vrot.lane.b32.xlu0 %v1522, 64
      %v1611 = vpop.permute.xlu0 %1610
      %1612 = vrot.lane.b32.xlu0 %v1523, 64
      %v1613 = vpop.permute.xlu0 %1612
      %1614 = vrot.lane.b32.xlu0 %v1524, 64
      %v1615 = vpop.permute.xlu0 %1614
      %1616 = vrot.lane.b32.xlu0 %v1525, 64
      %v1617 = vpop.permute.xlu0 %1616
      %1618 = vrot.lane.b32.xlu0 %v1526, 64
      %v1619 = vpop.permute.xlu0 %1618
      %1620 = vrot.lane.b32.xlu0 %v1527, 64
      %v1621 = vpop.permute.xlu0 %1620
      %1622 = vrot.lane.b32.xlu0 %v1528, 64
      %v1623 = vpop.permute.xlu0 %1622
      %1624 = vrot.lane.b32.xlu0 %v1529, 64
      %v1625 = vpop.permute.xlu0 %1624
      %v1642 = vmul.f32 %v1546, %v1595
      %v1643 = vmul.f32 %v1547, %v1597
      %v1644 = vmul.f32 %v1548, %v1599
      %v1645 = vmul.f32 %v1549, %v1601
      %v1646 = vmul.f32 %v1550, %v1603
      %v1647 = vmul.f32 %v1551, %v1605
      %v1648 = vmul.f32 %v1552, %v1607
      %v1649 = vmul.f32 %v1553, %v1609
      %v1650 = vmul.f32 %v1554, %v1611
      %v1651 = vmul.f32 %v1555, %v1613
      %v1652 = vmul.f32 %v1556, %v1615
      %v1653 = vmul.f32 %v1557, %v1617
      %v1654 = vmul.f32 %v1558, %v1619
      %v1655 = vmul.f32 %v1559, %v1621
      %v1656 = vmul.f32 %v1560, %v1623
      %v1657 = vmul.f32 %v1561, %v1625
      %1674 = vrot.lane.b32.xlu0 %v1642, 32
      %v1675 = vpop.permute.xlu0 %1674
      %1676 = vrot.lane.b32.xlu0 %v1643, 32
      %v1677 = vpop.permute.xlu0 %1676
      %1678 = vrot.lane.b32.xlu0 %v1644, 32
      %v1679 = vpop.permute.xlu0 %1678
      %1680 = vrot.lane.b32.xlu0 %v1645, 32
      %v1681 = vpop.permute.xlu0 %1680
      %1682 = vrot.lane.b32.xlu0 %v1646, 32
      %v1683 = vpop.permute.xlu0 %1682
      %1684 = vrot.lane.b32.xlu0 %v1647, 32
      %v1685 = vpop.permute.xlu0 %1684
      %1686 = vrot.lane.b32.xlu0 %v1648, 32
      %v1687 = vpop.permute.xlu0 %1686
      %1688 = vrot.lane.b32.xlu0 %v1649, 32
      %v1689 = vpop.permute.xlu0 %1688
      %1690 = vrot.lane.b32.xlu0 %v1650, 32
      %v1691 = vpop.permute.xlu0 %1690
      %1692 = vrot.lane.b32.xlu0 %v1651, 32
      %v1693 = vpop.permute.xlu0 %1692
      %1694 = vrot.lane.b32.xlu0 %v1652, 32
      %v1695 = vpop.permute.xlu0 %1694
      %1696 = vrot.lane.b32.xlu0 %v1653, 32
      %v1697 = vpop.permute.xlu0 %1696
      %1698 = vrot.lane.b32.xlu0 %v1654, 32
      %v1699 = vpop.permute.xlu0 %1698
      %1700 = vrot.lane.b32.xlu0 %v1655, 32
      %v1701 = vpop.permute.xlu0 %1700
      %1702 = vrot.lane.b32.xlu0 %v1656, 32
      %v1703 = vpop.permute.xlu0 %1702
      %1704 = vrot.lane.b32.xlu0 %v1657, 32
      %v1705 = vpop.permute.xlu0 %1704
      %v1722 = vadd.f32 %v1562, %v1675
      %v1723 = vadd.f32 %v1563, %v1677
      %v1724 = vadd.f32 %v1564, %v1679
      %v1725 = vadd.f32 %v1565, %v1681
      %v1726 = vadd.f32 %v1566, %v1683
      %v1727 = vadd.f32 %v1567, %v1685
      %v1728 = vadd.f32 %v1568, %v1687
      %v1729 = vadd.f32 %v1569, %v1689
      %v1730 = vadd.f32 %v1570, %v1691
      %v1731 = vadd.f32 %v1571, %v1693
      %v1732 = vadd.f32 %v1572, %v1695
      %v1733 = vadd.f32 %v1573, %v1697
      %v1734 = vadd.f32 %v1574, %v1699
      %v1735 = vadd.f32 %v1575, %v1701
      %v1736 = vadd.f32 %v1576, %v1703
      %v1737 = vadd.f32 %v1577, %v1705
      %v1738 = vtanh.pop %v1722
      %v1739 = vtanh.pop %v1723
      %v1740 = vtanh.pop %v1724
      %v1741 = vtanh.pop %v1725
      %v1742 = vtanh.pop %v1726
      %v1743 = vtanh.pop %v1727
      %v1744 = vtanh.pop %v1728
      %v1745 = vtanh.pop %v1729
      %v1746 = vtanh.pop %v1730
      %v1747 = vtanh.pop %v1731
      %v1748 = vtanh.pop %v1732
      %v1749 = vtanh.pop %v1733
      %v1750 = vtanh.pop %v1734
      %v1751 = vtanh.pop %v1735
      %v1752 = vtanh.pop %v1736
      %v1753 = vtanh.pop %v1737
      %1770 = vrot.lane.b32.xlu0 %v1738, 64
      %v1771 = vpop.permute.xlu0 %1770
      %1772 = vrot.lane.b32.xlu0 %v1739, 64
      %v1773 = vpop.permute.xlu0 %1772
      %1774 = vrot.lane.b32.xlu0 %v1740, 64
      %v1775 = vpop.permute.xlu0 %1774
      %1776 = vrot.lane.b32.xlu0 %v1741, 64
      %v1777 = vpop.permute.xlu0 %1776
      %1778 = vrot.lane.b32.xlu0 %v1742, 64
      %v1779 = vpop.permute.xlu0 %1778
      %1780 = vrot.lane.b32.xlu0 %v1743, 64
      %v1781 = vpop.permute.xlu0 %1780
      %1782 = vrot.lane.b32.xlu0 %v1744, 64
      %v1783 = vpop.permute.xlu0 %1782
      %1784 = vrot.lane.b32.xlu0 %v1745, 64
      %v1785 = vpop.permute.xlu0 %1784
      %1786 = vrot.lane.b32.xlu0 %v1746, 64
      %v1787 = vpop.permute.xlu0 %1786
      %1788 = vrot.lane.b32.xlu0 %v1747, 64
      %v1789 = vpop.permute.xlu0 %1788
      %1790 = vrot.lane.b32.xlu0 %v1748, 64
      %v1791 = vpop.permute.xlu0 %1790
      %1792 = vrot.lane.b32.xlu0 %v1749, 64
      %v1793 = vpop.permute.xlu0 %1792
      %1794 = vrot.lane.b32.xlu0 %v1750, 64
      %v1795 = vpop.permute.xlu0 %1794
      %1796 = vrot.lane.b32.xlu0 %v1751, 64
      %v1797 = vpop.permute.xlu0 %1796
      %1798 = vrot.lane.b32.xlu0 %v1752, 64
      %v1799 = vpop.permute.xlu0 %1798
      %1800 = vrot.lane.b32.xlu0 %v1753, 64
      %v1801 = vpop.permute.xlu0 %1800
      %v1818 = vmul.f32 %v1546, %v1771
      %v1819 = vmul.f32 %v1547, %v1773
      %v1820 = vmul.f32 %v1548, %v1775
      %v1821 = vmul.f32 %v1549, %v1777
      %v1822 = vmul.f32 %v1550, %v1779
      %v1823 = vmul.f32 %v1551, %v1781
      %v1824 = vmul.f32 %v1552, %v1783
      %v1825 = vmul.f32 %v1553, %v1785
      %v1826 = vmul.f32 %v1554, %v1787
      %v1827 = vmul.f32 %v1555, %v1789
      %v1828 = vmul.f32 %v1556, %v1791
      %v1829 = vmul.f32 %v1557, %v1793
      %v1830 = vmul.f32 %v1558, %v1795
      %v1831 = vmul.f32 %v1559, %v1797
      %v1832 = vmul.f32 %v1560, %v1799
      %v1833 = vmul.f32 %v1561, %v1801
      %v1834 = vpack.c.bf16 %v1819, %v1818
      %v1835 = vpack.c.bf16 %v1821, %v1820
      %v1836 = vpack.c.bf16 %v1823, %v1822
      %v1837 = vpack.c.bf16 %v1825, %v1824
      %v1838 = vpack.c.bf16 %v1827, %v1826
      %v1839 = vpack.c.bf16 %v1829, %v1828
      %v1840 = vpack.c.bf16 %v1831, %v1830
      %v1841 = vpack.c.bf16 %v1833, %v1832
      %1850 = vrot.lane.b32.xlu0 %v1834, 32
      %v1851 = vpop.permute.xlu0 %1850
      %1852 = vrot.lane.b32.xlu0 %v1835, 32
      %v1853 = vpop.permute.xlu0 %1852
      %1854 = vrot.lane.b32.xlu0 %v1836, 32
      %v1855 = vpop.permute.xlu0 %1854
      %1856 = vrot.lane.b32.xlu0 %v1837, 32
      %v1857 = vpop.permute.xlu0 %1856
      %1858 = vrot.lane.b32.xlu0 %v1838, 32
      %v1859 = vpop.permute.xlu0 %1858
      %1860 = vrot.lane.b32.xlu0 %v1839, 32
      %v1861 = vpop.permute.xlu0 %1860
      %1862 = vrot.lane.b32.xlu0 %v1840, 32
      %v1863 = vpop.permute.xlu0 %1862
      %1864 = vrot.lane.b32.xlu0 %v1841, 32
      %v1865 = vpop.permute.xlu0 %1864
      %v1867 = vsel %vm695, %v1851, 0
      %v1870 = vsel %vm695, %v1853, 0
      %v1873 = vsel %vm695, %v1855, 0
      %v1876 = vsel %vm695, %v1857, 0
      %v1879 = vsel %vm695, %v1859, 0
      %v1882 = vsel %vm695, %v1861, 0
      %v1885 = vsel %vm695, %v1863, 0
      %v1888 = vsel %vm695, %v1865, 0
      %1890 = vmatprep.subr.bf16.mxu0 %v688
      %1891 = vmatpush1.bf16.msra.mxu0 %v687
      %1892 = vmatprep.subr.bf16.mxu0 %v690
      %1893 = vmatpush1.bf16.msra.mxu0 %v689
      %1894 = vmatprep.subr.bf16.mxu0 0
      %1895 = vmatpush1.bf16.msra.mxu0 0
      %1896 = vmatprep.subr.bf16.mxu0 0
      %1897 = vmatpush1.bf16.msra.mxu0 0
      %1898 = vmatprep.subr.bf16.mxu0 0
      %1899 = vmatpush1.bf16.msra.mxu0 0
      %1900 = vmatprep.subr.bf16.mxu0 0
      %1901 = vmatpush1.bf16.msra.mxu0 0
      %1902 = vmatprep.subr.bf16.mxu0 0
      %1903 = vmatpush1.bf16.msra.mxu0 0
      %1904 = vmatprep.subr.bf16.mxu0 0
      %1905 = vmatpush1.bf16.msra.mxu0 0
      %1906 = vmatprep.subr.bf16.mxu0 0
      %1907 = vmatpush1.bf16.msra.mxu0 0
      %1908 = vmatprep.subr.bf16.mxu0 0
      %1909 = vmatpush1.bf16.msra.mxu0 0
      %1910 = vmatprep.subr.bf16.mxu0 0
      %1911 = vmatpush1.bf16.msra.mxu0 0
      %1912 = vmatprep.subr.bf16.mxu0 0
      %1913 = vmatpush1.bf16.msra.mxu0 0
      %1914 = vmatprep.subr.bf16.mxu0 0
      %1915 = vmatpush1.bf16.msra.mxu0 0
      %1916 = vmatprep.subr.bf16.mxu0 0
      %1917 = vmatpush1.bf16.msra.mxu0 0
      %1918 = vmatprep.subr.bf16.mxu0 0
      %1919 = vmatpush1.bf16.msra.mxu0 0
      %1920 = vmatprep.subr.bf16.mxu0 0
      %1921 = vmatpush1.bf16.msra.mxu0 0
      %1922 = vmatprep.mubr.bf16.mxu0 0
      %1923 = vmatmul.mubr.bf16.gmra.mrb[0].mxu0 %v1867
      %v1924 = vpop.f32.mrb[0].mxu0
      %v1925 = vadd.f32 0.0, %v1924
      %v1926 = vpop.f32.mrb[0].mxu0
      %v1927 = vpop.f32.mrb[0].mxu0
      %v1928 = vadd.f32 0.0, %v1927
      %v1929 = vpop.f32.mrb[0].mxu0
      %1930 = vmatprep.mubr.bf16.mxu0 0
      %1931 = vmatmul.mubr.bf16.gmra.mrb[0].mxu0 %v1870
      %v1932 = vpop.f32.mrb[0].mxu0
      %v1933 = vadd.f32 0.0, %v1932
      %v1934 = vpop.f32.mrb[0].mxu0
      %v1935 = vpop.f32.mrb[0].mxu0
      %v1936 = vadd.f32 0.0, %v1935
      %v1937 = vpop.f32.mrb[0].mxu0
      %1938 = vmatprep.mubr.bf16.mxu0 0
      %1939 = vmatmul.mubr.bf16.gmra.mrb[0].mxu0 %v1873
      %v1940 = vpop.f32.mrb[0].mxu0
      %v1941 = vadd.f32 0.0, %v1940
      %v1942 = vpop.f32.mrb[0].mxu0
      %v1943 = vpop.f32.mrb[0].mxu0
      %v1944 = vadd.f32 0.0, %v1943
      %v1945 = vpop.f32.mrb[0].mxu0
      %1946 = vmatprep.mubr.bf16.mxu0 0
      %1947 = vmatmul.mubr.bf16.gmra.mrb[0].mxu0 %v1876
      %v1948 = vpop.f32.mrb[0].mxu0
      %v1949 = vadd.f32 0.0, %v1948
      %v1950 = vpop.f32.mrb[0].mxu0
      %v1951 = vpop.f32.mrb[0].mxu0
      %v1952 = vadd.f32 0.0, %v1951
      %v1953 = vpop.f32.mrb[0].mxu0
      %1954 = vmatprep.mubr.bf16.mxu0 0
      %1955 = vmatmul.mubr.bf16.gmra.mrb[0].mxu0 %v1879
      %v1956 = vpop.f32.mrb[0].mxu0
      %v1957 = vadd.f32 0.0, %v1956
      %v1958 = vpop.f32.mrb[0].mxu0
      %v1959 = vpop.f32.mrb[0].mxu0
      %v1960 = vadd.f32 0.0, %v1959
      %v1961 = vpop.f32.mrb[0].mxu0
      %1962 = vmatprep.mubr.bf16.mxu0 0
      %1963 = vmatmul.mubr.bf16.gmra.mrb[0].mxu0 %v1882
      %v1964 = vpop.f32.mrb[0].mxu0
      %v1965 = vadd.f32 0.0, %v1964
      %v1966 = vpop.f32.mrb[0].mxu0
      %v1967 = vpop.f32.mrb[0].mxu0
      %v1968 = vadd.f32 0.0, %v1967
      %v1969 = vpop.f32.mrb[0].mxu0
      %1970 = vmatprep.mubr.bf16.mxu0 0
      %1971 = vmatmul.mubr.bf16.gmra.mrb[0].mxu0 %v1885
      %v1972 = vpop.f32.mrb[0].mxu0
      %v1973 = vadd.f32 0.0, %v1972
      %v1974 = vpop.f32.mrb[0].mxu0
      %v1975 = vpop.f32.mrb[0].mxu0
      %v1976 = vadd.f32 0.0, %v1975
      %v1977 = vpop.f32.mrb[0].mxu0
      %1978 = vmatprep.mubr.bf16.mxu0 0
      %1979 = vmatmul.mubr.bf16.gmra.mrb[0].mxu0 %v1888
      %v1980 = vpop.f32.mrb[0].mxu0
      %v1981 = vadd.f32 0.0, %v1980
      %v1982 = vpop.f32.mrb[0].mxu0
      %v1983 = vpop.f32.mrb[0].mxu0
      %v1984 = vadd.f32 0.0, %v1983
      %v1985 = vpop.f32.mrb[0].mxu0
      %1986 = vdwg.mxu0
      %1987 = vset.pattern.permute.xlu0 3
      %1988 = vperm.xlu0 %1987, %v187
      %v1989 = vpop.permute.xlu0 %1988
      %1991 = vset.pattern.permute.xlu0 3
      %1992 = vperm.xlu0 %1991, %v188
      %v1993 = vpop.permute.xlu0 %1992
      %1995 = vset.pattern.permute.xlu0 3
      %1996 = vperm.xlu0 %1995, %v189
      %v1997 = vpop.permute.xlu0 %1996
      %1999 = vset.pattern.permute.xlu0 3
      %2000 = vperm.xlu0 %1999, %v190
      %v2001 = vpop.permute.xlu0 %2000
      %2003 = vset.pattern.permute.xlu0 3
      %2004 = vperm.xlu0 %2003, %v191
      %v2005 = vpop.permute.xlu0 %2004
      %2007 = vset.pattern.permute.xlu0 3
      %2008 = vperm.xlu0 %2007, %v192
      %v2009 = vpop.permute.xlu0 %2008
      %2011 = vset.pattern.permute.xlu0 3
      %2012 = vperm.xlu0 %2011, %v193
      %v2013 = vpop.permute.xlu0 %2012
      %2015 = vset.pattern.permute.xlu0 3
      %2016 = vperm.xlu0 %2015, %v194
      %v2017 = vpop.permute.xlu0 %2016
      %2019 = vset.pattern.permute.xlu0 3
      %2020 = vperm.xlu0 %2019, %v195
      %v2021 = vpop.permute.xlu0 %2020
      %2023 = vset.pattern.permute.xlu0 3
      %2024 = vperm.xlu0 %2023, %v196
      %v2025 = vpop.permute.xlu0 %2024
      %2027 = vset.pattern.permute.xlu0 3
      %2028 = vperm.xlu0 %2027, %v197
      %v2029 = vpop.permute.xlu0 %2028
      %2031 = vset.pattern.permute.xlu0 3
      %2032 = vperm.xlu0 %2031, %v198
      %v2033 = vpop.permute.xlu0 %2032
      %2035 = vset.pattern.permute.xlu0 3
      %2036 = vperm.xlu0 %2035, %v199
      %v2037 = vpop.permute.xlu0 %2036
      %2039 = vset.pattern.permute.xlu0 3
      %2040 = vperm.xlu0 %2039, %v200
      %v2041 = vpop.permute.xlu0 %2040
      %2043 = vset.pattern.permute.xlu0 3
      %2044 = vperm.xlu0 %2043, %v201
      %v2045 = vpop.permute.xlu0 %2044
      %2047 = vset.pattern.permute.xlu0 3
      %2048 = vperm.xlu0 %2047, %v202
      %v2049 = vpop.permute.xlu0 %2048
      %v2051 = vmul.f32 %v1989, %v286
      %v2052 = vmul.f32 %v1993, %v286
      %v2053 = vmul.f32 %v1997, %v286
      %v2054 = vmul.f32 %v2001, %v286
      %v2055 = vmul.f32 %v2005, %v286
      %v2056 = vmul.f32 %v2009, %v286
      %v2057 = vmul.f32 %v2013, %v286
      %v2058 = vmul.f32 %v2017, %v286
      %v2059 = vmul.f32 %v2021, %v286
      %v2060 = vmul.f32 %v2025, %v286
      %v2061 = vmul.f32 %v2029, %v286
      %v2062 = vmul.f32 %v2033, %v286
      %v2063 = vmul.f32 %v2037, %v286
      %v2064 = vmul.f32 %v2041, %v286
      %v2065 = vmul.f32 %v2045, %v286
      %v2066 = vmul.f32 %v2049, %v286
      %v2067 = vadd.f32 %v2051, %v306
      %v2068 = vadd.f32 %v2052, %v306
      %v2069 = vadd.f32 %v2053, %v306
      %v2070 = vadd.f32 %v2054, %v306
      %v2071 = vadd.f32 %v2055, %v306
      %v2072 = vadd.f32 %v2056, %v306
      %v2073 = vadd.f32 %v2057, %v306
      %v2074 = vadd.f32 %v2058, %v306
      %v2075 = vadd.f32 %v2059, %v306
      %v2076 = vadd.f32 %v2060, %v306
      %v2077 = vadd.f32 %v2061, %v306
      %v2078 = vadd.f32 %v2062, %v306
      %v2079 = vadd.f32 %v2063, %v306
      %v2080 = vadd.f32 %v2064, %v306
      %v2081 = vadd.f32 %v2065, %v306
      %v2082 = vadd.f32 %v2066, %v306
      %v2083 = vadd.f32 %v2067, %v1925
      %v2084 = vadd.f32 %v2068, %v1928
      %v2085 = vadd.f32 %v2069, %v1933
      %v2086 = vadd.f32 %v2070, %v1936
      %v2087 = vadd.f32 %v2071, %v1941
      %v2088 = vadd.f32 %v2072, %v1944
      %v2089 = vadd.f32 %v2073, %v1949
      %v2090 = vadd.f32 %v2074, %v1952
      %v2091 = vadd.f32 %v2075, %v1957
      %v2092 = vadd.f32 %v2076, %v1960
      %v2093 = vadd.f32 %v2077, %v1965
      %v2094 = vadd.f32 %v2078, %v1968
      %v2095 = vadd.f32 %v2079, %v1973
      %v2096 = vadd.f32 %v2080, %v1976
      %v2097 = vadd.f32 %v2081, %v1981
      %v2098 = vadd.f32 %v2082, %v1984
      %v2099 = vtanh.pop %v2083
      %v2100 = vtanh.pop %v2084
      %v2101 = vtanh.pop %v2085
      %v2102 = vtanh.pop %v2086
      %v2103 = vtanh.pop %v2087
      %v2104 = vtanh.pop %v2088
      %v2105 = vtanh.pop %v2089
      %v2106 = vtanh.pop %v2090
      %v2107 = vtanh.pop %v2091
      %v2108 = vtanh.pop %v2092
      %v2109 = vtanh.pop %v2093
      %v2110 = vtanh.pop %v2094
      %v2111 = vtanh.pop %v2095
      %v2112 = vtanh.pop %v2096
      %v2113 = vtanh.pop %v2097
      %v2114 = vtanh.pop %v2098
      %v2115 = vmul.f32 %v2099, 0.5
      %v2116 = vmul.f32 %v2100, 0.5
      %v2117 = vmul.f32 %v2101, 0.5
      %v2118 = vmul.f32 %v2102, 0.5
      %v2119 = vmul.f32 %v2103, 0.5
      %v2120 = vmul.f32 %v2104, 0.5
      %v2121 = vmul.f32 %v2105, 0.5
      %v2122 = vmul.f32 %v2106, 0.5
      %v2123 = vmul.f32 %v2107, 0.5
      %v2124 = vmul.f32 %v2108, 0.5
      %v2125 = vmul.f32 %v2109, 0.5
      %v2126 = vmul.f32 %v2110, 0.5
      %v2127 = vmul.f32 %v2111, 0.5
      %v2128 = vmul.f32 %v2112, 0.5
      %v2129 = vmul.f32 %v2113, 0.5
      %v2130 = vmul.f32 %v2114, 0.5
      %v2131 = vadd.f32 %v2115, 0.5
      %v2132 = vadd.f32 %v2116, 0.5
      %v2133 = vadd.f32 %v2117, 0.5
      %v2134 = vadd.f32 %v2118, 0.5
      %v2135 = vadd.f32 %v2119, 0.5
      %v2136 = vadd.f32 %v2120, 0.5
      %v2137 = vadd.f32 %v2121, 0.5
      %v2138 = vadd.f32 %v2122, 0.5
      %v2139 = vadd.f32 %v2123, 0.5
      %v2140 = vadd.f32 %v2124, 0.5
      %v2141 = vadd.f32 %v2125, 0.5
      %v2142 = vadd.f32 %v2126, 0.5
      %v2143 = vadd.f32 %v2127, 0.5
      %v2144 = vadd.f32 %v2128, 0.5
      %v2145 = vadd.f32 %v2129, 0.5
      %v2146 = vadd.f32 %v2130, 0.5
      %v2147 = vmul.f32 %v2131, %v1722
      %v2148 = vmul.f32 %v2132, %v1723
      %v2149 = vmul.f32 %v2133, %v1724
      %v2150 = vmul.f32 %v2134, %v1725
      %v2151 = vmul.f32 %v2135, %v1726
      %v2152 = vmul.f32 %v2136, %v1727
      %v2153 = vmul.f32 %v2137, %v1728
      %v2154 = vmul.f32 %v2138, %v1729
      %v2155 = vmul.f32 %v2139, %v1730
      %v2156 = vmul.f32 %v2140, %v1731
      %v2157 = vmul.f32 %v2141, %v1732
      %v2158 = vmul.f32 %v2142, %v1733
      %v2159 = vmul.f32 %v2143, %v1734
      %v2160 = vmul.f32 %v2144, %v1735
      %v2161 = vmul.f32 %v2145, %v1736
      %v2162 = vmul.f32 %v2146, %v1737
      %2179 = vrot.lane.b32.xlu0 %v2099, 64
      %v2180 = vpop.permute.xlu0 %2179
      %2181 = vrot.lane.b32.xlu0 %v2100, 64
      %v2182 = vpop.permute.xlu0 %2181
      %2183 = vrot.lane.b32.xlu0 %v2101, 64
      %v2184 = vpop.permute.xlu0 %2183
      %2185 = vrot.lane.b32.xlu0 %v2102, 64
      %v2186 = vpop.permute.xlu0 %2185
      %2187 = vrot.lane.b32.xlu0 %v2103, 64
      %v2188 = vpop.permute.xlu0 %2187
      %2189 = vrot.lane.b32.xlu0 %v2104, 64
      %v2190 = vpop.permute.xlu0 %2189
      %2191 = vrot.lane.b32.xlu0 %v2105, 64
      %v2192 = vpop.permute.xlu0 %2191
      %2193 = vrot.lane.b32.xlu0 %v2106, 64
      %v2194 = vpop.permute.xlu0 %2193
      %2195 = vrot.lane.b32.xlu0 %v2107, 64
      %v2196 = vpop.permute.xlu0 %2195
      %2197 = vrot.lane.b32.xlu0 %v2108, 64
      %v2198 = vpop.permute.xlu0 %2197
      %2199 = vrot.lane.b32.xlu0 %v2109, 64
      %v2200 = vpop.permute.xlu0 %2199
      %2201 = vrot.lane.b32.xlu0 %v2110, 64
      %v2202 = vpop.permute.xlu0 %2201
      %2203 = vrot.lane.b32.xlu0 %v2111, 64
      %v2204 = vpop.permute.xlu0 %2203
      %2205 = vrot.lane.b32.xlu0 %v2112, 64
      %v2206 = vpop.permute.xlu0 %2205
      %2207 = vrot.lane.b32.xlu0 %v2113, 64
      %v2208 = vpop.permute.xlu0 %2207
      %2209 = vrot.lane.b32.xlu0 %v2114, 64
      %v2210 = vpop.permute.xlu0 %2209
      %v2227 = vmul.f32 %v2131, %v2180
      %v2228 = vmul.f32 %v2132, %v2182
      %v2229 = vmul.f32 %v2133, %v2184
      %v2230 = vmul.f32 %v2134, %v2186
      %v2231 = vmul.f32 %v2135, %v2188
      %v2232 = vmul.f32 %v2136, %v2190
      %v2233 = vmul.f32 %v2137, %v2192
      %v2234 = vmul.f32 %v2138, %v2194
      %v2235 = vmul.f32 %v2139, %v2196
      %v2236 = vmul.f32 %v2140, %v2198
      %v2237 = vmul.f32 %v2141, %v2200
      %v2238 = vmul.f32 %v2142, %v2202
      %v2239 = vmul.f32 %v2143, %v2204
      %v2240 = vmul.f32 %v2144, %v2206
      %v2241 = vmul.f32 %v2145, %v2208
      %v2242 = vmul.f32 %v2146, %v2210
      %2259 = vrot.lane.b32.xlu0 %v2227, 32
      %v2260 = vpop.permute.xlu0 %2259
      %2261 = vrot.lane.b32.xlu0 %v2228, 32
      %v2262 = vpop.permute.xlu0 %2261
      %2263 = vrot.lane.b32.xlu0 %v2229, 32
      %v2264 = vpop.permute.xlu0 %2263
      %2265 = vrot.lane.b32.xlu0 %v2230, 32
      %v2266 = vpop.permute.xlu0 %2265
      %2267 = vrot.lane.b32.xlu0 %v2231, 32
      %v2268 = vpop.permute.xlu0 %2267
      %2269 = vrot.lane.b32.xlu0 %v2232, 32
      %v2270 = vpop.permute.xlu0 %2269
      %2271 = vrot.lane.b32.xlu0 %v2233, 32
      %v2272 = vpop.permute.xlu0 %2271
      %2273 = vrot.lane.b32.xlu0 %v2234, 32
      %v2274 = vpop.permute.xlu0 %2273
      %2275 = vrot.lane.b32.xlu0 %v2235, 32
      %v2276 = vpop.permute.xlu0 %2275
      %2277 = vrot.lane.b32.xlu0 %v2236, 32
      %v2278 = vpop.permute.xlu0 %2277
      %2279 = vrot.lane.b32.xlu0 %v2237, 32
      %v2280 = vpop.permute.xlu0 %2279
      %2281 = vrot.lane.b32.xlu0 %v2238, 32
      %v2282 = vpop.permute.xlu0 %2281
      %2283 = vrot.lane.b32.xlu0 %v2239, 32
      %v2284 = vpop.permute.xlu0 %2283
      %2285 = vrot.lane.b32.xlu0 %v2240, 32
      %v2286 = vpop.permute.xlu0 %2285
      %2287 = vrot.lane.b32.xlu0 %v2241, 32
      %v2288 = vpop.permute.xlu0 %2287
      %2289 = vrot.lane.b32.xlu0 %v2242, 32
      %v2290 = vpop.permute.xlu0 %2289
      %v2307 = vadd.f32 %v2147, %v2260
      %v2308 = vadd.f32 %v2148, %v2262
      %v2309 = vadd.f32 %v2149, %v2264
      %v2310 = vadd.f32 %v2150, %v2266
      %v2311 = vadd.f32 %v2151, %v2268
      %v2312 = vadd.f32 %v2152, %v2270
      %v2313 = vadd.f32 %v2153, %v2272
      %v2314 = vadd.f32 %v2154, %v2274
      %v2315 = vadd.f32 %v2155, %v2276
      %v2316 = vadd.f32 %v2156, %v2278
      %v2317 = vadd.f32 %v2157, %v2280
      %v2318 = vadd.f32 %v2158, %v2282
      %v2319 = vadd.f32 %v2159, %v2284
      %v2320 = vadd.f32 %v2160, %v2286
      %v2321 = vadd.f32 %v2161, %v2288
      %v2322 = vadd.f32 %v2162, %v2290
      %v2323 = vtanh.pop %v2307
      %v2324 = vtanh.pop %v2308
      %v2325 = vtanh.pop %v2309
      %v2326 = vtanh.pop %v2310
      %v2327 = vtanh.pop %v2311
      %v2328 = vtanh.pop %v2312
      %v2329 = vtanh.pop %v2313
      %v2330 = vtanh.pop %v2314
      %v2331 = vtanh.pop %v2315
      %v2332 = vtanh.pop %v2316
      %v2333 = vtanh.pop %v2317
      %v2334 = vtanh.pop %v2318
      %v2335 = vtanh.pop %v2319
      %v2336 = vtanh.pop %v2320
      %v2337 = vtanh.pop %v2321
      %v2338 = vtanh.pop %v2322
      %2355 = vrot.lane.b32.xlu0 %v2323, 64
      %v2356 = vpop.permute.xlu0 %2355
      %2357 = vrot.lane.b32.xlu0 %v2324, 64
      %v2358 = vpop.permute.xlu0 %2357
      %2359 = vrot.lane.b32.xlu0 %v2325, 64
      %v2360 = vpop.permute.xlu0 %2359
      %2361 = vrot.lane.b32.xlu0 %v2326, 64
      %v2362 = vpop.permute.xlu0 %2361
      %2363 = vrot.lane.b32.xlu0 %v2327, 64
      %v2364 = vpop.permute.xlu0 %2363
      %2365 = vrot.lane.b32.xlu0 %v2328, 64
      %v2366 = vpop.permute.xlu0 %2365
      %2367 = vrot.lane.b32.xlu0 %v2329, 64
      %v2368 = vpop.permute.xlu0 %2367
      %2369 = vrot.lane.b32.xlu0 %v2330, 64
      %v2370 = vpop.permute.xlu0 %2369
      %2371 = vrot.lane.b32.xlu0 %v2331, 64
      %v2372 = vpop.permute.xlu0 %2371
      %2373 = vrot.lane.b32.xlu0 %v2332, 64
      %v2374 = vpop.permute.xlu0 %2373
      %2375 = vrot.lane.b32.xlu0 %v2333, 64
      %v2376 = vpop.permute.xlu0 %2375
      %2377 = vrot.lane.b32.xlu0 %v2334, 64
      %v2378 = vpop.permute.xlu0 %2377
      %2379 = vrot.lane.b32.xlu0 %v2335, 64
      %v2380 = vpop.permute.xlu0 %2379
      %2381 = vrot.lane.b32.xlu0 %v2336, 64
      %v2382 = vpop.permute.xlu0 %2381
      %2383 = vrot.lane.b32.xlu0 %v2337, 64
      %v2384 = vpop.permute.xlu0 %2383
      %2385 = vrot.lane.b32.xlu0 %v2338, 64
      %v2386 = vpop.permute.xlu0 %2385
      %v2403 = vmul.f32 %v2131, %v2356
      %v2404 = vmul.f32 %v2132, %v2358
      %v2405 = vmul.f32 %v2133, %v2360
      %v2406 = vmul.f32 %v2134, %v2362
      %v2407 = vmul.f32 %v2135, %v2364
      %v2408 = vmul.f32 %v2136, %v2366
      %v2409 = vmul.f32 %v2137, %v2368
      %v2410 = vmul.f32 %v2138, %v2370
      %v2411 = vmul.f32 %v2139, %v2372
      %v2412 = vmul.f32 %v2140, %v2374
      %v2413 = vmul.f32 %v2141, %v2376
      %v2414 = vmul.f32 %v2142, %v2378
      %v2415 = vmul.f32 %v2143, %v2380
      %v2416 = vmul.f32 %v2144, %v2382
      %v2417 = vmul.f32 %v2145, %v2384
      %v2418 = vmul.f32 %v2146, %v2386
      %v2419 = vpack.c.bf16 %v2404, %v2403
      %v2420 = vpack.c.bf16 %v2406, %v2405
      %v2421 = vpack.c.bf16 %v2408, %v2407
      %v2422 = vpack.c.bf16 %v2410, %v2409
      %v2423 = vpack.c.bf16 %v2412, %v2411
      %v2424 = vpack.c.bf16 %v2414, %v2413
      %v2425 = vpack.c.bf16 %v2416, %v2415
      %v2426 = vpack.c.bf16 %v2418, %v2417
      %2435 = vrot.lane.b32.xlu0 %v2419, 32
      %v2436 = vpop.permute.xlu0 %2435
      %2437 = vrot.lane.b32.xlu0 %v2420, 32
      %v2438 = vpop.permute.xlu0 %2437
      %2439 = vrot.lane.b32.xlu0 %v2421, 32
      %v2440 = vpop.permute.xlu0 %2439
      %2441 = vrot.lane.b32.xlu0 %v2422, 32
      %v2442 = vpop.permute.xlu0 %2441
      %2443 = vrot.lane.b32.xlu0 %v2423, 32
      %v2444 = vpop.permute.xlu0 %2443
      %2445 = vrot.lane.b32.xlu0 %v2424, 32
      %v2446 = vpop.permute.xlu0 %2445
      %2447 = vrot.lane.b32.xlu0 %v2425, 32
      %v2448 = vpop.permute.xlu0 %2447
      %2449 = vrot.lane.b32.xlu0 %v2426, 32
      %v2450 = vpop.permute.xlu0 %2449
      %v2452 = vsel %vm695, %v2436, 0
      %v2455 = vsel %vm695, %v2438, 0
      %v2458 = vsel %vm695, %v2440, 0
      %v2461 = vsel %vm695, %v2442, 0
      %v2464 = vsel %vm695, %v2444, 0
      %v2467 = vsel %vm695, %v2446, 0
      %v2470 = vsel %vm695, %v2448, 0
      %v2473 = vsel %vm695, %v2450, 0
      %2475 = vmatprep.subr.bf16.mxu0 %v688
      %2476 = vmatpush1.bf16.msra.mxu0 %v687
      %2477 = vmatprep.subr.bf16.mxu0 %v690
      %2478 = vmatpush1.bf16.msra.mxu0 %v689
      %2479 = vmatprep.subr.bf16.mxu0 0
      %2480 = vmatpush1.bf16.msra.mxu0 0
      %2481 = vmatprep.subr.bf16.mxu0 0
      %2482 = vmatpush1.bf16.msra.mxu0 0
      %2483 = vmatprep.subr.bf16.mxu0 0
      %2484 = vmatpush1.bf16.msra.mxu0 0
      %2485 = vmatprep.subr.bf16.mxu0 0
      %2486 = vmatpush1.bf16.msra.mxu0 0
      %2487 = vmatprep.subr.bf16.mxu0 0
      %2488 = vmatpush1.bf16.msra.mxu0 0
      %2489 = vmatprep.subr.bf16.mxu0 0
      %2490 = vmatpush1.bf16.msra.mxu0 0
      %2491 = vmatprep.subr.bf16.mxu0 0
      %2492 = vmatpush1.bf16.msra.mxu0 0
      %2493 = vmatprep.subr.bf16.mxu0 0
      %2494 = vmatpush1.bf16.msra.mxu0 0
      %2495 = vmatprep.subr.bf16.mxu0 0
      %2496 = vmatpush1.bf16.msra.mxu0 0
      %2497 = vmatprep.subr.bf16.mxu0 0
      %2498 = vmatpush1.bf16.msra.mxu0 0
      %2499 = vmatprep.subr.bf16.mxu0 0
      %2500 = vmatpush1.bf16.msra.mxu0 0
      %2501 = vmatprep.subr.bf16.mxu0 0
      %2502 = vmatpush1.bf16.msra.mxu0 0
      %2503 = vmatprep.subr.bf16.mxu0 0
      %2504 = vmatpush1.bf16.msra.mxu0 0
      %2505 = vmatprep.subr.bf16.mxu0 0
      %2506 = vmatpush1.bf16.msra.mxu0 0
      %2507 = vmatprep.mubr.bf16.mxu0 0
      %2508 = vmatmul.mubr.bf16.gmra.mrb[0].mxu0 %v2452
      %v2509 = vpop.f32.mrb[0].mxu0
      %v2510 = vadd.f32 0.0, %v2509
      %v2511 = vpop.f32.mrb[0].mxu0
      %v2512 = vpop.f32.mrb[0].mxu0
      %v2513 = vadd.f32 0.0, %v2512
      %v2514 = vpop.f32.mrb[0].mxu0
      %2515 = vmatprep.mubr.bf16.mxu0 0
      %2516 = vmatmul.mubr.bf16.gmra.mrb[0].mxu0 %v2455
      %v2517 = vpop.f32.mrb[0].mxu0
      %v2518 = vadd.f32 0.0, %v2517
      %v2519 = vpop.f32.mrb[0].mxu0
      %v2520 = vpop.f32.mrb[0].mxu0
      %v2521 = vadd.f32 0.0, %v2520
      %v2522 = vpop.f32.mrb[0].mxu0
      %2523 = vmatprep.mubr.bf16.mxu0 0
      %2524 = vmatmul.mubr.bf16.gmra.mrb[0].mxu0 %v2458
      %v2525 = vpop.f32.mrb[0].mxu0
      %v2526 = vadd.f32 0.0, %v2525
      %v2527 = vpop.f32.mrb[0].mxu0
      %v2528 = vpop.f32.mrb[0].mxu0
      %v2529 = vadd.f32 0.0, %v2528
      %v2530 = vpop.f32.mrb[0].mxu0
      %2531 = vmatprep.mubr.bf16.mxu0 0
      %2532 = vmatmul.mubr.bf16.gmra.mrb[0].mxu0 %v2461
      %v2533 = vpop.f32.mrb[0].mxu0
      %v2534 = vadd.f32 0.0, %v2533
      %v2535 = vpop.f32.mrb[0].mxu0
      %v2536 = vpop.f32.mrb[0].mxu0
      %v2537 = vadd.f32 0.0, %v2536
      %v2538 = vpop.f32.mrb[0].mxu0
      %2539 = vmatprep.mubr.bf16.mxu0 0
      %2540 = vmatmul.mubr.bf16.gmra.mrb[0].mxu0 %v2464
      %v2541 = vpop.f32.mrb[0].mxu0
      %v2542 = vadd.f32 0.0, %v2541
      %v2543 = vpop.f32.mrb[0].mxu0
      %v2544 = vpop.f32.mrb[0].mxu0
      %v2545 = vadd.f32 0.0, %v2544
      %v2546 = vpop.f32.mrb[0].mxu0
      %2547 = vmatprep.mubr.bf16.mxu0 0
      %2548 = vmatmul.mubr.bf16.gmra.mrb[0].mxu0 %v2467
      %v2549 = vpop.f32.mrb[0].mxu0
      %v2550 = vadd.f32 0.0, %v2549
      %v2551 = vpop.f32.mrb[0].mxu0
      %v2552 = vpop.f32.mrb[0].mxu0
      %v2553 = vadd.f32 0.0, %v2552
      %v2554 = vpop.f32.mrb[0].mxu0
      %2555 = vmatprep.mubr.bf16.mxu0 0
      %2556 = vmatmul.mubr.bf16.gmra.mrb[0].mxu0 %v2470
      %v2557 = vpop.f32.mrb[0].mxu0
      %v2558 = vadd.f32 0.0, %v2557
      %v2559 = vpop.f32.mrb[0].mxu0
      %v2560 = vpop.f32.mrb[0].mxu0
      %v2561 = vadd.f32 0.0, %v2560
      %v2562 = vpop.f32.mrb[0].mxu0
      %2563 = vmatprep.mubr.bf16.mxu0 0
      %2564 = vmatmul.mubr.bf16.gmra.mrb[0].mxu0 %v2473
      %v2565 = vpop.f32.mrb[0].mxu0
      %v2566 = vadd.f32 0.0, %v2565
      %v2567 = vpop.f32.mrb[0].mxu0
      %v2568 = vpop.f32.mrb[0].mxu0
      %v2569 = vadd.f32 0.0, %v2568
      %v2570 = vpop.f32.mrb[0].mxu0
      %2571 = vdwg.mxu0
      %2572 = vset.pattern.permute.xlu0 4
      %2573 = vperm.xlu0 %2572, %v187
      %v2574 = vpop.permute.xlu0 %2573
      %2576 = vset.pattern.permute.xlu0 4
      %2577 = vperm.xlu0 %2576, %v188
      %v2578 = vpop.permute.xlu0 %2577
      %2580 = vset.pattern.permute.xlu0 4
      %2581 = vperm.xlu0 %2580, %v189
      %v2582 = vpop.permute.xlu0 %2581
      %2584 = vset.pattern.permute.xlu0 4
      %2585 = vperm.xlu0 %2584, %v190
      %v2586 = vpop.permute.xlu0 %2585
      %2588 = vset.pattern.permute.xlu0 4
      %2589 = vperm.xlu0 %2588, %v191
      %v2590 = vpop.permute.xlu0 %2589
      %2592 = vset.pattern.permute.xlu0 4
      %2593 = vperm.xlu0 %2592, %v192
      %v2594 = vpop.permute.xlu0 %2593
      %2596 = vset.pattern.permute.xlu0 4
      %2597 = vperm.xlu0 %2596, %v193
      %v2598 = vpop.permute.xlu0 %2597
      %2600 = vset.pattern.permute.xlu0 4
      %2601 = vperm.xlu0 %2600, %v194
      %v2602 = vpop.permute.xlu0 %2601
      %2604 = vset.pattern.permute.xlu0 4
      %2605 = vperm.xlu0 %2604, %v195
      %v2606 = vpop.permute.xlu0 %2605
      %2608 = vset.pattern.permute.xlu0 4
      %2609 = vperm.xlu0 %2608, %v196
      %v2610 = vpop.permute.xlu0 %2609
      %2612 = vset.pattern.permute.xlu0 4
      %2613 = vperm.xlu0 %2612, %v197
      %v2614 = vpop.permute.xlu0 %2613
      %2616 = vset.pattern.permute.xlu0 4
      %2617 = vperm.xlu0 %2616, %v198
      %v2618 = vpop.permute.xlu0 %2617
      %2620 = vset.pattern.permute.xlu0 4
      %2621 = vperm.xlu0 %2620, %v199
      %v2622 = vpop.permute.xlu0 %2621
      %2624 = vset.pattern.permute.xlu0 4
      %2625 = vperm.xlu0 %2624, %v200
      %v2626 = vpop.permute.xlu0 %2625
      %2628 = vset.pattern.permute.xlu0 4
      %2629 = vperm.xlu0 %2628, %v201
      %v2630 = vpop.permute.xlu0 %2629
      %2632 = vset.pattern.permute.xlu0 4
      %2633 = vperm.xlu0 %2632, %v202
      %v2634 = vpop.permute.xlu0 %2633
      %v2636 = vmul.f32 %v2574, %v286
      %v2637 = vmul.f32 %v2578, %v286
      %v2638 = vmul.f32 %v2582, %v286
      %v2639 = vmul.f32 %v2586, %v286
      %v2640 = vmul.f32 %v2590, %v286
      %v2641 = vmul.f32 %v2594, %v286
      %v2642 = vmul.f32 %v2598, %v286
      %v2643 = vmul.f32 %v2602, %v286
      %v2644 = vmul.f32 %v2606, %v286
      %v2645 = vmul.f32 %v2610, %v286
      %v2646 = vmul.f32 %v2614, %v286
      %v2647 = vmul.f32 %v2618, %v286
      %v2648 = vmul.f32 %v2622, %v286
      %v2649 = vmul.f32 %v2626, %v286
      %v2650 = vmul.f32 %v2630, %v286
      %v2651 = vmul.f32 %v2634, %v286
      %v2652 = vadd.f32 %v2636, %v306
      %v2653 = vadd.f32 %v2637, %v306
      %v2654 = vadd.f32 %v2638, %v306
      %v2655 = vadd.f32 %v2639, %v306
      %v2656 = vadd.f32 %v2640, %v306
      %v2657 = vadd.f32 %v2641, %v306
      %v2658 = vadd.f32 %v2642, %v306
      %v2659 = vadd.f32 %v2643, %v306
      %v2660 = vadd.f32 %v2644, %v306
      %v2661 = vadd.f32 %v2645, %v306
      %v2662 = vadd.f32 %v2646, %v306
      %v2663 = vadd.f32 %v2647, %v306
      %v2664 = vadd.f32 %v2648, %v306
      %v2665 = vadd.f32 %v2649, %v306
      %v2666 = vadd.f32 %v2650, %v306
      %v2667 = vadd.f32 %v2651, %v306
      %v2668 = vadd.f32 %v2652, %v2510
      %v2669 = vadd.f32 %v2653, %v2513
      %v2670 = vadd.f32 %v2654, %v2518
      %v2671 = vadd.f32 %v2655, %v2521
      %v2672 = vadd.f32 %v2656, %v2526
      %v2673 = vadd.f32 %v2657, %v2529
      %v2674 = vadd.f32 %v2658, %v2534
      %v2675 = vadd.f32 %v2659, %v2537
      %v2676 = vadd.f32 %v2660, %v2542
      %v2677 = vadd.f32 %v2661, %v2545
      %v2678 = vadd.f32 %v2662, %v2550
      %v2679 = vadd.f32 %v2663, %v2553
      %v2680 = vadd.f32 %v2664, %v2558
      %v2681 = vadd.f32 %v2665, %v2561
      %v2682 = vadd.f32 %v2666, %v2566
      %v2683 = vadd.f32 %v2667, %v2569
      %v2684 = vtanh.pop %v2668
      %v2685 = vtanh.pop %v2669
      %v2686 = vtanh.pop %v2670
      %v2687 = vtanh.pop %v2671
      %v2688 = vtanh.pop %v2672
      %v2689 = vtanh.pop %v2673
      %v2690 = vtanh.pop %v2674
      %v2691 = vtanh.pop %v2675
      %v2692 = vtanh.pop %v2676
      %v2693 = vtanh.pop %v2677
      %v2694 = vtanh.pop %v2678
      %v2695 = vtanh.pop %v2679
      %v2696 = vtanh.pop %v2680
      %v2697 = vtanh.pop %v2681
      %v2698 = vtanh.pop %v2682
      %v2699 = vtanh.pop %v2683
      %v2700 = vmul.f32 %v2684, 0.5
      %v2701 = vmul.f32 %v2685, 0.5
      %v2702 = vmul.f32 %v2686, 0.5
      %v2703 = vmul.f32 %v2687, 0.5
      %v2704 = vmul.f32 %v2688, 0.5
      %v2705 = vmul.f32 %v2689, 0.5
      %v2706 = vmul.f32 %v2690, 0.5
      %v2707 = vmul.f32 %v2691, 0.5
      %v2708 = vmul.f32 %v2692, 0.5
      %v2709 = vmul.f32 %v2693, 0.5
      %v2710 = vmul.f32 %v2694, 0.5
      %v2711 = vmul.f32 %v2695, 0.5
      %v2712 = vmul.f32 %v2696, 0.5
      %v2713 = vmul.f32 %v2697, 0.5
      %v2714 = vmul.f32 %v2698, 0.5
      %v2715 = vmul.f32 %v2699, 0.5
      %v2716 = vadd.f32 %v2700, 0.5
      %v2717 = vadd.f32 %v2701, 0.5
      %v2718 = vadd.f32 %v2702, 0.5
      %v2719 = vadd.f32 %v2703, 0.5
      %v2720 = vadd.f32 %v2704, 0.5
      %v2721 = vadd.f32 %v2705, 0.5
      %v2722 = vadd.f32 %v2706, 0.5
      %v2723 = vadd.f32 %v2707, 0.5
      %v2724 = vadd.f32 %v2708, 0.5
      %v2725 = vadd.f32 %v2709, 0.5
      %v2726 = vadd.f32 %v2710, 0.5
      %v2727 = vadd.f32 %v2711, 0.5
      %v2728 = vadd.f32 %v2712, 0.5
      %v2729 = vadd.f32 %v2713, 0.5
      %v2730 = vadd.f32 %v2714, 0.5
      %v2731 = vadd.f32 %v2715, 0.5
      %v2732 = vmul.f32 %v2716, %v2307
      %v2733 = vmul.f32 %v2717, %v2308
      %v2734 = vmul.f32 %v2718, %v2309
      %v2735 = vmul.f32 %v2719, %v2310
      %v2736 = vmul.f32 %v2720, %v2311
      %v2737 = vmul.f32 %v2721, %v2312
      %v2738 = vmul.f32 %v2722, %v2313
      %v2739 = vmul.f32 %v2723, %v2314
      %v2740 = vmul.f32 %v2724, %v2315
      %v2741 = vmul.f32 %v2725, %v2316
      %v2742 = vmul.f32 %v2726, %v2317
      %v2743 = vmul.f32 %v2727, %v2318
      %v2744 = vmul.f32 %v2728, %v2319
      %v2745 = vmul.f32 %v2729, %v2320
      %v2746 = vmul.f32 %v2730, %v2321
      %v2747 = vmul.f32 %v2731, %v2322
      %2764 = vrot.lane.b32.xlu0 %v2684, 64
      %v2765 = vpop.permute.xlu0 %2764
      %2766 = vrot.lane.b32.xlu0 %v2685, 64
      %v2767 = vpop.permute.xlu0 %2766
      %2768 = vrot.lane.b32.xlu0 %v2686, 64
      %v2769 = vpop.permute.xlu0 %2768
      %2770 = vrot.lane.b32.xlu0 %v2687, 64
      %v2771 = vpop.permute.xlu0 %2770
      %2772 = vrot.lane.b32.xlu0 %v2688, 64
      %v2773 = vpop.permute.xlu0 %2772
      %2774 = vrot.lane.b32.xlu0 %v2689, 64
      %v2775 = vpop.permute.xlu0 %2774
      %2776 = vrot.lane.b32.xlu0 %v2690, 64
      %v2777 = vpop.permute.xlu0 %2776
      %2778 = vrot.lane.b32.xlu0 %v2691, 64
      %v2779 = vpop.permute.xlu0 %2778
      %2780 = vrot.lane.b32.xlu0 %v2692, 64
      %v2781 = vpop.permute.xlu0 %2780
      %2782 = vrot.lane.b32.xlu0 %v2693, 64
      %v2783 = vpop.permute.xlu0 %2782
      %2784 = vrot.lane.b32.xlu0 %v2694, 64
      %v2785 = vpop.permute.xlu0 %2784
      %2786 = vrot.lane.b32.xlu0 %v2695, 64
      %v2787 = vpop.permute.xlu0 %2786
      %2788 = vrot.lane.b32.xlu0 %v2696, 64
      %v2789 = vpop.permute.xlu0 %2788
      %2790 = vrot.lane.b32.xlu0 %v2697, 64
      %v2791 = vpop.permute.xlu0 %2790
      %2792 = vrot.lane.b32.xlu0 %v2698, 64
      %v2793 = vpop.permute.xlu0 %2792
      %2794 = vrot.lane.b32.xlu0 %v2699, 64
      %v2795 = vpop.permute.xlu0 %2794
      %v2812 = vmul.f32 %v2716, %v2765
      %v2813 = vmul.f32 %v2717, %v2767
      %v2814 = vmul.f32 %v2718, %v2769
      %v2815 = vmul.f32 %v2719, %v2771
      %v2816 = vmul.f32 %v2720, %v2773
      %v2817 = vmul.f32 %v2721, %v2775
      %v2818 = vmul.f32 %v2722, %v2777
      %v2819 = vmul.f32 %v2723, %v2779
      %v2820 = vmul.f32 %v2724, %v2781
      %v2821 = vmul.f32 %v2725, %v2783
      %v2822 = vmul.f32 %v2726, %v2785
      %v2823 = vmul.f32 %v2727, %v2787
      %v2824 = vmul.f32 %v2728, %v2789
      %v2825 = vmul.f32 %v2729, %v2791
      %v2826 = vmul.f32 %v2730, %v2793
      %v2827 = vmul.f32 %v2731, %v2795
      %2844 = vrot.lane.b32.xlu0 %v2812, 32
      %v2845 = vpop.permute.xlu0 %2844
      %2846 = vrot.lane.b32.xlu0 %v2813, 32
      %v2847 = vpop.permute.xlu0 %2846
      %2848 = vrot.lane.b32.xlu0 %v2814, 32
      %v2849 = vpop.permute.xlu0 %2848
      %2850 = vrot.lane.b32.xlu0 %v2815, 32
      %v2851 = vpop.permute.xlu0 %2850
      %2852 = vrot.lane.b32.xlu0 %v2816, 32
      %v2853 = vpop.permute.xlu0 %2852
      %2854 = vrot.lane.b32.xlu0 %v2817, 32
      %v2855 = vpop.permute.xlu0 %2854
      %2856 = vrot.lane.b32.xlu0 %v2818, 32
      %v2857 = vpop.permute.xlu0 %2856
      %2858 = vrot.lane.b32.xlu0 %v2819, 32
      %v2859 = vpop.permute.xlu0 %2858
      %2860 = vrot.lane.b32.xlu0 %v2820, 32
      %v2861 = vpop.permute.xlu0 %2860
      %2862 = vrot.lane.b32.xlu0 %v2821, 32
      %v2863 = vpop.permute.xlu0 %2862
      %2864 = vrot.lane.b32.xlu0 %v2822, 32
      %v2865 = vpop.permute.xlu0 %2864
      %2866 = vrot.lane.b32.xlu0 %v2823, 32
      %v2867 = vpop.permute.xlu0 %2866
      %2868 = vrot.lane.b32.xlu0 %v2824, 32
      %v2869 = vpop.permute.xlu0 %2868
      %2870 = vrot.lane.b32.xlu0 %v2825, 32
      %v2871 = vpop.permute.xlu0 %2870
      %2872 = vrot.lane.b32.xlu0 %v2826, 32
      %v2873 = vpop.permute.xlu0 %2872
      %2874 = vrot.lane.b32.xlu0 %v2827, 32
      %v2875 = vpop.permute.xlu0 %2874
      %v2892 = vadd.f32 %v2732, %v2845
      %v2893 = vadd.f32 %v2733, %v2847
      %v2894 = vadd.f32 %v2734, %v2849
      %v2895 = vadd.f32 %v2735, %v2851
      %v2896 = vadd.f32 %v2736, %v2853
      %v2897 = vadd.f32 %v2737, %v2855
      %v2898 = vadd.f32 %v2738, %v2857
      %v2899 = vadd.f32 %v2739, %v2859
      %v2900 = vadd.f32 %v2740, %v2861
      %v2901 = vadd.f32 %v2741, %v2863
      %v2902 = vadd.f32 %v2742, %v2865
      %v2903 = vadd.f32 %v2743, %v2867
      %v2904 = vadd.f32 %v2744, %v2869
      %v2905 = vadd.f32 %v2745, %v2871
      %v2906 = vadd.f32 %v2746, %v2873
      %v2907 = vadd.f32 %v2747, %v2875
      %v2908 = vtanh.pop %v2892
      %v2909 = vtanh.pop %v2893
      %v2910 = vtanh.pop %v2894
      %v2911 = vtanh.pop %v2895
      %v2912 = vtanh.pop %v2896
      %v2913 = vtanh.pop %v2897
      %v2914 = vtanh.pop %v2898
      %v2915 = vtanh.pop %v2899
      %v2916 = vtanh.pop %v2900
      %v2917 = vtanh.pop %v2901
      %v2918 = vtanh.pop %v2902
      %v2919 = vtanh.pop %v2903
      %v2920 = vtanh.pop %v2904
      %v2921 = vtanh.pop %v2905
      %v2922 = vtanh.pop %v2906
      %v2923 = vtanh.pop %v2907
      %2940 = vrot.lane.b32.xlu0 %v2908, 64
      %v2941 = vpop.permute.xlu0 %2940
      %2942 = vrot.lane.b32.xlu0 %v2909, 64
      %v2943 = vpop.permute.xlu0 %2942
      %2944 = vrot.lane.b32.xlu0 %v2910, 64
      %v2945 = vpop.permute.xlu0 %2944
      %2946 = vrot.lane.b32.xlu0 %v2911, 64
      %v2947 = vpop.permute.xlu0 %2946
      %2948 = vrot.lane.b32.xlu0 %v2912, 64
      %v2949 = vpop.permute.xlu0 %2948
      %2950 = vrot.lane.b32.xlu0 %v2913, 64
      %v2951 = vpop.permute.xlu0 %2950
      %2952 = vrot.lane.b32.xlu0 %v2914, 64
      %v2953 = vpop.permute.xlu0 %2952
      %2954 = vrot.lane.b32.xlu0 %v2915, 64
      %v2955 = vpop.permute.xlu0 %2954
      %2956 = vrot.lane.b32.xlu0 %v2916, 64
      %v2957 = vpop.permute.xlu0 %2956
      %2958 = vrot.lane.b32.xlu0 %v2917, 64
      %v2959 = vpop.permute.xlu0 %2958
      %2960 = vrot.lane.b32.xlu0 %v2918, 64
      %v2961 = vpop.permute.xlu0 %2960
      %2962 = vrot.lane.b32.xlu0 %v2919, 64
      %v2963 = vpop.permute.xlu0 %2962
      %2964 = vrot.lane.b32.xlu0 %v2920, 64
      %v2965 = vpop.permute.xlu0 %2964
      %2966 = vrot.lane.b32.xlu0 %v2921, 64
      %v2967 = vpop.permute.xlu0 %2966
      %2968 = vrot.lane.b32.xlu0 %v2922, 64
      %v2969 = vpop.permute.xlu0 %2968
      %2970 = vrot.lane.b32.xlu0 %v2923, 64
      %v2971 = vpop.permute.xlu0 %2970
      %v2988 = vmul.f32 %v2716, %v2941
      %v2989 = vmul.f32 %v2717, %v2943
      %v2990 = vmul.f32 %v2718, %v2945
      %v2991 = vmul.f32 %v2719, %v2947
      %v2992 = vmul.f32 %v2720, %v2949
      %v2993 = vmul.f32 %v2721, %v2951
      %v2994 = vmul.f32 %v2722, %v2953
      %v2995 = vmul.f32 %v2723, %v2955
      %v2996 = vmul.f32 %v2724, %v2957
      %v2997 = vmul.f32 %v2725, %v2959
      %v2998 = vmul.f32 %v2726, %v2961
      %v2999 = vmul.f32 %v2727, %v2963
      %v3000 = vmul.f32 %v2728, %v2965
      %v3001 = vmul.f32 %v2729, %v2967
      %v3002 = vmul.f32 %v2730, %v2969
      %v3003 = vmul.f32 %v2731, %v2971
      %v3004 = vpack.c.bf16 %v2989, %v2988
      %v3005 = vpack.c.bf16 %v2991, %v2990
      %v3006 = vpack.c.bf16 %v2993, %v2992
      %v3007 = vpack.c.bf16 %v2995, %v2994
      %v3008 = vpack.c.bf16 %v2997, %v2996
      %v3009 = vpack.c.bf16 %v2999, %v2998
      %v3010 = vpack.c.bf16 %v3001, %v3000
      %v3011 = vpack.c.bf16 %v3003, %v3002
      %3020 = vrot.lane.b32.xlu0 %v3004, 32
      %v3021 = vpop.permute.xlu0 %3020
      %3022 = vrot.lane.b32.xlu0 %v3005, 32
      %v3023 = vpop.permute.xlu0 %3022
      %3024 = vrot.lane.b32.xlu0 %v3006, 32
      %v3025 = vpop.permute.xlu0 %3024
      %3026 = vrot.lane.b32.xlu0 %v3007, 32
      %v3027 = vpop.permute.xlu0 %3026
      %3028 = vrot.lane.b32.xlu0 %v3008, 32
      %v3029 = vpop.permute.xlu0 %3028
      %3030 = vrot.lane.b32.xlu0 %v3009, 32
      %v3031 = vpop.permute.xlu0 %3030
      %3032 = vrot.lane.b32.xlu0 %v3010, 32
      %v3033 = vpop.permute.xlu0 %3032
      %3034 = vrot.lane.b32.xlu0 %v3011, 32
      %v3035 = vpop.permute.xlu0 %3034
      %v3037 = vsel %vm695, %v3021, 0
      %v3040 = vsel %vm695, %v3023, 0
      %v3043 = vsel %vm695, %v3025, 0
      %v3046 = vsel %vm695, %v3027, 0
      %v3049 = vsel %vm695, %v3029, 0
      %v3052 = vsel %vm695, %v3031, 0
      %v3055 = vsel %vm695, %v3033, 0
      %v3058 = vsel %vm695, %v3035, 0
      %3060 = vmatprep.subr.bf16.mxu0 %v688
      %3061 = vmatpush1.bf16.msra.mxu0 %v687
      %3062 = vmatprep.subr.bf16.mxu0 %v690
      %3063 = vmatpush1.bf16.msra.mxu0 %v689
      %3064 = vmatprep.subr.bf16.mxu0 0
      %3065 = vmatpush1.bf16.msra.mxu0 0
      %3066 = vmatprep.subr.bf16.mxu0 0
      %3067 = vmatpush1.bf16.msra.mxu0 0
      %3068 = vmatprep.subr.bf16.mxu0 0
      %3069 = vmatpush1.bf16.msra.mxu0 0
      %3070 = vmatprep.subr.bf16.mxu0 0
      %3071 = vmatpush1.bf16.msra.mxu0 0
      %3072 = vmatprep.subr.bf16.mxu0 0
      %3073 = vmatpush1.bf16.msra.mxu0 0
      %3074 = vmatprep.subr.bf16.mxu0 0
      %3075 = vmatpush1.bf16.msra.mxu0 0
      %3076 = vmatprep.subr.bf16.mxu0 0
      %3077 = vmatpush1.bf16.msra.mxu0 0
      %3078 = vmatprep.subr.bf16.mxu0 0
      %3079 = vmatpush1.bf16.msra.mxu0 0
      %3080 = vmatprep.subr.bf16.mxu0 0
      %3081 = vmatpush1.bf16.msra.mxu0 0
      %3082 = vmatprep.subr.bf16.mxu0 0
      %3083 = vmatpush1.bf16.msra.mxu0 0
      %3084 = vmatprep.subr.bf16.mxu0 0
      %3085 = vmatpush1.bf16.msra.mxu0 0
      %3086 = vmatprep.subr.bf16.mxu0 0
      %3087 = vmatpush1.bf16.msra.mxu0 0
      %3088 = vmatprep.subr.bf16.mxu0 0
      %3089 = vmatpush1.bf16.msra.mxu0 0
      %3090 = vmatprep.subr.bf16.mxu0 0
      %3091 = vmatpush1.bf16.msra.mxu0 0
      %3092 = vmatprep.mubr.bf16.mxu0 0
      %3093 = vmatmul.mubr.bf16.gmra.mrb[0].mxu0 %v3037
      %v3094 = vpop.f32.mrb[0].mxu0
      %v3095 = vadd.f32 0.0, %v3094
      %v3096 = vpop.f32.mrb[0].mxu0
      %v3097 = vpop.f32.mrb[0].mxu0
      %v3098 = vadd.f32 0.0, %v3097
      %v3099 = vpop.f32.mrb[0].mxu0
      %3100 = vmatprep.mubr.bf16.mxu0 0
      %3101 = vmatmul.mubr.bf16.gmra.mrb[0].mxu0 %v3040
      %v3102 = vpop.f32.mrb[0].mxu0
      %v3103 = vadd.f32 0.0, %v3102
      %v3104 = vpop.f32.mrb[0].mxu0
      %v3105 = vpop.f32.mrb[0].mxu0
      %v3106 = vadd.f32 0.0, %v3105
      %v3107 = vpop.f32.mrb[0].mxu0
      %3108 = vmatprep.mubr.bf16.mxu0 0
      %3109 = vmatmul.mubr.bf16.gmra.mrb[0].mxu0 %v3043
      %v3110 = vpop.f32.mrb[0].mxu0
      %v3111 = vadd.f32 0.0, %v3110
      %v3112 = vpop.f32.mrb[0].mxu0
      %v3113 = vpop.f32.mrb[0].mxu0
      %v3114 = vadd.f32 0.0, %v3113
      %v3115 = vpop.f32.mrb[0].mxu0
      %3116 = vmatprep.mubr.bf16.mxu0 0
      %3117 = vmatmul.mubr.bf16.gmra.mrb[0].mxu0 %v3046
      %v3118 = vpop.f32.mrb[0].mxu0
      %v3119 = vadd.f32 0.0, %v3118
      %v3120 = vpop.f32.mrb[0].mxu0
      %v3121 = vpop.f32.mrb[0].mxu0
      %v3122 = vadd.f32 0.0, %v3121
      %v3123 = vpop.f32.mrb[0].mxu0
      %3124 = vmatprep.mubr.bf16.mxu0 0
      %3125 = vmatmul.mubr.bf16.gmra.mrb[0].mxu0 %v3049
      %v3126 = vpop.f32.mrb[0].mxu0
      %v3127 = vadd.f32 0.0, %v3126
      %v3128 = vpop.f32.mrb[0].mxu0
      %v3129 = vpop.f32.mrb[0].mxu0
      %v3130 = vadd.f32 0.0, %v3129
      %v3131 = vpop.f32.mrb[0].mxu0
      %3132 = vmatprep.mubr.bf16.mxu0 0
      %3133 = vmatmul.mubr.bf16.gmra.mrb[0].mxu0 %v3052
      %v3134 = vpop.f32.mrb[0].mxu0
      %v3135 = vadd.f32 0.0, %v3134
      %v3136 = vpop.f32.mrb[0].mxu0
      %v3137 = vpop.f32.mrb[0].mxu0
      %v3138 = vadd.f32 0.0, %v3137
      %v3139 = vpop.f32.mrb[0].mxu0
      %3140 = vmatprep.mubr.bf16.mxu0 0
      %3141 = vmatmul.mubr.bf16.gmra.mrb[0].mxu0 %v3055
      %v3142 = vpop.f32.mrb[0].mxu0
      %v3143 = vadd.f32 0.0, %v3142
      %v3144 = vpop.f32.mrb[0].mxu0
      %v3145 = vpop.f32.mrb[0].mxu0
      %v3146 = vadd.f32 0.0, %v3145
      %v3147 = vpop.f32.mrb[0].mxu0
      %3148 = vmatprep.mubr.bf16.mxu0 0
      %3149 = vmatmul.mubr.bf16.gmra.mrb[0].mxu0 %v3058
      %v3150 = vpop.f32.mrb[0].mxu0
      %v3151 = vadd.f32 0.0, %v3150
      %v3152 = vpop.f32.mrb[0].mxu0
      %v3153 = vpop.f32.mrb[0].mxu0
      %v3154 = vadd.f32 0.0, %v3153
      %v3155 = vpop.f32.mrb[0].mxu0
      %3156 = vdwg.mxu0
      %3157 = vset.pattern.permute.xlu0 5
      %3158 = vperm.xlu0 %3157, %v187
      %v3159 = vpop.permute.xlu0 %3158
      %3161 = vset.pattern.permute.xlu0 5
      %3162 = vperm.xlu0 %3161, %v188
      %v3163 = vpop.permute.xlu0 %3162
      %3165 = vset.pattern.permute.xlu0 5
      %3166 = vperm.xlu0 %3165, %v189
      %v3167 = vpop.permute.xlu0 %3166
      %3169 = vset.pattern.permute.xlu0 5
      %3170 = vperm.xlu0 %3169, %v190
      %v3171 = vpop.permute.xlu0 %3170
      %3173 = vset.pattern.permute.xlu0 5
      %3174 = vperm.xlu0 %3173, %v191
      %v3175 = vpop.permute.xlu0 %3174
      %3177 = vset.pattern.permute.xlu0 5
      %3178 = vperm.xlu0 %3177, %v192
      %v3179 = vpop.permute.xlu0 %3178
      %3181 = vset.pattern.permute.xlu0 5
      %3182 = vperm.xlu0 %3181, %v193
      %v3183 = vpop.permute.xlu0 %3182
      %3185 = vset.pattern.permute.xlu0 5
      %3186 = vperm.xlu0 %3185, %v194
      %v3187 = vpop.permute.xlu0 %3186
      %3189 = vset.pattern.permute.xlu0 5
      %3190 = vperm.xlu0 %3189, %v195
      %v3191 = vpop.permute.xlu0 %3190
      %3193 = vset.pattern.permute.xlu0 5
      %3194 = vperm.xlu0 %3193, %v196
      %v3195 = vpop.permute.xlu0 %3194
      %3197 = vset.pattern.permute.xlu0 5
      %3198 = vperm.xlu0 %3197, %v197
      %v3199 = vpop.permute.xlu0 %3198
      %3201 = vset.pattern.permute.xlu0 5
      %3202 = vperm.xlu0 %3201, %v198
      %v3203 = vpop.permute.xlu0 %3202
      %3205 = vset.pattern.permute.xlu0 5
      %3206 = vperm.xlu0 %3205, %v199
      %v3207 = vpop.permute.xlu0 %3206
      %3209 = vset.pattern.permute.xlu0 5
      %3210 = vperm.xlu0 %3209, %v200
      %v3211 = vpop.permute.xlu0 %3210
      %3213 = vset.pattern.permute.xlu0 5
      %3214 = vperm.xlu0 %3213, %v201
      %v3215 = vpop.permute.xlu0 %3214
      %3217 = vset.pattern.permute.xlu0 5
      %3218 = vperm.xlu0 %3217, %v202
      %v3219 = vpop.permute.xlu0 %3218
      %v3221 = vmul.f32 %v3159, %v286
      %v3222 = vmul.f32 %v3163, %v286
      %v3223 = vmul.f32 %v3167, %v286
      %v3224 = vmul.f32 %v3171, %v286
      %v3225 = vmul.f32 %v3175, %v286
      %v3226 = vmul.f32 %v3179, %v286
      %v3227 = vmul.f32 %v3183, %v286
      %v3228 = vmul.f32 %v3187, %v286
      %v3229 = vmul.f32 %v3191, %v286
      %v3230 = vmul.f32 %v3195, %v286
      %v3231 = vmul.f32 %v3199, %v286
      %v3232 = vmul.f32 %v3203, %v286
      %v3233 = vmul.f32 %v3207, %v286
      %v3234 = vmul.f32 %v3211, %v286
      %v3235 = vmul.f32 %v3215, %v286
      %v3236 = vmul.f32 %v3219, %v286
      %v3237 = vadd.f32 %v3221, %v306
      %v3238 = vadd.f32 %v3222, %v306
      %v3239 = vadd.f32 %v3223, %v306
      %v3240 = vadd.f32 %v3224, %v306
      %v3241 = vadd.f32 %v3225, %v306
      %v3242 = vadd.f32 %v3226, %v306
      %v3243 = vadd.f32 %v3227, %v306
      %v3244 = vadd.f32 %v3228, %v306
      %v3245 = vadd.f32 %v3229, %v306
      %v3246 = vadd.f32 %v3230, %v306
      %v3247 = vadd.f32 %v3231, %v306
      %v3248 = vadd.f32 %v3232, %v306
      %v3249 = vadd.f32 %v3233, %v306
      %v3250 = vadd.f32 %v3234, %v306
      %v3251 = vadd.f32 %v3235, %v306
      %v3252 = vadd.f32 %v3236, %v306
      %v3253 = vadd.f32 %v3237, %v3095
      %v3254 = vadd.f32 %v3238, %v3098
      %v3255 = vadd.f32 %v3239, %v3103
      %v3256 = vadd.f32 %v3240, %v3106
      %v3257 = vadd.f32 %v3241, %v3111
      %v3258 = vadd.f32 %v3242, %v3114
      %v3259 = vadd.f32 %v3243, %v3119
      %v3260 = vadd.f32 %v3244, %v3122
      %v3261 = vadd.f32 %v3245, %v3127
      %v3262 = vadd.f32 %v3246, %v3130
      %v3263 = vadd.f32 %v3247, %v3135
      %v3264 = vadd.f32 %v3248, %v3138
      %v3265 = vadd.f32 %v3249, %v3143
      %v3266 = vadd.f32 %v3250, %v3146
      %v3267 = vadd.f32 %v3251, %v3151
      %v3268 = vadd.f32 %v3252, %v3154
      %v3269 = vtanh.pop %v3253
      %v3270 = vtanh.pop %v3254
      %v3271 = vtanh.pop %v3255
      %v3272 = vtanh.pop %v3256
      %v3273 = vtanh.pop %v3257
      %v3274 = vtanh.pop %v3258
      %v3275 = vtanh.pop %v3259
      %v3276 = vtanh.pop %v3260
      %v3277 = vtanh.pop %v3261
      %v3278 = vtanh.pop %v3262
      %v3279 = vtanh.pop %v3263
      %v3280 = vtanh.pop %v3264
      %v3281 = vtanh.pop %v3265
      %v3282 = vtanh.pop %v3266
      %v3283 = vtanh.pop %v3267
      %v3284 = vtanh.pop %v3268
      %v3285 = vmul.f32 %v3269, 0.5
      %v3286 = vmul.f32 %v3270, 0.5
      %v3287 = vmul.f32 %v3271, 0.5
      %v3288 = vmul.f32 %v3272, 0.5
      %v3289 = vmul.f32 %v3273, 0.5
      %v3290 = vmul.f32 %v3274, 0.5
      %v3291 = vmul.f32 %v3275, 0.5
      %v3292 = vmul.f32 %v3276, 0.5
      %v3293 = vmul.f32 %v3277, 0.5
      %v3294 = vmul.f32 %v3278, 0.5
      %v3295 = vmul.f32 %v3279, 0.5
      %v3296 = vmul.f32 %v3280, 0.5
      %v3297 = vmul.f32 %v3281, 0.5
      %v3298 = vmul.f32 %v3282, 0.5
      %v3299 = vmul.f32 %v3283, 0.5
      %v3300 = vmul.f32 %v3284, 0.5
      %v3301 = vadd.f32 %v3285, 0.5
      %v3302 = vadd.f32 %v3286, 0.5
      %v3303 = vadd.f32 %v3287, 0.5
      %v3304 = vadd.f32 %v3288, 0.5
      %v3305 = vadd.f32 %v3289, 0.5
      %v3306 = vadd.f32 %v3290, 0.5
      %v3307 = vadd.f32 %v3291, 0.5
      %v3308 = vadd.f32 %v3292, 0.5
      %v3309 = vadd.f32 %v3293, 0.5
      %v3310 = vadd.f32 %v3294, 0.5
      %v3311 = vadd.f32 %v3295, 0.5
      %v3312 = vadd.f32 %v3296, 0.5
      %v3313 = vadd.f32 %v3297, 0.5
      %v3314 = vadd.f32 %v3298, 0.5
      %v3315 = vadd.f32 %v3299, 0.5
      %v3316 = vadd.f32 %v3300, 0.5
      %v3317 = vmul.f32 %v3301, %v2892
      %v3318 = vmul.f32 %v3302, %v2893
      %v3319 = vmul.f32 %v3303, %v2894
      %v3320 = vmul.f32 %v3304, %v2895
      %v3321 = vmul.f32 %v3305, %v2896
      %v3322 = vmul.f32 %v3306, %v2897
      %v3323 = vmul.f32 %v3307, %v2898
      %v3324 = vmul.f32 %v3308, %v2899
      %v3325 = vmul.f32 %v3309, %v2900
      %v3326 = vmul.f32 %v3310, %v2901
      %v3327 = vmul.f32 %v3311, %v2902
      %v3328 = vmul.f32 %v3312, %v2903
      %v3329 = vmul.f32 %v3313, %v2904
      %v3330 = vmul.f32 %v3314, %v2905
      %v3331 = vmul.f32 %v3315, %v2906
      %v3332 = vmul.f32 %v3316, %v2907
      %3349 = vrot.lane.b32.xlu0 %v3269, 64
      %v3350 = vpop.permute.xlu0 %3349
      %3351 = vrot.lane.b32.xlu0 %v3270, 64
      %v3352 = vpop.permute.xlu0 %3351
      %3353 = vrot.lane.b32.xlu0 %v3271, 64
      %v3354 = vpop.permute.xlu0 %3353
      %3355 = vrot.lane.b32.xlu0 %v3272, 64
      %v3356 = vpop.permute.xlu0 %3355
      %3357 = vrot.lane.b32.xlu0 %v3273, 64
      %v3358 = vpop.permute.xlu0 %3357
      %3359 = vrot.lane.b32.xlu0 %v3274, 64
      %v3360 = vpop.permute.xlu0 %3359
      %3361 = vrot.lane.b32.xlu0 %v3275, 64
      %v3362 = vpop.permute.xlu0 %3361
      %3363 = vrot.lane.b32.xlu0 %v3276, 64
      %v3364 = vpop.permute.xlu0 %3363
      %3365 = vrot.lane.b32.xlu0 %v3277, 64
      %v3366 = vpop.permute.xlu0 %3365
      %3367 = vrot.lane.b32.xlu0 %v3278, 64
      %v3368 = vpop.permute.xlu0 %3367
      %3369 = vrot.lane.b32.xlu0 %v3279, 64
      %v3370 = vpop.permute.xlu0 %3369
      %3371 = vrot.lane.b32.xlu0 %v3280, 64
      %v3372 = vpop.permute.xlu0 %3371
      %3373 = vrot.lane.b32.xlu0 %v3281, 64
      %v3374 = vpop.permute.xlu0 %3373
      %3375 = vrot.lane.b32.xlu0 %v3282, 64
      %v3376 = vpop.permute.xlu0 %3375
      %3377 = vrot.lane.b32.xlu0 %v3283, 64
      %v3378 = vpop.permute.xlu0 %3377
      %3379 = vrot.lane.b32.xlu0 %v3284, 64
      %v3380 = vpop.permute.xlu0 %3379
      %v3397 = vmul.f32 %v3301, %v3350
      %v3398 = vmul.f32 %v3302, %v3352
      %v3399 = vmul.f32 %v3303, %v3354
      %v3400 = vmul.f32 %v3304, %v3356
      %v3401 = vmul.f32 %v3305, %v3358
      %v3402 = vmul.f32 %v3306, %v3360
      %v3403 = vmul.f32 %v3307, %v3362
      %v3404 = vmul.f32 %v3308, %v3364
      %v3405 = vmul.f32 %v3309, %v3366
      %v3406 = vmul.f32 %v3310, %v3368
      %v3407 = vmul.f32 %v3311, %v3370
      %v3408 = vmul.f32 %v3312, %v3372
      %v3409 = vmul.f32 %v3313, %v3374
      %v3410 = vmul.f32 %v3314, %v3376
      %v3411 = vmul.f32 %v3315, %v3378
      %v3412 = vmul.f32 %v3316, %v3380
      %3429 = vrot.lane.b32.xlu0 %v3397, 32
      %v3430 = vpop.permute.xlu0 %3429
      %3431 = vrot.lane.b32.xlu0 %v3398, 32
      %v3432 = vpop.permute.xlu0 %3431
      %3433 = vrot.lane.b32.xlu0 %v3399, 32
      %v3434 = vpop.permute.xlu0 %3433
      %3435 = vrot.lane.b32.xlu0 %v3400, 32
      %v3436 = vpop.permute.xlu0 %3435
      %3437 = vrot.lane.b32.xlu0 %v3401, 32
      %v3438 = vpop.permute.xlu0 %3437
      %3439 = vrot.lane.b32.xlu0 %v3402, 32
      %v3440 = vpop.permute.xlu0 %3439
      %3441 = vrot.lane.b32.xlu0 %v3403, 32
      %v3442 = vpop.permute.xlu0 %3441
      %3443 = vrot.lane.b32.xlu0 %v3404, 32
      %v3444 = vpop.permute.xlu0 %3443
      %3445 = vrot.lane.b32.xlu0 %v3405, 32
      %v3446 = vpop.permute.xlu0 %3445
      %3447 = vrot.lane.b32.xlu0 %v3406, 32
      %v3448 = vpop.permute.xlu0 %3447
      %3449 = vrot.lane.b32.xlu0 %v3407, 32
      %v3450 = vpop.permute.xlu0 %3449
      %3451 = vrot.lane.b32.xlu0 %v3408, 32
      %v3452 = vpop.permute.xlu0 %3451
      %3453 = vrot.lane.b32.xlu0 %v3409, 32
      %v3454 = vpop.permute.xlu0 %3453
      %3455 = vrot.lane.b32.xlu0 %v3410, 32
      %v3456 = vpop.permute.xlu0 %3455
      %3457 = vrot.lane.b32.xlu0 %v3411, 32
      %v3458 = vpop.permute.xlu0 %3457
      %3459 = vrot.lane.b32.xlu0 %v3412, 32
      %v3460 = vpop.permute.xlu0 %3459
      %v3477 = vadd.f32 %v3317, %v3430
      %v3478 = vadd.f32 %v3318, %v3432
      %v3479 = vadd.f32 %v3319, %v3434
      %v3480 = vadd.f32 %v3320, %v3436
      %v3481 = vadd.f32 %v3321, %v3438
      %v3482 = vadd.f32 %v3322, %v3440
      %v3483 = vadd.f32 %v3323, %v3442
      %v3484 = vadd.f32 %v3324, %v3444
      %v3485 = vadd.f32 %v3325, %v3446
      %v3486 = vadd.f32 %v3326, %v3448
      %v3487 = vadd.f32 %v3327, %v3450
      %v3488 = vadd.f32 %v3328, %v3452
      %v3489 = vadd.f32 %v3329, %v3454
      %v3490 = vadd.f32 %v3330, %v3456
      %v3491 = vadd.f32 %v3331, %v3458
      %v3492 = vadd.f32 %v3332, %v3460
      %v3493 = vtanh.pop %v3477
      %v3494 = vtanh.pop %v3478
      %v3495 = vtanh.pop %v3479
      %v3496 = vtanh.pop %v3480
      %v3497 = vtanh.pop %v3481
      %v3498 = vtanh.pop %v3482
      %v3499 = vtanh.pop %v3483
      %v3500 = vtanh.pop %v3484
      %v3501 = vtanh.pop %v3485
      %v3502 = vtanh.pop %v3486
      %v3503 = vtanh.pop %v3487
      %v3504 = vtanh.pop %v3488
      %v3505 = vtanh.pop %v3489
      %v3506 = vtanh.pop %v3490
      %v3507 = vtanh.pop %v3491
      %v3508 = vtanh.pop %v3492
      %3525 = vrot.lane.b32.xlu0 %v3493, 64
      %v3526 = vpop.permute.xlu0 %3525
      %3527 = vrot.lane.b32.xlu0 %v3494, 64
      %v3528 = vpop.permute.xlu0 %3527
      %3529 = vrot.lane.b32.xlu0 %v3495, 64
      %v3530 = vpop.permute.xlu0 %3529
      %3531 = vrot.lane.b32.xlu0 %v3496, 64
      %v3532 = vpop.permute.xlu0 %3531
      %3533 = vrot.lane.b32.xlu0 %v3497, 64
      %v3534 = vpop.permute.xlu0 %3533
      %3535 = vrot.lane.b32.xlu0 %v3498, 64
      %v3536 = vpop.permute.xlu0 %3535
      %3537 = vrot.lane.b32.xlu0 %v3499, 64
      %v3538 = vpop.permute.xlu0 %3537
      %3539 = vrot.lane.b32.xlu0 %v3500, 64
      %v3540 = vpop.permute.xlu0 %3539
      %3541 = vrot.lane.b32.xlu0 %v3501, 64
      %v3542 = vpop.permute.xlu0 %3541
      %3543 = vrot.lane.b32.xlu0 %v3502, 64
      %v3544 = vpop.permute.xlu0 %3543
      %3545 = vrot.lane.b32.xlu0 %v3503, 64
      %v3546 = vpop.permute.xlu0 %3545
      %3547 = vrot.lane.b32.xlu0 %v3504, 64
      %v3548 = vpop.permute.xlu0 %3547
      %3549 = vrot.lane.b32.xlu0 %v3505, 64
      %v3550 = vpop.permute.xlu0 %3549
      %3551 = vrot.lane.b32.xlu0 %v3506, 64
      %v3552 = vpop.permute.xlu0 %3551
      %3553 = vrot.lane.b32.xlu0 %v3507, 64
      %v3554 = vpop.permute.xlu0 %3553
      %3555 = vrot.lane.b32.xlu0 %v3508, 64
      %v3556 = vpop.permute.xlu0 %3555
      %v3573 = vmul.f32 %v3301, %v3526
      %v3574 = vmul.f32 %v3302, %v3528
      %v3575 = vmul.f32 %v3303, %v3530
      %v3576 = vmul.f32 %v3304, %v3532
      %v3577 = vmul.f32 %v3305, %v3534
      %v3578 = vmul.f32 %v3306, %v3536
      %v3579 = vmul.f32 %v3307, %v3538
      %v3580 = vmul.f32 %v3308, %v3540
      %v3581 = vmul.f32 %v3309, %v3542
      %v3582 = vmul.f32 %v3310, %v3544
      %v3583 = vmul.f32 %v3311, %v3546
      %v3584 = vmul.f32 %v3312, %v3548
      %v3585 = vmul.f32 %v3313, %v3550
      %v3586 = vmul.f32 %v3314, %v3552
      %v3587 = vmul.f32 %v3315, %v3554
      %v3588 = vmul.f32 %v3316, %v3556
      %v3589 = vpack.c.bf16 %v3574, %v3573
      %v3590 = vpack.c.bf16 %v3576, %v3575
      %v3591 = vpack.c.bf16 %v3578, %v3577
      %v3592 = vpack.c.bf16 %v3580, %v3579
      %v3593 = vpack.c.bf16 %v3582, %v3581
      %v3594 = vpack.c.bf16 %v3584, %v3583
      %v3595 = vpack.c.bf16 %v3586, %v3585
      %v3596 = vpack.c.bf16 %v3588, %v3587
      %3605 = vrot.lane.b32.xlu0 %v3589, 32
      %v3606 = vpop.permute.xlu0 %3605
      %3607 = vrot.lane.b32.xlu0 %v3590, 32
      %v3608 = vpop.permute.xlu0 %3607
      %3609 = vrot.lane.b32.xlu0 %v3591, 32
      %v3610 = vpop.permute.xlu0 %3609
      %3611 = vrot.lane.b32.xlu0 %v3592, 32
      %v3612 = vpop.permute.xlu0 %3611
      %3613 = vrot.lane.b32.xlu0 %v3593, 32
      %v3614 = vpop.permute.xlu0 %3613
      %3615 = vrot.lane.b32.xlu0 %v3594, 32
      %v3616 = vpop.permute.xlu0 %3615
      %3617 = vrot.lane.b32.xlu0 %v3595, 32
      %v3618 = vpop.permute.xlu0 %3617
      %3619 = vrot.lane.b32.xlu0 %v3596, 32
      %v3620 = vpop.permute.xlu0 %3619
      %v3622 = vsel %vm695, %v3606, 0
      %v3625 = vsel %vm695, %v3608, 0
      %v3628 = vsel %vm695, %v3610, 0
      %v3631 = vsel %vm695, %v3612, 0
      %v3634 = vsel %vm695, %v3614, 0
      %v3637 = vsel %vm695, %v3616, 0
      %v3640 = vsel %vm695, %v3618, 0
      %v3643 = vsel %vm695, %v3620, 0
      %3645 = vmatprep.subr.bf16.mxu0 %v688
      %3646 = vmatpush1.bf16.msra.mxu0 %v687
      %3647 = vmatprep.subr.bf16.mxu0 %v690
      %3648 = vmatpush1.bf16.msra.mxu0 %v689
      %3649 = vmatprep.subr.bf16.mxu0 0
      %3650 = vmatpush1.bf16.msra.mxu0 0
      %3651 = vmatprep.subr.bf16.mxu0 0
      %3652 = vmatpush1.bf16.msra.mxu0 0
      %3653 = vmatprep.subr.bf16.mxu0 0
      %3654 = vmatpush1.bf16.msra.mxu0 0
      %3655 = vmatprep.subr.bf16.mxu0 0
      %3656 = vmatpush1.bf16.msra.mxu0 0
      %3657 = vmatprep.subr.bf16.mxu0 0
      %3658 = vmatpush1.bf16.msra.mxu0 0
      %3659 = vmatprep.subr.bf16.mxu0 0
      %3660 = vmatpush1.bf16.msra.mxu0 0
      %3661 = vmatprep.subr.bf16.mxu0 0
      %3662 = vmatpush1.bf16.msra.mxu0 0
      %3663 = vmatprep.subr.bf16.mxu0 0
      %3664 = vmatpush1.bf16.msra.mxu0 0
      %3665 = vmatprep.subr.bf16.mxu0 0
      %3666 = vmatpush1.bf16.msra.mxu0 0
      %3667 = vmatprep.subr.bf16.mxu0 0
      %3668 = vmatpush1.bf16.msra.mxu0 0
      %3669 = vmatprep.subr.bf16.mxu0 0
      %3670 = vmatpush1.bf16.msra.mxu0 0
      %3671 = vmatprep.subr.bf16.mxu0 0
      %3672 = vmatpush1.bf16.msra.mxu0 0
      %3673 = vmatprep.subr.bf16.mxu0 0
      %3674 = vmatpush1.bf16.msra.mxu0 0
      %3675 = vmatprep.subr.bf16.mxu0 0
      %3676 = vmatpush1.bf16.msra.mxu0 0
      %3677 = vmatprep.mubr.bf16.mxu0 0
      %3678 = vmatmul.mubr.bf16.gmra.mrb[0].mxu0 %v3622
      %v3679 = vpop.f32.mrb[0].mxu0
      %v3680 = vadd.f32 0.0, %v3679
      %v3681 = vpop.f32.mrb[0].mxu0
      %v3682 = vpop.f32.mrb[0].mxu0
      %v3683 = vadd.f32 0.0, %v3682
      %v3684 = vpop.f32.mrb[0].mxu0
      %3685 = vmatprep.mubr.bf16.mxu0 0
      %3686 = vmatmul.mubr.bf16.gmra.mrb[0].mxu0 %v3625
      %v3687 = vpop.f32.mrb[0].mxu0
      %v3688 = vadd.f32 0.0, %v3687
      %v3689 = vpop.f32.mrb[0].mxu0
      %v3690 = vpop.f32.mrb[0].mxu0
      %v3691 = vadd.f32 0.0, %v3690
      %v3692 = vpop.f32.mrb[0].mxu0
      %3693 = vmatprep.mubr.bf16.mxu0 0
      %3694 = vmatmul.mubr.bf16.gmra.mrb[0].mxu0 %v3628
      %v3695 = vpop.f32.mrb[0].mxu0
      %v3696 = vadd.f32 0.0, %v3695
      %v3697 = vpop.f32.mrb[0].mxu0
      %v3698 = vpop.f32.mrb[0].mxu0
      %v3699 = vadd.f32 0.0, %v3698
      %v3700 = vpop.f32.mrb[0].mxu0
      %3701 = vmatprep.mubr.bf16.mxu0 0
      %3702 = vmatmul.mubr.bf16.gmra.mrb[0].mxu0 %v3631
      %v3703 = vpop.f32.mrb[0].mxu0
      %v3704 = vadd.f32 0.0, %v3703
      %v3705 = vpop.f32.mrb[0].mxu0
      %v3706 = vpop.f32.mrb[0].mxu0
      %v3707 = vadd.f32 0.0, %v3706
      %v3708 = vpop.f32.mrb[0].mxu0
      %3709 = vmatprep.mubr.bf16.mxu0 0
      %3710 = vmatmul.mubr.bf16.gmra.mrb[0].mxu0 %v3634
      %v3711 = vpop.f32.mrb[0].mxu0
      %v3712 = vadd.f32 0.0, %v3711
      %v3713 = vpop.f32.mrb[0].mxu0
      %v3714 = vpop.f32.mrb[0].mxu0
      %v3715 = vadd.f32 0.0, %v3714
      %v3716 = vpop.f32.mrb[0].mxu0
      %3717 = vmatprep.mubr.bf16.mxu0 0
      %3718 = vmatmul.mubr.bf16.gmra.mrb[0].mxu0 %v3637
      %v3719 = vpop.f32.mrb[0].mxu0
      %v3720 = vadd.f32 0.0, %v3719
      %v3721 = vpop.f32.mrb[0].mxu0
      %v3722 = vpop.f32.mrb[0].mxu0
      %v3723 = vadd.f32 0.0, %v3722
      %v3724 = vpop.f32.mrb[0].mxu0
      %3725 = vmatprep.mubr.bf16.mxu0 0
      %3726 = vmatmul.mubr.bf16.gmra.mrb[0].mxu0 %v3640
      %v3727 = vpop.f32.mrb[0].mxu0
      %v3728 = vadd.f32 0.0, %v3727
      %v3729 = vpop.f32.mrb[0].mxu0
      %v3730 = vpop.f32.mrb[0].mxu0
      %v3731 = vadd.f32 0.0, %v3730
      %v3732 = vpop.f32.mrb[0].mxu0
      %3733 = vmatprep.mubr.bf16.mxu0 0
      %3734 = vmatmul.mubr.bf16.gmra.mrb[0].mxu0 %v3643
      %v3735 = vpop.f32.mrb[0].mxu0
      %v3736 = vadd.f32 0.0, %v3735
      %v3737 = vpop.f32.mrb[0].mxu0
      %v3738 = vpop.f32.mrb[0].mxu0
      %v3739 = vadd.f32 0.0, %v3738
      %v3740 = vpop.f32.mrb[0].mxu0
      %3741 = vdwg.mxu0
      %3742 = vset.pattern.permute.xlu0 6
      %3743 = vperm.xlu0 %3742, %v187
      %v3744 = vpop.permute.xlu0 %3743
      %3746 = vset.pattern.permute.xlu0 6
      %3747 = vperm.xlu0 %3746, %v188
      %v3748 = vpop.permute.xlu0 %3747
      %3750 = vset.pattern.permute.xlu0 6
      %3751 = vperm.xlu0 %3750, %v189
      %v3752 = vpop.permute.xlu0 %3751
      %3754 = vset.pattern.permute.xlu0 6
      %3755 = vperm.xlu0 %3754, %v190
      %v3756 = vpop.permute.xlu0 %3755
      %3758 = vset.pattern.permute.xlu0 6
      %3759 = vperm.xlu0 %3758, %v191
      %v3760 = vpop.permute.xlu0 %3759
      %3762 = vset.pattern.permute.xlu0 6
      %3763 = vperm.xlu0 %3762, %v192
      %v3764 = vpop.permute.xlu0 %3763
      %3766 = vset.pattern.permute.xlu0 6
      %3767 = vperm.xlu0 %3766, %v193
      %v3768 = vpop.permute.xlu0 %3767
      %3770 = vset.pattern.permute.xlu0 6
      %3771 = vperm.xlu0 %3770, %v194
      %v3772 = vpop.permute.xlu0 %3771
      %3774 = vset.pattern.permute.xlu0 6
      %3775 = vperm.xlu0 %3774, %v195
      %v3776 = vpop.permute.xlu0 %3775
      %3778 = vset.pattern.permute.xlu0 6
      %3779 = vperm.xlu0 %3778, %v196
      %v3780 = vpop.permute.xlu0 %3779
      %3782 = vset.pattern.permute.xlu0 6
      %3783 = vperm.xlu0 %3782, %v197
      %v3784 = vpop.permute.xlu0 %3783
      %3786 = vset.pattern.permute.xlu0 6
      %3787 = vperm.xlu0 %3786, %v198
      %v3788 = vpop.permute.xlu0 %3787
      %3790 = vset.pattern.permute.xlu0 6
      %3791 = vperm.xlu0 %3790, %v199
      %v3792 = vpop.permute.xlu0 %3791
      %3794 = vset.pattern.permute.xlu0 6
      %3795 = vperm.xlu0 %3794, %v200
      %v3796 = vpop.permute.xlu0 %3795
      %3798 = vset.pattern.permute.xlu0 6
      %3799 = vperm.xlu0 %3798, %v201
      %v3800 = vpop.permute.xlu0 %3799
      %3802 = vset.pattern.permute.xlu0 6
      %3803 = vperm.xlu0 %3802, %v202
      %v3804 = vpop.permute.xlu0 %3803
      %v3806 = vmul.f32 %v3744, %v286
      %v3807 = vmul.f32 %v3748, %v286
      %v3808 = vmul.f32 %v3752, %v286
      %v3809 = vmul.f32 %v3756, %v286
      %v3810 = vmul.f32 %v3760, %v286
      %v3811 = vmul.f32 %v3764, %v286
      %v3812 = vmul.f32 %v3768, %v286
      %v3813 = vmul.f32 %v3772, %v286
      %v3814 = vmul.f32 %v3776, %v286
      %v3815 = vmul.f32 %v3780, %v286
      %v3816 = vmul.f32 %v3784, %v286
      %v3817 = vmul.f32 %v3788, %v286
      %v3818 = vmul.f32 %v3792, %v286
      %v3819 = vmul.f32 %v3796, %v286
      %v3820 = vmul.f32 %v3800, %v286
      %v3821 = vmul.f32 %v3804, %v286
      %v3822 = vadd.f32 %v3806, %v306
      %v3823 = vadd.f32 %v3807, %v306
      %v3824 = vadd.f32 %v3808, %v306
      %v3825 = vadd.f32 %v3809, %v306
      %v3826 = vadd.f32 %v3810, %v306
      %v3827 = vadd.f32 %v3811, %v306
      %v3828 = vadd.f32 %v3812, %v306
      %v3829 = vadd.f32 %v3813, %v306
      %v3830 = vadd.f32 %v3814, %v306
      %v3831 = vadd.f32 %v3815, %v306
      %v3832 = vadd.f32 %v3816, %v306
      %v3833 = vadd.f32 %v3817, %v306
      %v3834 = vadd.f32 %v3818, %v306
      %v3835 = vadd.f32 %v3819, %v306
      %v3836 = vadd.f32 %v3820, %v306
      %v3837 = vadd.f32 %v3821, %v306
      %v3838 = vadd.f32 %v3822, %v3680
      %v3839 = vadd.f32 %v3823, %v3683
      %v3840 = vadd.f32 %v3824, %v3688
      %v3841 = vadd.f32 %v3825, %v3691
      %v3842 = vadd.f32 %v3826, %v3696
      %v3843 = vadd.f32 %v3827, %v3699
      %v3844 = vadd.f32 %v3828, %v3704
      %v3845 = vadd.f32 %v3829, %v3707
      %v3846 = vadd.f32 %v3830, %v3712
      %v3847 = vadd.f32 %v3831, %v3715
      %v3848 = vadd.f32 %v3832, %v3720
      %v3849 = vadd.f32 %v3833, %v3723
      %v3850 = vadd.f32 %v3834, %v3728
      %v3851 = vadd.f32 %v3835, %v3731
      %v3852 = vadd.f32 %v3836, %v3736
      %v3853 = vadd.f32 %v3837, %v3739
      %v3854 = vtanh.pop %v3838
      %v3855 = vtanh.pop %v3839
      %v3856 = vtanh.pop %v3840
      %v3857 = vtanh.pop %v3841
      %v3858 = vtanh.pop %v3842
      %v3859 = vtanh.pop %v3843
      %v3860 = vtanh.pop %v3844
      %v3861 = vtanh.pop %v3845
      %v3862 = vtanh.pop %v3846
      %v3863 = vtanh.pop %v3847
      %v3864 = vtanh.pop %v3848
      %v3865 = vtanh.pop %v3849
      %v3866 = vtanh.pop %v3850
      %v3867 = vtanh.pop %v3851
      %v3868 = vtanh.pop %v3852
      %v3869 = vtanh.pop %v3853
      %v3870 = vmul.f32 %v3854, 0.5
      %v3871 = vmul.f32 %v3855, 0.5
      %v3872 = vmul.f32 %v3856, 0.5
      %v3873 = vmul.f32 %v3857, 0.5
      %v3874 = vmul.f32 %v3858, 0.5
      %v3875 = vmul.f32 %v3859, 0.5
      %v3876 = vmul.f32 %v3860, 0.5
      %v3877 = vmul.f32 %v3861, 0.5
      %v3878 = vmul.f32 %v3862, 0.5
      %v3879 = vmul.f32 %v3863, 0.5
      %v3880 = vmul.f32 %v3864, 0.5
      %v3881 = vmul.f32 %v3865, 0.5
      %v3882 = vmul.f32 %v3866, 0.5
      %v3883 = vmul.f32 %v3867, 0.5
      %v3884 = vmul.f32 %v3868, 0.5
      %v3885 = vmul.f32 %v3869, 0.5
      %v3886 = vadd.f32 %v3870, 0.5
      %v3887 = vadd.f32 %v3871, 0.5
      %v3888 = vadd.f32 %v3872, 0.5
      %v3889 = vadd.f32 %v3873, 0.5
      %v3890 = vadd.f32 %v3874, 0.5
      %v3891 = vadd.f32 %v3875, 0.5
      %v3892 = vadd.f32 %v3876, 0.5
      %v3893 = vadd.f32 %v3877, 0.5
      %v3894 = vadd.f32 %v3878, 0.5
      %v3895 = vadd.f32 %v3879, 0.5
      %v3896 = vadd.f32 %v3880, 0.5
      %v3897 = vadd.f32 %v3881, 0.5
      %v3898 = vadd.f32 %v3882, 0.5
      %v3899 = vadd.f32 %v3883, 0.5
      %v3900 = vadd.f32 %v3884, 0.5
      %v3901 = vadd.f32 %v3885, 0.5
      %v3902 = vmul.f32 %v3886, %v3477
      %v3903 = vmul.f32 %v3887, %v3478
      %v3904 = vmul.f32 %v3888, %v3479
      %v3905 = vmul.f32 %v3889, %v3480
      %v3906 = vmul.f32 %v3890, %v3481
      %v3907 = vmul.f32 %v3891, %v3482
      %v3908 = vmul.f32 %v3892, %v3483
      %v3909 = vmul.f32 %v3893, %v3484
      %v3910 = vmul.f32 %v3894, %v3485
      %v3911 = vmul.f32 %v3895, %v3486
      %v3912 = vmul.f32 %v3896, %v3487
      %v3913 = vmul.f32 %v3897, %v3488
      %v3914 = vmul.f32 %v3898, %v3489
      %v3915 = vmul.f32 %v3899, %v3490
      %v3916 = vmul.f32 %v3900, %v3491
      %v3917 = vmul.f32 %v3901, %v3492
      %3934 = vrot.lane.b32.xlu0 %v3854, 64
      %v3935 = vpop.permute.xlu0 %3934
      %3936 = vrot.lane.b32.xlu0 %v3855, 64
      %v3937 = vpop.permute.xlu0 %3936
      %3938 = vrot.lane.b32.xlu0 %v3856, 64
      %v3939 = vpop.permute.xlu0 %3938
      %3940 = vrot.lane.b32.xlu0 %v3857, 64
      %v3941 = vpop.permute.xlu0 %3940
      %3942 = vrot.lane.b32.xlu0 %v3858, 64
      %v3943 = vpop.permute.xlu0 %3942
      %3944 = vrot.lane.b32.xlu0 %v3859, 64
      %v3945 = vpop.permute.xlu0 %3944
      %3946 = vrot.lane.b32.xlu0 %v3860, 64
      %v3947 = vpop.permute.xlu0 %3946
      %3948 = vrot.lane.b32.xlu0 %v3861, 64
      %v3949 = vpop.permute.xlu0 %3948
      %3950 = vrot.lane.b32.xlu0 %v3862, 64
      %v3951 = vpop.permute.xlu0 %3950
      %3952 = vrot.lane.b32.xlu0 %v3863, 64
      %v3953 = vpop.permute.xlu0 %3952
      %3954 = vrot.lane.b32.xlu0 %v3864, 64
      %v3955 = vpop.permute.xlu0 %3954
      %3956 = vrot.lane.b32.xlu0 %v3865, 64
      %v3957 = vpop.permute.xlu0 %3956
      %3958 = vrot.lane.b32.xlu0 %v3866, 64
      %v3959 = vpop.permute.xlu0 %3958
      %3960 = vrot.lane.b32.xlu0 %v3867, 64
      %v3961 = vpop.permute.xlu0 %3960
      %3962 = vrot.lane.b32.xlu0 %v3868, 64
      %v3963 = vpop.permute.xlu0 %3962
      %3964 = vrot.lane.b32.xlu0 %v3869, 64
      %v3965 = vpop.permute.xlu0 %3964
      %v3982 = vmul.f32 %v3886, %v3935
      %v3983 = vmul.f32 %v3887, %v3937
      %v3984 = vmul.f32 %v3888, %v3939
      %v3985 = vmul.f32 %v3889, %v3941
      %v3986 = vmul.f32 %v3890, %v3943
      %v3987 = vmul.f32 %v3891, %v3945
      %v3988 = vmul.f32 %v3892, %v3947
      %v3989 = vmul.f32 %v3893, %v3949
      %v3990 = vmul.f32 %v3894, %v3951
      %v3991 = vmul.f32 %v3895, %v3953
      %v3992 = vmul.f32 %v3896, %v3955
      %v3993 = vmul.f32 %v3897, %v3957
      %v3994 = vmul.f32 %v3898, %v3959
      %v3995 = vmul.f32 %v3899, %v3961
      %v3996 = vmul.f32 %v3900, %v3963
      %v3997 = vmul.f32 %v3901, %v3965
      %4014 = vrot.lane.b32.xlu0 %v3982, 32
      %v4015 = vpop.permute.xlu0 %4014
      %4016 = vrot.lane.b32.xlu0 %v3983, 32
      %v4017 = vpop.permute.xlu0 %4016
      %4018 = vrot.lane.b32.xlu0 %v3984, 32
      %v4019 = vpop.permute.xlu0 %4018
      %4020 = vrot.lane.b32.xlu0 %v3985, 32
      %v4021 = vpop.permute.xlu0 %4020
      %4022 = vrot.lane.b32.xlu0 %v3986, 32
      %v4023 = vpop.permute.xlu0 %4022
      %4024 = vrot.lane.b32.xlu0 %v3987, 32
      %v4025 = vpop.permute.xlu0 %4024
      %4026 = vrot.lane.b32.xlu0 %v3988, 32
      %v4027 = vpop.permute.xlu0 %4026
      %4028 = vrot.lane.b32.xlu0 %v3989, 32
      %v4029 = vpop.permute.xlu0 %4028
      %4030 = vrot.lane.b32.xlu0 %v3990, 32
      %v4031 = vpop.permute.xlu0 %4030
      %4032 = vrot.lane.b32.xlu0 %v3991, 32
      %v4033 = vpop.permute.xlu0 %4032
      %4034 = vrot.lane.b32.xlu0 %v3992, 32
      %v4035 = vpop.permute.xlu0 %4034
      %4036 = vrot.lane.b32.xlu0 %v3993, 32
      %v4037 = vpop.permute.xlu0 %4036
      %4038 = vrot.lane.b32.xlu0 %v3994, 32
      %v4039 = vpop.permute.xlu0 %4038
      %4040 = vrot.lane.b32.xlu0 %v3995, 32
      %v4041 = vpop.permute.xlu0 %4040
      %4042 = vrot.lane.b32.xlu0 %v3996, 32
      %v4043 = vpop.permute.xlu0 %4042
      %4044 = vrot.lane.b32.xlu0 %v3997, 32
      %v4045 = vpop.permute.xlu0 %4044
      %v4062 = vadd.f32 %v3902, %v4015
      %v4063 = vadd.f32 %v3903, %v4017
      %v4064 = vadd.f32 %v3904, %v4019
      %v4065 = vadd.f32 %v3905, %v4021
      %v4066 = vadd.f32 %v3906, %v4023
      %v4067 = vadd.f32 %v3907, %v4025
      %v4068 = vadd.f32 %v3908, %v4027
      %v4069 = vadd.f32 %v3909, %v4029
      %v4070 = vadd.f32 %v3910, %v4031
      %v4071 = vadd.f32 %v3911, %v4033
      %v4072 = vadd.f32 %v3912, %v4035
      %v4073 = vadd.f32 %v3913, %v4037
      %v4074 = vadd.f32 %v3914, %v4039
      %v4075 = vadd.f32 %v3915, %v4041
      %v4076 = vadd.f32 %v3916, %v4043
      %v4077 = vadd.f32 %v3917, %v4045
      %v4078 = vtanh.pop %v4062
      %v4079 = vtanh.pop %v4063
      %v4080 = vtanh.pop %v4064
      %v4081 = vtanh.pop %v4065
      %v4082 = vtanh.pop %v4066
      %v4083 = vtanh.pop %v4067
      %v4084 = vtanh.pop %v4068
      %v4085 = vtanh.pop %v4069
      %v4086 = vtanh.pop %v4070
      %v4087 = vtanh.pop %v4071
      %v4088 = vtanh.pop %v4072
      %v4089 = vtanh.pop %v4073
      %v4090 = vtanh.pop %v4074
      %v4091 = vtanh.pop %v4075
      %v4092 = vtanh.pop %v4076
      %v4093 = vtanh.pop %v4077
      %4110 = vrot.lane.b32.xlu0 %v4078, 64
      %v4111 = vpop.permute.xlu0 %4110
      %4112 = vrot.lane.b32.xlu0 %v4079, 64
      %v4113 = vpop.permute.xlu0 %4112
      %4114 = vrot.lane.b32.xlu0 %v4080, 64
      %v4115 = vpop.permute.xlu0 %4114
      %4116 = vrot.lane.b32.xlu0 %v4081, 64
      %v4117 = vpop.permute.xlu0 %4116
      %4118 = vrot.lane.b32.xlu0 %v4082, 64
      %v4119 = vpop.permute.xlu0 %4118
      %4120 = vrot.lane.b32.xlu0 %v4083, 64
      %v4121 = vpop.permute.xlu0 %4120
      %4122 = vrot.lane.b32.xlu0 %v4084, 64
      %v4123 = vpop.permute.xlu0 %4122
      %4124 = vrot.lane.b32.xlu0 %v4085, 64
      %v4125 = vpop.permute.xlu0 %4124
      %4126 = vrot.lane.b32.xlu0 %v4086, 64
      %v4127 = vpop.permute.xlu0 %4126
      %4128 = vrot.lane.b32.xlu0 %v4087, 64
      %v4129 = vpop.permute.xlu0 %4128
      %4130 = vrot.lane.b32.xlu0 %v4088, 64
      %v4131 = vpop.permute.xlu0 %4130
      %4132 = vrot.lane.b32.xlu0 %v4089, 64
      %v4133 = vpop.permute.xlu0 %4132
      %4134 = vrot.lane.b32.xlu0 %v4090, 64
      %v4135 = vpop.permute.xlu0 %4134
      %4136 = vrot.lane.b32.xlu0 %v4091, 64
      %v4137 = vpop.permute.xlu0 %4136
      %4138 = vrot.lane.b32.xlu0 %v4092, 64
      %v4139 = vpop.permute.xlu0 %4138
      %4140 = vrot.lane.b32.xlu0 %v4093, 64
      %v4141 = vpop.permute.xlu0 %4140
      %v4158 = vmul.f32 %v3886, %v4111
      %v4159 = vmul.f32 %v3887, %v4113
      %v4160 = vmul.f32 %v3888, %v4115
      %v4161 = vmul.f32 %v3889, %v4117
      %v4162 = vmul.f32 %v3890, %v4119
      %v4163 = vmul.f32 %v3891, %v4121
      %v4164 = vmul.f32 %v3892, %v4123
      %v4165 = vmul.f32 %v3893, %v4125
      %v4166 = vmul.f32 %v3894, %v4127
      %v4167 = vmul.f32 %v3895, %v4129
      %v4168 = vmul.f32 %v3896, %v4131
      %v4169 = vmul.f32 %v3897, %v4133
      %v4170 = vmul.f32 %v3898, %v4135
      %v4171 = vmul.f32 %v3899, %v4137
      %v4172 = vmul.f32 %v3900, %v4139
      %v4173 = vmul.f32 %v3901, %v4141
      %v4174 = vpack.c.bf16 %v4159, %v4158
      %v4175 = vpack.c.bf16 %v4161, %v4160
      %v4176 = vpack.c.bf16 %v4163, %v4162
      %v4177 = vpack.c.bf16 %v4165, %v4164
      %v4178 = vpack.c.bf16 %v4167, %v4166
      %v4179 = vpack.c.bf16 %v4169, %v4168
      %v4180 = vpack.c.bf16 %v4171, %v4170
      %v4181 = vpack.c.bf16 %v4173, %v4172
      %4190 = vrot.lane.b32.xlu0 %v4174, 32
      %v4191 = vpop.permute.xlu0 %4190
      %4192 = vrot.lane.b32.xlu0 %v4175, 32
      %v4193 = vpop.permute.xlu0 %4192
      %4194 = vrot.lane.b32.xlu0 %v4176, 32
      %v4195 = vpop.permute.xlu0 %4194
      %4196 = vrot.lane.b32.xlu0 %v4177, 32
      %v4197 = vpop.permute.xlu0 %4196
      %4198 = vrot.lane.b32.xlu0 %v4178, 32
      %v4199 = vpop.permute.xlu0 %4198
      %4200 = vrot.lane.b32.xlu0 %v4179, 32
      %v4201 = vpop.permute.xlu0 %4200
      %4202 = vrot.lane.b32.xlu0 %v4180, 32
      %v4203 = vpop.permute.xlu0 %4202
      %4204 = vrot.lane.b32.xlu0 %v4181, 32
      %v4205 = vpop.permute.xlu0 %4204
      %v4207 = vsel %vm695, %v4191, 0
      %v4210 = vsel %vm695, %v4193, 0
      %v4213 = vsel %vm695, %v4195, 0
      %v4216 = vsel %vm695, %v4197, 0
      %v4219 = vsel %vm695, %v4199, 0
      %v4222 = vsel %vm695, %v4201, 0
      %v4225 = vsel %vm695, %v4203, 0
      %v4228 = vsel %vm695, %v4205, 0
      %4230 = vmatprep.subr.bf16.mxu0 %v688
      %4231 = vmatpush1.bf16.msra.mxu0 %v687
      %4232 = vmatprep.subr.bf16.mxu0 %v690
      %4233 = vmatpush1.bf16.msra.mxu0 %v689
      %4234 = vmatprep.subr.bf16.mxu0 0
      %4235 = vmatpush1.bf16.msra.mxu0 0
      %4236 = vmatprep.subr.bf16.mxu0 0
      %4237 = vmatpush1.bf16.msra.mxu0 0
      %4238 = vmatprep.subr.bf16.mxu0 0
      %4239 = vmatpush1.bf16.msra.mxu0 0
      %4240 = vmatprep.subr.bf16.mxu0 0
      %4241 = vmatpush1.bf16.msra.mxu0 0
      %4242 = vmatprep.subr.bf16.mxu0 0
      %4243 = vmatpush1.bf16.msra.mxu0 0
      %4244 = vmatprep.subr.bf16.mxu0 0
      %4245 = vmatpush1.bf16.msra.mxu0 0
      %4246 = vmatprep.subr.bf16.mxu0 0
      %4247 = vmatpush1.bf16.msra.mxu0 0
      %4248 = vmatprep.subr.bf16.mxu0 0
      %4249 = vmatpush1.bf16.msra.mxu0 0
      %4250 = vmatprep.subr.bf16.mxu0 0
      %4251 = vmatpush1.bf16.msra.mxu0 0
      %4252 = vmatprep.subr.bf16.mxu0 0
      %4253 = vmatpush1.bf16.msra.mxu0 0
      %4254 = vmatprep.subr.bf16.mxu0 0
      %4255 = vmatpush1.bf16.msra.mxu0 0
      %4256 = vmatprep.subr.bf16.mxu0 0
      %4257 = vmatpush1.bf16.msra.mxu0 0
      %4258 = vmatprep.subr.bf16.mxu0 0
      %4259 = vmatpush1.bf16.msra.mxu0 0
      %4260 = vmatprep.subr.bf16.mxu0 0
      %4261 = vmatpush1.bf16.msra.mxu0 0
      %4262 = vmatprep.mubr.bf16.mxu0 0
      %4263 = vmatmul.mubr.bf16.gmra.mrb[0].mxu0 %v4207
      %v4264 = vpop.f32.mrb[0].mxu0
      %v4265 = vadd.f32 0.0, %v4264
      %v4266 = vpop.f32.mrb[0].mxu0
      %v4267 = vpop.f32.mrb[0].mxu0
      %v4268 = vadd.f32 0.0, %v4267
      %v4269 = vpop.f32.mrb[0].mxu0
      %4270 = vmatprep.mubr.bf16.mxu0 0
      %4271 = vmatmul.mubr.bf16.gmra.mrb[0].mxu0 %v4210
      %v4272 = vpop.f32.mrb[0].mxu0
      %v4273 = vadd.f32 0.0, %v4272
      %v4274 = vpop.f32.mrb[0].mxu0
      %v4275 = vpop.f32.mrb[0].mxu0
      %v4276 = vadd.f32 0.0, %v4275
      %v4277 = vpop.f32.mrb[0].mxu0
      %4278 = vmatprep.mubr.bf16.mxu0 0
      %4279 = vmatmul.mubr.bf16.gmra.mrb[0].mxu0 %v4213
      %v4280 = vpop.f32.mrb[0].mxu0
      %v4281 = vadd.f32 0.0, %v4280
      %v4282 = vpop.f32.mrb[0].mxu0
      %v4283 = vpop.f32.mrb[0].mxu0
      %v4284 = vadd.f32 0.0, %v4283
      %v4285 = vpop.f32.mrb[0].mxu0
      %4286 = vmatprep.mubr.bf16.mxu0 0
      %4287 = vmatmul.mubr.bf16.gmra.mrb[0].mxu0 %v4216
      %v4288 = vpop.f32.mrb[0].mxu0
      %v4289 = vadd.f32 0.0, %v4288
      %v4290 = vpop.f32.mrb[0].mxu0
      %v4291 = vpop.f32.mrb[0].mxu0
      %v4292 = vadd.f32 0.0, %v4291
      %v4293 = vpop.f32.mrb[0].mxu0
      %4294 = vmatprep.mubr.bf16.mxu0 0
      %4295 = vmatmul.mubr.bf16.gmra.mrb[0].mxu0 %v4219
      %v4296 = vpop.f32.mrb[0].mxu0
      %v4297 = vadd.f32 0.0, %v4296
      %v4298 = vpop.f32.mrb[0].mxu0
      %v4299 = vpop.f32.mrb[0].mxu0
      %v4300 = vadd.f32 0.0, %v4299
      %v4301 = vpop.f32.mrb[0].mxu0
      %4302 = vmatprep.mubr.bf16.mxu0 0
      %4303 = vmatmul.mubr.bf16.gmra.mrb[0].mxu0 %v4222
      %v4304 = vpop.f32.mrb[0].mxu0
      %v4305 = vadd.f32 0.0, %v4304
      %v4306 = vpop.f32.mrb[0].mxu0
      %v4307 = vpop.f32.mrb[0].mxu0
      %v4308 = vadd.f32 0.0, %v4307
      %v4309 = vpop.f32.mrb[0].mxu0
      %4310 = vmatprep.mubr.bf16.mxu0 0
      %4311 = vmatmul.mubr.bf16.gmra.mrb[0].mxu0 %v4225
      %v4312 = vpop.f32.mrb[0].mxu0
      %v4313 = vadd.f32 0.0, %v4312
      %v4314 = vpop.f32.mrb[0].mxu0
      %v4315 = vpop.f32.mrb[0].mxu0
      %v4316 = vadd.f32 0.0, %v4315
      %v4317 = vpop.f32.mrb[0].mxu0
      %4318 = vmatprep.mubr.bf16.mxu0 0
      %4319 = vmatmul.mubr.bf16.gmra.mrb[0].mxu0 %v4228
      %v4320 = vpop.f32.mrb[0].mxu0
      %v4321 = vadd.f32 0.0, %v4320
      %v4322 = vpop.f32.mrb[0].mxu0
      %v4323 = vpop.f32.mrb[0].mxu0
      %v4324 = vadd.f32 0.0, %v4323
      %v4325 = vpop.f32.mrb[0].mxu0
      %4326 = vdwg.mxu0
      %4327 = vset.pattern.permute.xlu0 7
      %4328 = vperm.xlu0 %4327, %v187
      %v4329 = vpop.permute.xlu0 %4328
      %4331 = vset.pattern.permute.xlu0 7
      %4332 = vperm.xlu0 %4331, %v188
      %v4333 = vpop.permute.xlu0 %4332
      %4335 = vset.pattern.permute.xlu0 7
      %4336 = vperm.xlu0 %4335, %v189
      %v4337 = vpop.permute.xlu0 %4336
      %4339 = vset.pattern.permute.xlu0 7
      %4340 = vperm.xlu0 %4339, %v190
      %v4341 = vpop.permute.xlu0 %4340
      %4343 = vset.pattern.permute.xlu0 7
      %4344 = vperm.xlu0 %4343, %v191
      %v4345 = vpop.permute.xlu0 %4344
      %4347 = vset.pattern.permute.xlu0 7
      %4348 = vperm.xlu0 %4347, %v192
      %v4349 = vpop.permute.xlu0 %4348
      %4351 = vset.pattern.permute.xlu0 7
      %4352 = vperm.xlu0 %4351, %v193
      %v4353 = vpop.permute.xlu0 %4352
      %4355 = vset.pattern.permute.xlu0 7
      %4356 = vperm.xlu0 %4355, %v194
      %v4357 = vpop.permute.xlu0 %4356
      %4359 = vset.pattern.permute.xlu0 7
      %4360 = vperm.xlu0 %4359, %v195
      %v4361 = vpop.permute.xlu0 %4360
      %4363 = vset.pattern.permute.xlu0 7
      %4364 = vperm.xlu0 %4363, %v196
      %v4365 = vpop.permute.xlu0 %4364
      %4367 = vset.pattern.permute.xlu0 7
      %4368 = vperm.xlu0 %4367, %v197
      %v4369 = vpop.permute.xlu0 %4368
      %4371 = vset.pattern.permute.xlu0 7
      %4372 = vperm.xlu0 %4371, %v198
      %v4373 = vpop.permute.xlu0 %4372
      %4375 = vset.pattern.permute.xlu0 7
      %4376 = vperm.xlu0 %4375, %v199
      %v4377 = vpop.permute.xlu0 %4376
      %4379 = vset.pattern.permute.xlu0 7
      %4380 = vperm.xlu0 %4379, %v200
      %v4381 = vpop.permute.xlu0 %4380
      %4383 = vset.pattern.permute.xlu0 7
      %4384 = vperm.xlu0 %4383, %v201
      %v4385 = vpop.permute.xlu0 %4384
      %4387 = vset.pattern.permute.xlu0 7
      %4388 = vperm.xlu0 %4387, %v202
      %v4389 = vpop.permute.xlu0 %4388
      %v4391 = vmul.f32 %v4329, %v286
      %v4392 = vmul.f32 %v4333, %v286
      %v4393 = vmul.f32 %v4337, %v286
      %v4394 = vmul.f32 %v4341, %v286
      %v4395 = vmul.f32 %v4345, %v286
      %v4396 = vmul.f32 %v4349, %v286
      %v4397 = vmul.f32 %v4353, %v286
      %v4398 = vmul.f32 %v4357, %v286
      %v4399 = vmul.f32 %v4361, %v286
      %v4400 = vmul.f32 %v4365, %v286
      %v4401 = vmul.f32 %v4369, %v286
      %v4402 = vmul.f32 %v4373, %v286
      %v4403 = vmul.f32 %v4377, %v286
      %v4404 = vmul.f32 %v4381, %v286
      %v4405 = vmul.f32 %v4385, %v286
      %v4406 = vmul.f32 %v4389, %v286
      %v4407 = vadd.f32 %v4391, %v306
      %v4408 = vadd.f32 %v4392, %v306
      %v4409 = vadd.f32 %v4393, %v306
      %v4410 = vadd.f32 %v4394, %v306
      %v4411 = vadd.f32 %v4395, %v306
      %v4412 = vadd.f32 %v4396, %v306
      %v4413 = vadd.f32 %v4397, %v306
      %v4414 = vadd.f32 %v4398, %v306
      %v4415 = vadd.f32 %v4399, %v306
      %v4416 = vadd.f32 %v4400, %v306
      %v4417 = vadd.f32 %v4401, %v306
      %v4418 = vadd.f32 %v4402, %v306
      %v4419 = vadd.f32 %v4403, %v306
      %v4420 = vadd.f32 %v4404, %v306
      %v4421 = vadd.f32 %v4405, %v306
      %v4422 = vadd.f32 %v4406, %v306
      %v4423 = vadd.f32 %v4407, %v4265
      %v4424 = vadd.f32 %v4408, %v4268
      %v4425 = vadd.f32 %v4409, %v4273
      %v4426 = vadd.f32 %v4410, %v4276
      %v4427 = vadd.f32 %v4411, %v4281
      %v4428 = vadd.f32 %v4412, %v4284
      %v4429 = vadd.f32 %v4413, %v4289
      %v4430 = vadd.f32 %v4414, %v4292
      %v4431 = vadd.f32 %v4415, %v4297
      %v4432 = vadd.f32 %v4416, %v4300
      %v4433 = vadd.f32 %v4417, %v4305
      %v4434 = vadd.f32 %v4418, %v4308
      %v4435 = vadd.f32 %v4419, %v4313
      %v4436 = vadd.f32 %v4420, %v4316
      %v4437 = vadd.f32 %v4421, %v4321
      %v4438 = vadd.f32 %v4422, %v4324
      %v4439 = vtanh.pop %v4423
      %v4440 = vtanh.pop %v4424
      %v4441 = vtanh.pop %v4425
      %v4442 = vtanh.pop %v4426
      %v4443 = vtanh.pop %v4427
      %v4444 = vtanh.pop %v4428
      %v4445 = vtanh.pop %v4429
      %v4446 = vtanh.pop %v4430
      %v4447 = vtanh.pop %v4431
      %v4448 = vtanh.pop %v4432
      %v4449 = vtanh.pop %v4433
      %v4450 = vtanh.pop %v4434
      %v4451 = vtanh.pop %v4435
      %v4452 = vtanh.pop %v4436
      %v4453 = vtanh.pop %v4437
      %v4454 = vtanh.pop %v4438
      %v4455 = vmul.f32 %v4439, 0.5
      %v4456 = vmul.f32 %v4440, 0.5
      %v4457 = vmul.f32 %v4441, 0.5
      %v4458 = vmul.f32 %v4442, 0.5
      %v4459 = vmul.f32 %v4443, 0.5
      %v4460 = vmul.f32 %v4444, 0.5
      %v4461 = vmul.f32 %v4445, 0.5
      %v4462 = vmul.f32 %v4446, 0.5
      %v4463 = vmul.f32 %v4447, 0.5
      %v4464 = vmul.f32 %v4448, 0.5
      %v4465 = vmul.f32 %v4449, 0.5
      %v4466 = vmul.f32 %v4450, 0.5
      %v4467 = vmul.f32 %v4451, 0.5
      %v4468 = vmul.f32 %v4452, 0.5
      %v4469 = vmul.f32 %v4453, 0.5
      %v4470 = vmul.f32 %v4454, 0.5
      %v4471 = vadd.f32 %v4455, 0.5
      %v4472 = vadd.f32 %v4456, 0.5
      %v4473 = vadd.f32 %v4457, 0.5
      %v4474 = vadd.f32 %v4458, 0.5
      %v4475 = vadd.f32 %v4459, 0.5
      %v4476 = vadd.f32 %v4460, 0.5
      %v4477 = vadd.f32 %v4461, 0.5
      %v4478 = vadd.f32 %v4462, 0.5
      %v4479 = vadd.f32 %v4463, 0.5
      %v4480 = vadd.f32 %v4464, 0.5
      %v4481 = vadd.f32 %v4465, 0.5
      %v4482 = vadd.f32 %v4466, 0.5
      %v4483 = vadd.f32 %v4467, 0.5
      %v4484 = vadd.f32 %v4468, 0.5
      %v4485 = vadd.f32 %v4469, 0.5
      %v4486 = vadd.f32 %v4470, 0.5
      %v4487 = vmul.f32 %v4471, %v4062
      %v4488 = vmul.f32 %v4472, %v4063
      %v4489 = vmul.f32 %v4473, %v4064
      %v4490 = vmul.f32 %v4474, %v4065
      %v4491 = vmul.f32 %v4475, %v4066
      %v4492 = vmul.f32 %v4476, %v4067
      %v4493 = vmul.f32 %v4477, %v4068
      %v4494 = vmul.f32 %v4478, %v4069
      %v4495 = vmul.f32 %v4479, %v4070
      %v4496 = vmul.f32 %v4480, %v4071
      %v4497 = vmul.f32 %v4481, %v4072
      %v4498 = vmul.f32 %v4482, %v4073
      %v4499 = vmul.f32 %v4483, %v4074
      %v4500 = vmul.f32 %v4484, %v4075
      %v4501 = vmul.f32 %v4485, %v4076
      %v4502 = vmul.f32 %v4486, %v4077
      %4519 = vrot.lane.b32.xlu0 %v4439, 64
      %v4520 = vpop.permute.xlu0 %4519
      %4521 = vrot.lane.b32.xlu0 %v4440, 64
      %v4522 = vpop.permute.xlu0 %4521
      %4523 = vrot.lane.b32.xlu0 %v4441, 64
      %v4524 = vpop.permute.xlu0 %4523
      %4525 = vrot.lane.b32.xlu0 %v4442, 64
      %v4526 = vpop.permute.xlu0 %4525
      %4527 = vrot.lane.b32.xlu0 %v4443, 64
      %v4528 = vpop.permute.xlu0 %4527
      %4529 = vrot.lane.b32.xlu0 %v4444, 64
      %v4530 = vpop.permute.xlu0 %4529
      %4531 = vrot.lane.b32.xlu0 %v4445, 64
      %v4532 = vpop.permute.xlu0 %4531
      %4533 = vrot.lane.b32.xlu0 %v4446, 64
      %v4534 = vpop.permute.xlu0 %4533
      %4535 = vrot.lane.b32.xlu0 %v4447, 64
      %v4536 = vpop.permute.xlu0 %4535
      %4537 = vrot.lane.b32.xlu0 %v4448, 64
      %v4538 = vpop.permute.xlu0 %4537
      %4539 = vrot.lane.b32.xlu0 %v4449, 64
      %v4540 = vpop.permute.xlu0 %4539
      %4541 = vrot.lane.b32.xlu0 %v4450, 64
      %v4542 = vpop.permute.xlu0 %4541
      %4543 = vrot.lane.b32.xlu0 %v4451, 64
      %v4544 = vpop.permute.xlu0 %4543
      %4545 = vrot.lane.b32.xlu0 %v4452, 64
      %v4546 = vpop.permute.xlu0 %4545
      %4547 = vrot.lane.b32.xlu0 %v4453, 64
      %v4548 = vpop.permute.xlu0 %4547
      %4549 = vrot.lane.b32.xlu0 %v4454, 64
      %v4550 = vpop.permute.xlu0 %4549
      %v4567 = vmul.f32 %v4471, %v4520
      %v4568 = vmul.f32 %v4472, %v4522
      %v4569 = vmul.f32 %v4473, %v4524
      %v4570 = vmul.f32 %v4474, %v4526
      %v4571 = vmul.f32 %v4475, %v4528
      %v4572 = vmul.f32 %v4476, %v4530
      %v4573 = vmul.f32 %v4477, %v4532
      %v4574 = vmul.f32 %v4478, %v4534
      %v4575 = vmul.f32 %v4479, %v4536
      %v4576 = vmul.f32 %v4480, %v4538
      %v4577 = vmul.f32 %v4481, %v4540
      %v4578 = vmul.f32 %v4482, %v4542
      %v4579 = vmul.f32 %v4483, %v4544
      %v4580 = vmul.f32 %v4484, %v4546
      %v4581 = vmul.f32 %v4485, %v4548
      %v4582 = vmul.f32 %v4486, %v4550
      %4599 = vrot.lane.b32.xlu0 %v4567, 32
      %v4600 = vpop.permute.xlu0 %4599
      %4601 = vrot.lane.b32.xlu0 %v4568, 32
      %v4602 = vpop.permute.xlu0 %4601
      %4603 = vrot.lane.b32.xlu0 %v4569, 32
      %v4604 = vpop.permute.xlu0 %4603
      %4605 = vrot.lane.b32.xlu0 %v4570, 32
      %v4606 = vpop.permute.xlu0 %4605
      %4607 = vrot.lane.b32.xlu0 %v4571, 32
      %v4608 = vpop.permute.xlu0 %4607
      %4609 = vrot.lane.b32.xlu0 %v4572, 32
      %v4610 = vpop.permute.xlu0 %4609
      %4611 = vrot.lane.b32.xlu0 %v4573, 32
      %v4612 = vpop.permute.xlu0 %4611
      %4613 = vrot.lane.b32.xlu0 %v4574, 32
      %v4614 = vpop.permute.xlu0 %4613
      %4615 = vrot.lane.b32.xlu0 %v4575, 32
      %v4616 = vpop.permute.xlu0 %4615
      %4617 = vrot.lane.b32.xlu0 %v4576, 32
      %v4618 = vpop.permute.xlu0 %4617
      %4619 = vrot.lane.b32.xlu0 %v4577, 32
      %v4620 = vpop.permute.xlu0 %4619
      %4621 = vrot.lane.b32.xlu0 %v4578, 32
      %v4622 = vpop.permute.xlu0 %4621
      %4623 = vrot.lane.b32.xlu0 %v4579, 32
      %v4624 = vpop.permute.xlu0 %4623
      %4625 = vrot.lane.b32.xlu0 %v4580, 32
      %v4626 = vpop.permute.xlu0 %4625
      %4627 = vrot.lane.b32.xlu0 %v4581, 32
      %v4628 = vpop.permute.xlu0 %4627
      %4629 = vrot.lane.b32.xlu0 %v4582, 32
      %v4630 = vpop.permute.xlu0 %4629
      %v4647 = vadd.f32 %v4487, %v4600
      %v4648 = vadd.f32 %v4488, %v4602
      %v4649 = vadd.f32 %v4489, %v4604
      %v4650 = vadd.f32 %v4490, %v4606
      %v4651 = vadd.f32 %v4491, %v4608
      %v4652 = vadd.f32 %v4492, %v4610
      %v4653 = vadd.f32 %v4493, %v4612
      %v4654 = vadd.f32 %v4494, %v4614
      %v4655 = vadd.f32 %v4495, %v4616
      %v4656 = vadd.f32 %v4496, %v4618
      %v4657 = vadd.f32 %v4497, %v4620
      %v4658 = vadd.f32 %v4498, %v4622
      %v4659 = vadd.f32 %v4499, %v4624
      %v4660 = vadd.f32 %v4500, %v4626
      %v4661 = vadd.f32 %v4501, %v4628
      %v4662 = vadd.f32 %v4502, %v4630
      %v4663 = vtanh.pop %v4647
      %v4664 = vtanh.pop %v4648
      %v4665 = vtanh.pop %v4649
      %v4666 = vtanh.pop %v4650
      %v4667 = vtanh.pop %v4651
      %v4668 = vtanh.pop %v4652
      %v4669 = vtanh.pop %v4653
      %v4670 = vtanh.pop %v4654
      %v4671 = vtanh.pop %v4655
      %v4672 = vtanh.pop %v4656
      %v4673 = vtanh.pop %v4657
      %v4674 = vtanh.pop %v4658
      %v4675 = vtanh.pop %v4659
      %v4676 = vtanh.pop %v4660
      %v4677 = vtanh.pop %v4661
      %v4678 = vtanh.pop %v4662
      %4695 = vrot.lane.b32.xlu0 %v4663, 64
      %v4696 = vpop.permute.xlu0 %4695
      %4697 = vrot.lane.b32.xlu0 %v4664, 64
      %v4698 = vpop.permute.xlu0 %4697
      %4699 = vrot.lane.b32.xlu0 %v4665, 64
      %v4700 = vpop.permute.xlu0 %4699
      %4701 = vrot.lane.b32.xlu0 %v4666, 64
      %v4702 = vpop.permute.xlu0 %4701
      %4703 = vrot.lane.b32.xlu0 %v4667, 64
      %v4704 = vpop.permute.xlu0 %4703
      %4705 = vrot.lane.b32.xlu0 %v4668, 64
      %v4706 = vpop.permute.xlu0 %4705
      %4707 = vrot.lane.b32.xlu0 %v4669, 64
      %v4708 = vpop.permute.xlu0 %4707
      %4709 = vrot.lane.b32.xlu0 %v4670, 64
      %v4710 = vpop.permute.xlu0 %4709
      %4711 = vrot.lane.b32.xlu0 %v4671, 64
      %v4712 = vpop.permute.xlu0 %4711
      %4713 = vrot.lane.b32.xlu0 %v4672, 64
      %v4714 = vpop.permute.xlu0 %4713
      %4715 = vrot.lane.b32.xlu0 %v4673, 64
      %v4716 = vpop.permute.xlu0 %4715
      %4717 = vrot.lane.b32.xlu0 %v4674, 64
      %v4718 = vpop.permute.xlu0 %4717
      %4719 = vrot.lane.b32.xlu0 %v4675, 64
      %v4720 = vpop.permute.xlu0 %4719
      %4721 = vrot.lane.b32.xlu0 %v4676, 64
      %v4722 = vpop.permute.xlu0 %4721
      %4723 = vrot.lane.b32.xlu0 %v4677, 64
      %v4724 = vpop.permute.xlu0 %4723
      %4725 = vrot.lane.b32.xlu0 %v4678, 64
      %v4726 = vpop.permute.xlu0 %4725
      %v4743 = vmul.f32 %v4471, %v4696
      %v4744 = vmul.f32 %v4472, %v4698
      %v4745 = vmul.f32 %v4473, %v4700
      %v4746 = vmul.f32 %v4474, %v4702
      %v4747 = vmul.f32 %v4475, %v4704
      %v4748 = vmul.f32 %v4476, %v4706
      %v4749 = vmul.f32 %v4477, %v4708
      %v4750 = vmul.f32 %v4478, %v4710
      %v4751 = vmul.f32 %v4479, %v4712
      %v4752 = vmul.f32 %v4480, %v4714
      %v4753 = vmul.f32 %v4481, %v4716
      %v4754 = vmul.f32 %v4482, %v4718
      %v4755 = vmul.f32 %v4483, %v4720
      %v4756 = vmul.f32 %v4484, %v4722
      %v4757 = vmul.f32 %v4485, %v4724
      %v4758 = vmul.f32 %v4486, %v4726
      %v4759 = vpack.c.bf16 %v4744, %v4743
      %v4760 = vpack.c.bf16 %v4746, %v4745
      %v4761 = vpack.c.bf16 %v4748, %v4747
      %v4762 = vpack.c.bf16 %v4750, %v4749
      %v4763 = vpack.c.bf16 %v4752, %v4751
      %v4764 = vpack.c.bf16 %v4754, %v4753
      %v4765 = vpack.c.bf16 %v4756, %v4755
      %v4766 = vpack.c.bf16 %v4758, %v4757
      %4775 = vrot.lane.b32.xlu0 %v4759, 32
      %v4776 = vpop.permute.xlu0 %4775
      %4777 = vrot.lane.b32.xlu0 %v4760, 32
      %v4778 = vpop.permute.xlu0 %4777
      %4779 = vrot.lane.b32.xlu0 %v4761, 32
      %v4780 = vpop.permute.xlu0 %4779
      %4781 = vrot.lane.b32.xlu0 %v4762, 32
      %v4782 = vpop.permute.xlu0 %4781
      %4783 = vrot.lane.b32.xlu0 %v4763, 32
      %v4784 = vpop.permute.xlu0 %4783
      %4785 = vrot.lane.b32.xlu0 %v4764, 32
      %v4786 = vpop.permute.xlu0 %4785
      %4787 = vrot.lane.b32.xlu0 %v4765, 32
      %v4788 = vpop.permute.xlu0 %4787
      %4789 = vrot.lane.b32.xlu0 %v4766, 32
      %v4790 = vpop.permute.xlu0 %4789
      %v4792 = vsel %vm695, %v4776, 0
      %v4795 = vsel %vm695, %v4778, 0
      %v4798 = vsel %vm695, %v4780, 0
      %v4801 = vsel %vm695, %v4782, 0
      %v4804 = vsel %vm695, %v4784, 0
      %v4807 = vsel %vm695, %v4786, 0
      %v4810 = vsel %vm695, %v4788, 0
      %v4813 = vsel %vm695, %v4790, 0
      %4815 = vmatprep.subr.bf16.mxu0 %v688
      %4816 = vmatpush1.bf16.msra.mxu0 %v687
      %4817 = vmatprep.subr.bf16.mxu0 %v690
      %4818 = vmatpush1.bf16.msra.mxu0 %v689
      %4819 = vmatprep.subr.bf16.mxu0 0
      %4820 = vmatpush1.bf16.msra.mxu0 0
      %4821 = vmatprep.subr.bf16.mxu0 0
      %4822 = vmatpush1.bf16.msra.mxu0 0
      %4823 = vmatprep.subr.bf16.mxu0 0
      %4824 = vmatpush1.bf16.msra.mxu0 0
      %4825 = vmatprep.subr.bf16.mxu0 0
      %4826 = vmatpush1.bf16.msra.mxu0 0
      %4827 = vmatprep.subr.bf16.mxu0 0
      %4828 = vmatpush1.bf16.msra.mxu0 0
      %4829 = vmatprep.subr.bf16.mxu0 0
      %4830 = vmatpush1.bf16.msra.mxu0 0
      %4831 = vmatprep.subr.bf16.mxu0 0
      %4832 = vmatpush1.bf16.msra.mxu0 0
      %4833 = vmatprep.subr.bf16.mxu0 0
      %4834 = vmatpush1.bf16.msra.mxu0 0
      %4835 = vmatprep.subr.bf16.mxu0 0
      %4836 = vmatpush1.bf16.msra.mxu0 0
      %4837 = vmatprep.subr.bf16.mxu0 0
      %4838 = vmatpush1.bf16.msra.mxu0 0
      %4839 = vmatprep.subr.bf16.mxu0 0
      %4840 = vmatpush1.bf16.msra.mxu0 0
      %4841 = vmatprep.subr.bf16.mxu0 0
      %4842 = vmatpush1.bf16.msra.mxu0 0
      %4843 = vmatprep.subr.bf16.mxu0 0
      %4844 = vmatpush1.bf16.msra.mxu0 0
      %4845 = vmatprep.subr.bf16.mxu0 0
      %4846 = vmatpush1.bf16.msra.mxu0 0
      %4847 = vmatprep.mubr.bf16.mxu0 0
      %4848 = vmatmul.mubr.bf16.gmra.mrb[0].mxu0 %v4792
      %v4849 = vpop.f32.mrb[0].mxu0
      %v4850 = vpop.f32.mrb[0].mxu0
      %v4851 = vadd.f32 0.0, %v4850
      %v4852 = vpop.f32.mrb[0].mxu0
      %v4853 = vpop.f32.mrb[0].mxu0
      %v4854 = vadd.f32 0.0, %v4853
      %4855 = vmatprep.mubr.bf16.mxu0 0
      %4856 = vmatmul.mubr.bf16.gmra.mrb[0].mxu0 %v4795
      %v4857 = vpop.f32.mrb[0].mxu0
      %v4858 = vpop.f32.mrb[0].mxu0
      %v4859 = vadd.f32 0.0, %v4858
      %v4860 = vpop.f32.mrb[0].mxu0
      %v4861 = vpop.f32.mrb[0].mxu0
      %v4862 = vadd.f32 0.0, %v4861
      %4863 = vmatprep.mubr.bf16.mxu0 0
      %4864 = vmatmul.mubr.bf16.gmra.mrb[0].mxu0 %v4798
      %v4865 = vpop.f32.mrb[0].mxu0
      %v4866 = vpop.f32.mrb[0].mxu0
      %v4867 = vadd.f32 0.0, %v4866
      %v4868 = vpop.f32.mrb[0].mxu0
      %v4869 = vpop.f32.mrb[0].mxu0
      %v4870 = vadd.f32 0.0, %v4869
      %4871 = vmatprep.mubr.bf16.mxu0 0
      %4872 = vmatmul.mubr.bf16.gmra.mrb[0].mxu0 %v4801
      %v4873 = vpop.f32.mrb[0].mxu0
      %v4874 = vpop.f32.mrb[0].mxu0
      %v4875 = vadd.f32 0.0, %v4874
      %v4876 = vpop.f32.mrb[0].mxu0
      %v4877 = vpop.f32.mrb[0].mxu0
      %v4878 = vadd.f32 0.0, %v4877
      %4879 = vmatprep.mubr.bf16.mxu0 0
      %4880 = vmatmul.mubr.bf16.gmra.mrb[0].mxu0 %v4804
      %v4881 = vpop.f32.mrb[0].mxu0
      %v4882 = vpop.f32.mrb[0].mxu0
      %v4883 = vadd.f32 0.0, %v4882
      %v4884 = vpop.f32.mrb[0].mxu0
      %v4885 = vpop.f32.mrb[0].mxu0
      %v4886 = vadd.f32 0.0, %v4885
      %4887 = vmatprep.mubr.bf16.mxu0 0
      %4888 = vmatmul.mubr.bf16.gmra.mrb[0].mxu0 %v4807
      %v4889 = vpop.f32.mrb[0].mxu0
      %v4890 = vpop.f32.mrb[0].mxu0
      %v4891 = vadd.f32 0.0, %v4890
      %v4892 = vpop.f32.mrb[0].mxu0
      %v4893 = vpop.f32.mrb[0].mxu0
      %v4894 = vadd.f32 0.0, %v4893
      %4895 = vmatprep.mubr.bf16.mxu0 0
      %4896 = vmatmul.mubr.bf16.gmra.mrb[0].mxu0 %v4810
      %v4897 = vpop.f32.mrb[0].mxu0
      %v4898 = vpop.f32.mrb[0].mxu0
      %v4899 = vadd.f32 0.0, %v4898
      %v4900 = vpop.f32.mrb[0].mxu0
      %v4901 = vpop.f32.mrb[0].mxu0
      %v4902 = vadd.f32 0.0, %v4901
      %4903 = vmatprep.mubr.bf16.mxu0 0
      %4904 = vmatmul.mubr.bf16.gmra.mrb[0].mxu0 %v4813
      %v4905 = vpop.f32.mrb[0].mxu0
      %v4906 = vpop.f32.mrb[0].mxu0
      %v4907 = vadd.f32 0.0, %v4906
      %v4908 = vpop.f32.mrb[0].mxu0
      %v4909 = vpop.f32.mrb[0].mxu0
      %v4910 = vadd.f32 0.0, %v4909
      %4911 = vdwg.mxu0
      %v4912 = vlaneseq
      %v4913 = vshrl.u32 %v4912, 7
      %v4914 = vsub.s32 0, %v4913
      %v4915 = vrot.slane %v177, %v4914
      %v4916 = vadd.f32 %v4851, %v4915
      %v4917 = vadd.f32 %v4854, %v4915
      %v4918 = vadd.f32 %v4859, %v4915
      %v4919 = vadd.f32 %v4862, %v4915
      %v4920 = vadd.f32 %v4867, %v4915
      %v4921 = vadd.f32 %v4870, %v4915
      %v4922 = vadd.f32 %v4875, %v4915
      %v4923 = vadd.f32 %v4878, %v4915
      %v4924 = vadd.f32 %v4883, %v4915
      %v4925 = vadd.f32 %v4886, %v4915
      %v4926 = vadd.f32 %v4891, %v4915
      %v4927 = vadd.f32 %v4894, %v4915
      %v4928 = vadd.f32 %v4899, %v4915
      %v4929 = vadd.f32 %v4902, %v4915
      %v4930 = vadd.f32 %v4907, %v4915
      %v4931 = vadd.f32 %v4910, %v4915
      %v4932 = vtanh.pop %v4916
      %v4933 = vtanh.pop %v4917
      %v4934 = vtanh.pop %v4918
      %v4935 = vtanh.pop %v4919
      %v4936 = vtanh.pop %v4920
      %v4937 = vtanh.pop %v4921
      %v4938 = vtanh.pop %v4922
      %v4939 = vtanh.pop %v4923
      %v4940 = vtanh.pop %v4924
      %v4941 = vtanh.pop %v4925
      %v4942 = vtanh.pop %v4926
      %v4943 = vtanh.pop %v4927
      %v4944 = vtanh.pop %v4928
      %v4945 = vtanh.pop %v4929
      %v4946 = vtanh.pop %v4930
      %v4947 = vtanh.pop %v4931
      %v4948 = vpack.c.bf16 %v4933, %v4932
      %v4949 = vpack.c.bf16 %v4935, %v4934
      %v4950 = vpack.c.bf16 %v4937, %v4936
      %v4951 = vpack.c.bf16 %v4939, %v4938
      %v4952 = vpack.c.bf16 %v4941, %v4940
      %v4953 = vpack.c.bf16 %v4943, %v4942
      %v4954 = vpack.c.bf16 %v4945, %v4944
      %v4955 = vpack.c.bf16 %v4947, %v4946
      %v4956 = vlaneseq
      %v4957 = vshrl.u32 %v4956, 7
      %v4958 = vsub.s32 0, %v4957
      %v4959 = vrot.slane %v178, %v4958
      %v4964 = vunpack.c.l.b16 %v183
      %v4965 = vunpack.c.l.b16 %v184
      %v4966 = vunpack.c.l.b16 %v185
      %v4967 = vunpack.c.l.b16 %v186
      %v4968 = vpack.c.b16 %v4965, %v4964
      %v4969 = vpack.c.b16 %v4967, %v4966
      %v4973 = vsel %vm695, %v4948, 0
      %v4976 = vsel %vm695, %v4949, 0
      %v4979 = vsel %vm695, %v4950, 0
      %v4982 = vsel %vm695, %v4951, 0
      %v4985 = vsel %vm695, %v4952, 0
      %v4988 = vsel %vm695, %v4953, 0
      %v4991 = vsel %vm695, %v4954, 0
      %v4994 = vsel %vm695, %v4955, 0
      %4996 = vmatprep.subr.bf16.mxu0 0
      %4997 = vmatpush1.bf16.msra.mxu0 %v4968
      %4998 = vmatprep.subr.bf16.mxu0 0
      %4999 = vmatpush1.bf16.msra.mxu0 %v4969
      %5000 = vmatprep.subr.bf16.mxu0 0
      %5001 = vmatpush1.bf16.msra.mxu0 0
      %5002 = vmatprep.subr.bf16.mxu0 0
      %5003 = vmatpush1.bf16.msra.mxu0 0
      %5004 = vmatprep.subr.bf16.mxu0 0
      %5005 = vmatpush1.bf16.msra.mxu0 0
      %5006 = vmatprep.subr.bf16.mxu0 0
      %5007 = vmatpush1.bf16.msra.mxu0 0
      %5008 = vmatprep.subr.bf16.mxu0 0
      %5009 = vmatpush1.bf16.msra.mxu0 0
      %5010 = vmatprep.subr.bf16.mxu0 0
      %5011 = vmatpush1.bf16.msra.mxu0 0
      %5012 = vmatprep.subr.bf16.mxu0 0
      %5013 = vmatpush1.bf16.msra.mxu0 0
      %5014 = vmatprep.subr.bf16.mxu0 0
      %5015 = vmatpush1.bf16.msra.mxu0 0
      %5016 = vmatprep.subr.bf16.mxu0 0
      %5017 = vmatpush1.bf16.msra.mxu0 0
      %5018 = vmatprep.subr.bf16.mxu0 0
      %5019 = vmatpush1.bf16.msra.mxu0 0
      %5020 = vmatprep.subr.bf16.mxu0 0
      %5021 = vmatpush1.bf16.msra.mxu0 0
      %5022 = vmatprep.subr.bf16.mxu0 0
      %5023 = vmatpush1.bf16.msra.mxu0 0
      %5024 = vmatprep.subr.bf16.mxu0 0
      %5025 = vmatpush1.bf16.msra.mxu0 0
      %5026 = vmatprep.subr.bf16.mxu0 0
      %5027 = vmatpush1.bf16.msra.mxu0 0
      %5028 = vmatprep.mubr.bf16.mxu0 0
      %5029 = vmatmul.mubr.bf16.gmra.mrb[0].mxu0 %v4973
      %v5030 = vpop.f32.mrb[0].mxu0
      %v5031 = vadd.f32 %v4959, %v5030
      %v5032 = vpop.f32.mrb[0].mxu0
      %v5033 = vpop.f32.mrb[0].mxu0
      %v5034 = vadd.f32 %v4959, %v5033
      %v5035 = vpop.f32.mrb[0].mxu0
      %5036 = vmatprep.mubr.bf16.mxu0 0
      %5037 = vmatmul.mubr.bf16.gmra.mrb[0].mxu0 %v4976
      %v5038 = vpop.f32.mrb[0].mxu0
      %v5039 = vadd.f32 %v4959, %v5038
      %v5040 = vpop.f32.mrb[0].mxu0
      %v5041 = vpop.f32.mrb[0].mxu0
      %v5042 = vadd.f32 %v4959, %v5041
      %v5043 = vpop.f32.mrb[0].mxu0
      %5044 = vmatprep.mubr.bf16.mxu0 0
      %5045 = vmatmul.mubr.bf16.gmra.mrb[0].mxu0 %v4979
      %v5046 = vpop.f32.mrb[0].mxu0
      %v5047 = vadd.f32 %v4959, %v5046
      %v5048 = vpop.f32.mrb[0].mxu0
      %v5049 = vpop.f32.mrb[0].mxu0
      %v5050 = vadd.f32 %v4959, %v5049
      %v5051 = vpop.f32.mrb[0].mxu0
      %5052 = vmatprep.mubr.bf16.mxu0 0
      %5053 = vmatmul.mubr.bf16.gmra.mrb[0].mxu0 %v4982
      %v5054 = vpop.f32.mrb[0].mxu0
      %v5055 = vadd.f32 %v4959, %v5054
      %v5056 = vpop.f32.mrb[0].mxu0
      %v5057 = vpop.f32.mrb[0].mxu0
      %v5058 = vadd.f32 %v4959, %v5057
      %v5059 = vpop.f32.mrb[0].mxu0
      %5060 = vmatprep.mubr.bf16.mxu0 0
      %5061 = vmatmul.mubr.bf16.gmra.mrb[0].mxu0 %v4985
      %v5062 = vpop.f32.mrb[0].mxu0
      %v5063 = vadd.f32 %v4959, %v5062
      %v5064 = vpop.f32.mrb[0].mxu0
      %v5065 = vpop.f32.mrb[0].mxu0
      %v5066 = vadd.f32 %v4959, %v5065
      %v5067 = vpop.f32.mrb[0].mxu0
      %5068 = vmatprep.mubr.bf16.mxu0 0
      %5069 = vmatmul.mubr.bf16.gmra.mrb[0].mxu0 %v4988
      %v5070 = vpop.f32.mrb[0].mxu0
      %v5071 = vadd.f32 %v4959, %v5070
      %v5072 = vpop.f32.mrb[0].mxu0
      %v5073 = vpop.f32.mrb[0].mxu0
      %v5074 = vadd.f32 %v4959, %v5073
      %v5075 = vpop.f32.mrb[0].mxu0
      %5076 = vmatprep.mubr.bf16.mxu0 0
      %5077 = vmatmul.mubr.bf16.gmra.mrb[0].mxu0 %v4991
      %v5078 = vpop.f32.mrb[0].mxu0
      %v5079 = vadd.f32 %v4959, %v5078
      %v5080 = vpop.f32.mrb[0].mxu0
      %v5081 = vpop.f32.mrb[0].mxu0
      %v5082 = vadd.f32 %v4959, %v5081
      %v5083 = vpop.f32.mrb[0].mxu0
      %5084 = vmatprep.mubr.bf16.mxu0 0
      %5085 = vmatmul.mubr.bf16.gmra.mrb[0].mxu0 %v4994
      %v5086 = vpop.f32.mrb[0].mxu0
      %v5087 = vadd.f32 %v4959, %v5086
      %v5088 = vpop.f32.mrb[0].mxu0
      %v5089 = vpop.f32.mrb[0].mxu0
      %v5090 = vadd.f32 %v4959, %v5089
      %v5091 = vpop.f32.mrb[0].mxu0
      %5092 = vdwg.mxu0
      %5093 = vst [vmem:[%s172] sm:$0xff] %v5031
      %5094 = vst [vmem:[%s172 + $0x8] sm:$0xff] %v5034
      %5095 = vst [vmem:[%s172 + $0x10] sm:$0xff] %v5039
      %5096 = vst [vmem:[%s172 + $0x18] sm:$0xff] %v5042
      %5097 = vst [vmem:[%s172 + $0x20] sm:$0xff] %v5047
      %5098 = vst [vmem:[%s172 + $0x28] sm:$0xff] %v5050
      %5099 = vst [vmem:[%s172 + $0x30] sm:$0xff] %v5055
      %5100 = vst [vmem:[%s172 + $0x38] sm:$0xff] %v5058
      %5101 = vst [vmem:[%s172 + $0x40] sm:$0xff] %v5063
      %5102 = vst [vmem:[%s172 + $0x48] sm:$0xff] %v5066
      %5103 = vst [vmem:[%s172 + $0x50] sm:$0xff] %v5071
      %5104 = vst [vmem:[%s172 + $0x58] sm:$0xff] %v5074
      %5105 = vst [vmem:[%s172 + $0x60] sm:$0xff] %v5079
      %5106 = vst [vmem:[%s172 + $0x68] sm:$0xff] %v5082
      %5107 = vst [vmem:[%s172 + $0x70] sm:$0xff] %v5087
      %5108 = vst [vmem:[%s172 + $0x78] sm:$0xff] %v5090
      %5125 = vrot.lane.b32.xlu0 %v4916, 105
      %v5126 = vpop.permute.xlu0 %5125
      %5127 = vrot.lane.b32.xlu0 %v4917, 105
      %v5128 = vpop.permute.xlu0 %5127
      %5129 = vrot.lane.b32.xlu0 %v4918, 105
      %v5130 = vpop.permute.xlu0 %5129
      %5131 = vrot.lane.b32.xlu0 %v4919, 105
      %v5132 = vpop.permute.xlu0 %5131
      %5133 = vrot.lane.b32.xlu0 %v4920, 105
      %v5134 = vpop.permute.xlu0 %5133
      %5135 = vrot.lane.b32.xlu0 %v4921, 105
      %v5136 = vpop.permute.xlu0 %5135
      %5137 = vrot.lane.b32.xlu0 %v4922, 105
      %v5138 = vpop.permute.xlu0 %5137
      %5139 = vrot.lane.b32.xlu0 %v4923, 105
      %v5140 = vpop.permute.xlu0 %5139
      %5141 = vrot.lane.b32.xlu0 %v4924, 105
      %v5142 = vpop.permute.xlu0 %5141
      %5143 = vrot.lane.b32.xlu0 %v4925, 105
      %v5144 = vpop.permute.xlu0 %5143
      %5145 = vrot.lane.b32.xlu0 %v4926, 105
      %v5146 = vpop.permute.xlu0 %5145
      %5147 = vrot.lane.b32.xlu0 %v4927, 105
      %v5148 = vpop.permute.xlu0 %5147
      %5149 = vrot.lane.b32.xlu0 %v4928, 105
      %v5150 = vpop.permute.xlu0 %5149
      %5151 = vrot.lane.b32.xlu0 %v4929, 105
      %v5152 = vpop.permute.xlu0 %5151
      %5153 = vrot.lane.b32.xlu0 %v4930, 105
      %v5154 = vpop.permute.xlu0 %5153
      %5155 = vrot.lane.b32.xlu0 %v4931, 105
      %v5156 = vpop.permute.xlu0 %5155
      %vm5173 = vcmask 80968
      %5174 = vst.msk [vmem:[%s172] sm:$0xff] %vm5173, %v5126
      %5175 = vst.msk [vmem:[%s172 + $0x8] sm:$0xff] %vm5173, %v5128
      %5176 = vst.msk [vmem:[%s172 + $0x10] sm:$0xff] %vm5173, %v5130
      %5177 = vst.msk [vmem:[%s172 + $0x18] sm:$0xff] %vm5173, %v5132
      %5178 = vst.msk [vmem:[%s172 + $0x20] sm:$0xff] %vm5173, %v5134
      %5179 = vst.msk [vmem:[%s172 + $0x28] sm:$0xff] %vm5173, %v5136
      %5180 = vst.msk [vmem:[%s172 + $0x30] sm:$0xff] %vm5173, %v5138
      %5181 = vst.msk [vmem:[%s172 + $0x38] sm:$0xff] %vm5173, %v5140
      %5182 = vst.msk [vmem:[%s172 + $0x40] sm:$0xff] %vm5173, %v5142
      %5183 = vst.msk [vmem:[%s172 + $0x48] sm:$0xff] %vm5173, %v5144
      %5184 = vst.msk [vmem:[%s172 + $0x50] sm:$0xff] %vm5173, %v5146
      %5185 = vst.msk [vmem:[%s172 + $0x58] sm:$0xff] %vm5173, %v5148
      %5186 = vst.msk [vmem:[%s172 + $0x60] sm:$0xff] %vm5173, %v5150
      %5187 = vst.msk [vmem:[%s172 + $0x68] sm:$0xff] %vm5173, %v5152
      %5188 = vst.msk [vmem:[%s172 + $0x70] sm:$0xff] %vm5173, %v5154
      %5189 = vst.msk [vmem:[%s172 + $0x78] sm:$0xff] %vm5173, %v5156
      %s5190 = smul.u32 16, %s14
      %p5191 = scmp.lt.s32.totalorder %s5190, 31
      %s5192 = scalar_select %p5191, %s5190, 31
      %s5193 = smul.addr %s5192, 8
      %s5194 = scalar_lea.vmem %s3, %s5193
      // Predicated region
      $region33: #{rmtpp_forward.1} parent=31 // pred_check
        %p5195 = pneg %p100
      $region34: #{rmtpp_forward.1} parent=31 // pred_check_branch
        %5197 = sbr.rel (%p5195) target = $region36
      $region35: #{rmtpp_forward.1} parent=31 // pred_region
        %s5198 = smul.u32 16, %s14
      $region36: #{rmtpp_forward.1} parent=31 // pred_fallthru
        _
    $region32: #{rmtpp_forward.1} parent=5 // pred_fallthru
      _
    %p5199 = scmp.le.s32.totalorder 2, %s9
    // Predicated region
    $region37: #{rmtpp_forward.1} parent=5 // pred_check
      %p5200 = pneg %p5199
    $region38: #{rmtpp_forward.1} parent=5 // pred_check_branch
      %5202 = sbr.rel (%p5200) target = $region40
    $region39: #{rmtpp_forward.1} parent=5 // pred_region
      %s5203 = ssub.s32 %s9, 2
      // Predicated region
      $region41: #{rmtpp_forward.1} parent=39 // pred_check
        %p5204 = pneg %p106
      $region42: #{rmtpp_forward.1} parent=39 // pred_check_branch
        %5206 = sbr.rel (%p5204) target = $region44
      $region43: #{rmtpp_forward.1} parent=39 // pred_region
        %s5207 = smul.u32 16, %s15
        %p5208 = scmp.lt.s32.totalorder %s5207, 31
        %s5209 = scalar_select %p5208, %s5207, 31
        %s5210 = smul.addr %s5209, 8
        %s5211 = scalar_lea.vmem %s3, %s5210
      $region44: #{rmtpp_forward.1} parent=39 // pred_fallthru
        _
    $region40: #{rmtpp_forward.1} parent=5 // pred_fallthru
      _
  $region6: #{rmtpp_forward.1} parent=0 // loop_footer
    %s13 = sadd.s32 1, %s9
  $region7: #{rmtpp_forward.1} parent=0 // loop_footer_branch
    %8 = sbr.rel target = $region3
  $region8: #{rmtpp_forward.1} parent=0 // loop_exit
    _

</llo_original>
